<compile_context>
chip_gen: v7x
topology: tpu7x:2x2x1
jax: 0.10.0
libtpu: 0.0.40
codegen_flags: <defaults>
</compile_context>

<pallas_src>
import functools
import math

import jax
import jax.numpy as jnp
from jax.experimental import pallas as pl
from jax.experimental.pallas import tpu as pltpu


LN_EPS = 1e-12  # HF ViT layer_norm_eps


def _layernorm(x, g, b, eps=LN_EPS):
    mean = jnp.mean(x, axis=-1, keepdims=True)
    c = x - mean
    var = jnp.mean(c * c, axis=-1, keepdims=True)
    return c * jax.lax.rsqrt(var + eps) * g + b


def _gelu_erf(y):
    # exact (erf) GELU, matching HF ViT's default hidden_act="gelu"
    return 0.5 * y * (1.0 + jax.lax.erf(y * (1.0 / math.sqrt(2.0))))


# ------------------- kernel A: patch-embed + CLS + pos-emb + pad -------------------


def _embed_kernel(patches_ref, pw_ref, pb_ref, cls0_ref, posb_ref, o_ref, *, np_, s_pad):
    hidden = posb_ref.shape[1]
    emb = jnp.dot(
        patches_ref[0], pw_ref[...], preferred_element_type=jnp.float32
    ) + pb_ref[...] + posb_ref[...]                                   # (NP, hidden) f32
    rows = [cls0_ref[...], emb]                                       # CLS row already has pos[0]
    pad = s_pad - (np_ + 1)
    if pad:
        rows.append(jnp.zeros((pad, hidden), jnp.float32))            # padded sequence rows
    o_ref[0] = jnp.concatenate(rows, axis=0).astype(o_ref.dtype)


def embed(patches, patch_w, patch_b, cls_pos0, pos_body, s_pad):
    """patches: (B, NP, C*P*P) bf16 -> residual stream (B, S_pad, hidden) bf16."""
    B, NP, CPP = patches.shape
    hidden = patch_w.shape[1]
    return pl.pallas_call(
        functools.partial(_embed_kernel, np_=NP, s_pad=s_pad),
        out_shape=jax.ShapeDtypeStruct((B, s_pad, hidden), jnp.bfloat16),
        grid=(B,),
        in_specs=[
            pl.BlockSpec((1, NP, CPP), lambda b: (b, 0, 0)),
            pl.BlockSpec((CPP, hidden), lambda b: (0, 0)),
            pl.BlockSpec((1, hidden), lambda b: (0, 0)),
            pl.BlockSpec((1, hidden), lambda b: (0, 0)),
            pl.BlockSpec((NP, hidden), lambda b: (0, 0)),
        ],
        out_specs=pl.BlockSpec((1, s_pad, hidden), lambda b: (b, 0, 0)),
        compiler_params=pltpu.CompilerParams(dimension_semantics=("parallel",)),
    )(patches, patch_w, patch_b, cls_pos0, pos_body)


# ------------------- kernel B: one full encoder layer, fused -------------------


def _layer_kernel(h_ref, ln1g_ref, ln1b_ref, wqkv_ref, bqkv_ref, wo_ref, bo_ref,
                  ln2g_ref, ln2b_ref, w1_ref, b1_ref, w2_ref, b2_ref, o_ref,
                  *, nh, dh, scale, s_valid, s_pad):
    hidden = nh * dh
    h = h_ref[0].astype(jnp.float32)                                  # (S_pad, hidden)

    # ---- attention block: pre-LN, fused QKV projection (one matmul) ----
    xn = _layernorm(h, ln1g_ref[...], ln1b_ref[...])
    qkv = jnp.dot(
        xn.astype(jnp.bfloat16), wqkv_ref[...], preferred_element_type=jnp.float32
    ) + bqkv_ref[...]                                                 # (S_pad, 3*hidden)

    need_mask = s_valid < s_pad
    if need_mask:
        key_idx = jax.lax.broadcasted_iota(jnp.int32, (s_pad, s_pad), 1)

    # Per-head SDPA.  Each head's context is folded into the output projection
    # immediately (accumulate ctx_h @ Wo[head rows]) so no lane-axis concatenate
    # or per-head relayout copy of the merged context is ever materialized.
    attn = jnp.zeros((s_pad, hidden), jnp.float32)
    for hi in range(nh):
        q = qkv[:, hi * dh:(hi + 1) * dh].astype(jnp.bfloat16)
        k = qkv[:, hidden + hi * dh: hidden + (hi + 1) * dh].astype(jnp.bfloat16)
        v = qkv[:, 2 * hidden + hi * dh: 2 * hidden + (hi + 1) * dh].astype(jnp.bfloat16)
        s = jax.lax.dot_general(                                      # contract last dims (no k.T)
            q, k, (((1,), (1,)), ((), ())), preferred_element_type=jnp.float32
        ) * scale
        if need_mask:
            s = jnp.where(key_idx < s_valid, s, jnp.float32(-1e30))   # mask padded keys
        m = jnp.max(s, axis=-1, keepdims=True)
        p = jnp.exp(s - m)
        p = p * pl.reciprocal(jnp.sum(p, axis=-1, keepdims=True), approx=True)  # EUP
        ctx_h = jnp.dot(p.astype(jnp.bfloat16), v, preferred_element_type=jnp.float32)
        attn = attn + jnp.dot(
            ctx_h.astype(jnp.bfloat16),
            wo_ref[hi * dh:(hi + 1) * dh, :],
            preferred_element_type=jnp.float32,
        )
    h1 = attn + bo_ref[...] + h                                       # out-proj bias + residual

    # ---- MLP block: pre-LN, up-projection + erf GELU, down-projection + residual ----
    xn2 = _layernorm(h1, ln2g_ref[...], ln2b_ref[...])
    up = _gelu_erf(
        jnp.dot(xn2.astype(jnp.bfloat16), w1_ref[...],
                preferred_element_type=jnp.float32) + b1_ref[...]
    )
    h2 = jnp.dot(
        up.astype(jnp.bfloat16), w2_ref[...], preferred_element_type=jnp.float32
    ) + b2_ref[...] + h1
    o_ref[0] = h2.astype(o_ref.dtype)


def encoder_layer(h, layer, nh, dh, s_valid):
    """One full pre-norm transformer encoder layer in a single pallas_call."""
    B, S_pad, hidden = h.shape
    inter = layer["w1"].shape[1]
    scale = 1.0 / math.sqrt(dh)

    def wmap(shape):
        return pl.BlockSpec(shape, lambda b: (0, 0))

    return pl.pallas_call(
        functools.partial(_layer_kernel, nh=nh, dh=dh, scale=scale,
                          s_valid=s_valid, s_pad=S_pad),
        out_shape=jax.ShapeDtypeStruct((B, S_pad, hidden), jnp.bfloat16),
        grid=(B,),
        in_specs=[
            pl.BlockSpec((1, S_pad, hidden), lambda b: (b, 0, 0)),
            wmap((1, hidden)), wmap((1, hidden)),                     # ln1 gamma/beta
            wmap((hidden, 3 * hidden)), wmap((1, 3 * hidden)),        # fused wqkv / bqkv
            wmap((hidden, hidden)), wmap((1, hidden)),                # wo / bo
            wmap((1, hidden)), wmap((1, hidden)),                     # ln2 gamma/beta
            wmap((hidden, inter)), wmap((1, inter)),                  # w1 / b1
            wmap((inter, hidden)), wmap((1, hidden)),                 # w2 / b2
        ],
        out_specs=pl.BlockSpec((1, S_pad, hidden), lambda b: (b, 0, 0)),
        compiler_params=pltpu.CompilerParams(dimension_semantics=("parallel",)),
    )(
        h,
        layer["ln1_g"].reshape(1, hidden), layer["ln1_b"].reshape(1, hidden),
        layer["wqkv"], layer["bqkv"].reshape(1, 3 * hidden),
        layer["wo"], layer["bo"].reshape(1, hidden),
        layer["ln2_g"].reshape(1, hidden), layer["ln2_b"].reshape(1, hidden),
        layer["w1"], layer["b1"].reshape(1, inter),
        layer["w2"], layer["b2"].reshape(1, hidden),
    )


# ------------------- kernel C: final LayerNorm + classifier head -------------------


def _cls_kernel(x_ref, g_ref, b_ref, w_ref, bias_ref, o_ref):
    x = x_ref[...].astype(jnp.float32)
    xn = _layernorm(x, g_ref[...], b_ref[...])
    o_ref[...] = jnp.dot(
        xn.astype(jnp.bfloat16), w_ref[...], preferred_element_type=jnp.float32
    ) + bias_ref[...]


def classifier(cls_h, g, b, w_pad, b_pad):
    """logits = LayerNorm(cls_h) @ w_pad + b_pad; lanes padded to a 128 multiple."""
    B, hidden = cls_h.shape
    n_pad = w_pad.shape[1]
    return pl.pallas_call(
        _cls_kernel,
        out_shape=jax.ShapeDtypeStruct((B, n_pad), jnp.float32),
        grid=(1,),
        in_specs=[
            pl.BlockSpec((B, hidden), lambda i: (0, 0)),
            pl.BlockSpec((1, hidden), lambda i: (0, 0)),
            pl.BlockSpec((1, hidden), lambda i: (0, 0)),
            pl.BlockSpec((hidden, n_pad), lambda i: (0, 0)),
            pl.BlockSpec((1, n_pad), lambda i: (0, 0)),
        ],
        out_specs=pl.BlockSpec((B, n_pad), lambda i: (0, 0)),
        compiler_params=pltpu.CompilerParams(dimension_semantics=("arbitrary",)),
    )(cls_h, g, b, w_pad, b_pad)


# ----------------------------- ViT forward -----------------------------


def vit_forward(x, params, cfg):
    """x: (B, C, H, W) float32 pixel values (NCHW). Returns logits (B, num_labels)."""
    B, C, H, W = x.shape
    P = cfg["patch"]
    hidden = cfg["hidden"]
    nh = cfg["heads"]
    dh = hidden // nh
    nph, npw = H // P, W // P
    NP = nph * npw
    S = NP + 1
    S_pad = ((S + 7) // 8) * 8  # sublane-align the sequence once; padded keys are masked

    # --- patch extraction (Conv2d(C, hidden, kernel=P, stride=P) as a matmul) ---
    # TODO(synk): fold this transpose into the embed kernel's index_map at full size.
    patches = x.reshape(B, C, nph, P, npw, P).transpose(0, 2, 4, 1, 3, 5)
    patches = patches.reshape(B, NP, C * P * P).astype(jnp.bfloat16)

    cls_pos0 = (params["cls_token"][0] + params["pos_emb"][0, 0:1]).astype(jnp.float32)
    pos_body = params["pos_emb"][0, 1:S].astype(jnp.float32)

    # fused patch-embed + CLS + pos-emb + pad -> (B, S_pad, hidden) bf16
    h = embed(patches, params["patch_w"], params["patch_b"].reshape(1, hidden),
              cls_pos0, pos_body, S_pad)

    # one pallas_call per encoder layer
    for layer in params["layers"]:
        h = encoder_layer(h, layer, nh, dh, S)

    # final LayerNorm fused with the classifier, applied only to the CLS token
    cls_h = h[:, 0, :]
    logits = classifier(cls_h, params["ln_f_g"].reshape(1, hidden),
                        params["ln_f_b"].reshape(1, hidden),
                        params["cls_w"], params["cls_b"].reshape(1, -1))
    return logits[:, :cfg["num_labels"]]


# ----------------------------- parameter init -----------------------------


def init_params(key, cfg):
    # TODO(synk): pretrained google/vit-base-patch16-224-in21k weights are not loadable
    # in-script; random init with matching structure is used instead.
    C, P, hidden, inter = cfg["channels"], cfg["patch"], cfg["hidden"], cfg["intermediate"]
    NP = (cfg["image"] // P) ** 2
    S = NP + 1
    num_labels = cfg["num_labels"]
    n_pad = ((num_labels + 127) // 128) * 128  # lane-dense classifier output

    def nrm_bf16(k, shape, std=0.02):
        return (std * jax.random.normal(k, shape, jnp.float32)).astype(jnp.bfloat16)

    def nrm_f32(k, shape, std=0.02):
        return (std * jax.random.normal(k, shape, jnp.float32)).astype(jnp.float32)

    keys = jax.random.split(key, 4 + 4 * cfg["layers"])
    ki = iter(keys)
    cls_w = nrm_bf16(next(ki), (hidden, num_labels))
    p = {
        "patch_w": nrm_bf16(next(ki), (C * P * P, hidden)),
        "patch_b": jnp.zeros((hidden,), jnp.float32),
        "cls_token": nrm_f32(next(ki), (1, 1, hidden)),
        "pos_emb": nrm_f32(next(ki), (1, S, hidden)),
        "ln_f_g": jnp.ones((hidden,), jnp.float32),
        "ln_f_b": jnp.zeros((hidden,), jnp.float32),
        # classifier pre-padded to a 128-lane multiple; logits sliced back in the wrapper
        "cls_w": jnp.pad(cls_w, ((0, 0), (0, n_pad - num_labels))),
        "cls_b": jnp.zeros((n_pad,), jnp.float32),
        "layers": [],
    }
    for _ in range(cfg["layers"]):
        layer = {
            "ln1_g": jnp.ones((hidden,), jnp.float32),
            "ln1_b": jnp.zeros((hidden,), jnp.float32),
            "wqkv": nrm_bf16(next(ki), (hidden, 3 * hidden)),   # fused wq|wk|wv
            "bqkv": jnp.zeros((3 * hidden,), jnp.float32),
            "wo": nrm_bf16(next(ki), (hidden, hidden)),
            "bo": jnp.zeros((hidden,), jnp.float32),
            "ln2_g": jnp.ones((hidden,), jnp.float32),
            "ln2_b": jnp.zeros((hidden,), jnp.float32),
            "w1": nrm_bf16(next(ki), (hidden, inter)),
            "b1": jnp.zeros((inter,), jnp.float32),
            "w2": nrm_bf16(next(ki), (inter, hidden)),
            "b2": jnp.zeros((hidden,), jnp.float32),
        }
        p["layers"].append(layer)
    return p


# ----------------------------- main -----------------------------


if __name__ == "__main__":
    # Small-shape stand-in for ViT-B/16 (224x224, 768 hidden, 12 layers, 12 heads):
    cfg = dict(
        image=32,          # 224 -> 32
        patch=8,           # 16  -> 8   => 16 patches + CLS = 17 tokens (padded to 24)
        channels=3,
        hidden=32,         # 768 -> 32
        heads=4,           # 12  -> 4   (head_dim 8)
        layers=2,          # 12  -> 2
        intermediate=128,  # 3072 -> 128 (4 * hidden)
        num_labels=365,    # matches ViTForImageClassification(..., num_labels=365)
    )

    key = jax.random.PRNGKey(0)
    k_x, k_p = jax.random.split(key)
    x = jax.random.normal(k_x, (2, cfg["channels"], cfg["image"], cfg["image"]), jnp.float32)
    params = init_params(k_p, cfg)

    logits = jax.jit(functools.partial(vit_forward, cfg=cfg))(x, params)
    logits = jax.block_until_ready(logits)
    assert logits.shape == (2, cfg["num_labels"]), logits.shape
    assert logits.dtype == jnp.float32
    print("KERNEL_OK")
</pallas_src>

<mosaic_0001>
module attributes {stable_mosaic.version = 11 : i64} {
  func.func @_embed_kernel(%arg0: i32, %arg1: memref<1x16x192xbf16, #tpu.memory_space<vmem>>, %arg2: memref<192x32xbf16, #tpu.memory_space<vmem>>, %arg3: memref<1x32xf32, #tpu.memory_space<vmem>>, %arg4: memref<1x32xf32, #tpu.memory_space<vmem>>, %arg5: memref<16x32xf32, #tpu.memory_space<vmem>>, %arg6: memref<1x24x32xbf16, #tpu.memory_space<vmem>>) attributes {dimension_semantics = [#tpu.dimension_semantics<parallel>], iteration_bounds = array<i64: 2>, scalar_prefetch = 0 : i64, scratch_operands = 0 : i64, tpu.core_type = #tpu.core_type<tc>, window_params = [{transform_indices = @transform_0, window_bounds = array<i64: 1, 16, 192>}, {pipeline_mode = #tpu.pipeline_mode<synchronous>, transform_indices = @transform_1, window_bounds = array<i64: 192, 32>}, {pipeline_mode = #tpu.pipeline_mode<synchronous>, transform_indices = @transform_2, window_bounds = array<i64: 1, 32>}, {pipeline_mode = #tpu.pipeline_mode<synchronous>, transform_indices = @transform_3, window_bounds = array<i64: 1, 32>}, {pipeline_mode = #tpu.pipeline_mode<synchronous>, transform_indices = @transform_4, window_bounds = array<i64: 16, 32>}, {transform_indices = @transform_5, window_bounds = array<i64: 1, 24, 32>}]} {
    %c0 = arith.constant 0 : index
    %c0_0 = arith.constant 0 : index
    %c0_1 = arith.constant 0 : index
    %0 = vector.load %arg1[%c0, %c0_0, %c0_1] : memref<1x16x192xbf16, #tpu.memory_space<vmem>>, vector<1x16x192xbf16>
    %1 = vector.shape_cast %0 : vector<1x16x192xbf16> to vector<16x192xbf16>
    %c0_2 = arith.constant 0 : index
    %c0_3 = arith.constant 0 : index
    %2 = vector.load %arg2[%c0_2, %c0_3] : memref<192x32xbf16, #tpu.memory_space<vmem>>, vector<192x32xbf16>
    %cst = arith.constant dense<0.000000e+00> : vector<16x32xf32>
    %3 = tpu.matmul %1, %2, %cst {dimension_numbers = #tpu.dot_dimension_numbers<[1], [0], [0], [1], [0, 0, 1, 1], [], []>} : vector<16x192xbf16>, vector<192x32xbf16>, vector<16x32xf32> -> vector<16x32xf32>
    %c0_4 = arith.constant 0 : index
    %c0_5 = arith.constant 0 : index
    %4 = vector.load %arg3[%c0_4, %c0_5] : memref<1x32xf32, #tpu.memory_space<vmem>>, vector<1x32xf32>
    %5 = vector.broadcast %4 : vector<1x32xf32> to vector<16x32xf32>
    %6 = arith.addf %3, %5 : vector<16x32xf32>
    %c0_6 = arith.constant 0 : index
    %c0_7 = arith.constant 0 : index
    %7 = vector.load %arg5[%c0_6, %c0_7] : memref<16x32xf32, #tpu.memory_space<vmem>>, vector<16x32xf32>
    %8 = arith.addf %6, %7 : vector<16x32xf32>
    %c0_8 = arith.constant 0 : index
    %c0_9 = arith.constant 0 : index
    %9 = vector.load %arg4[%c0_8, %c0_9] : memref<1x32xf32, #tpu.memory_space<vmem>>, vector<1x32xf32>
    %cst_10 = arith.constant 0.000000e+00 : f32
    %10 = vector.broadcast %cst_10 : f32 to vector<7x32xf32>
    %11 = tpu.concatenate %9, %8, %10 in 0 : vector<1x32xf32>, vector<16x32xf32>, vector<7x32xf32> -> vector<24x32xf32>
    %12 = arith.truncf %11 : vector<24x32xf32> to vector<24x32xbf16>
    %c0_11 = arith.constant 0 : index
    %c0_12 = arith.constant 0 : index
    %c0_13 = arith.constant 0 : index
    %13 = vector.load %arg6[%c0_11, %c0_12, %c0_13] : memref<1x24x32xbf16, #tpu.memory_space<vmem>>, vector<1x24x32xbf16>
    %14 = vector.shape_cast %13 : vector<1x24x32xbf16> to vector<24x32xbf16>
    %15 = vector.shape_cast %12 : vector<24x32xbf16> to vector<1x24x32xbf16>
    tpu.vector_store %arg6[%c0_11, %c0_12, %c0_13], %15 {strides = array<i32>} : memref<1x24x32xbf16, #tpu.memory_space<vmem>>, vector<1x24x32xbf16>,
    return
  }
  func.func @transform_0(%arg0: i32) -> (i32, i32, i32) {
    %c0_i32 = arith.constant 0 : i32
    %c0_i32_0 = arith.constant 0 : i32
    %c0_i32_1 = arith.constant 0 : i32
    return %arg0, %c0_i32, %c0_i32_0 : i32, i32, i32
  }
  func.func @transform_1(%arg0: i32) -> (i32, i32) {
    %c0_i32 = arith.constant 0 : i32
    %c0_i32_0 = arith.constant 0 : i32
    %c0_i32_1 = arith.constant 0 : i32
    return %c0_i32, %c0_i32_0 : i32, i32
  }
  func.func @transform_2(%arg0: i32) -> (i32, i32) {
    %c0_i32 = arith.constant 0 : i32
    %c0_i32_0 = arith.constant 0 : i32
    %c0_i32_1 = arith.constant 0 : i32
    return %c0_i32, %c0_i32_0 : i32, i32
  }
  func.func @transform_3(%arg0: i32) -> (i32, i32) {
    %c0_i32 = arith.constant 0 : i32
    %c0_i32_0 = arith.constant 0 : i32
    %c0_i32_1 = arith.constant 0 : i32
    return %c0_i32, %c0_i32_0 : i32, i32
  }
  func.func @transform_4(%arg0: i32) -> (i32, i32) {
    %c0_i32 = arith.constant 0 : i32
    %c0_i32_0 = arith.constant 0 : i32
    %c0_i32_1 = arith.constant 0 : i32
    return %c0_i32, %c0_i32_0 : i32, i32
  }
  func.func @transform_5(%arg0: i32) -> (i32, i32, i32) {
    %c0_i32 = arith.constant 0 : i32
    %c0_i32_0 = arith.constant 0 : i32
    %c0_i32_1 = arith.constant 0 : i32
    return %arg0, %c0_i32, %c0_i32_0 : i32, i32, i32
  }
}

module attributes {stable_mosaic.version = 11 : i64} {
  func.func @_cls_kernel(%arg0: i32, %arg1: memref<2x32xbf16, #tpu.memory_space<vmem>>, %arg2: memref<1x32xf32, #tpu.memory_space<vmem>>, %arg3: memref<1x32xf32, #tpu.memory_space<vmem>>, %arg4: memref<32x384xbf16, #tpu.memory_space<vmem>>, %arg5: memref<1x384xf32, #tpu.memory_space<vmem>>, %arg6: memref<2x384xf32, #tpu.memory_space<vmem>>) attributes {dimension_semantics = [#tpu.dimension_semantics<arbitrary>], iteration_bounds = array<i64: 1>, scalar_prefetch = 0 : i64, scratch_operands = 0 : i64, tpu.core_type = #tpu.core_type<tc>, window_params = [{pipeline_mode = #tpu.pipeline_mode<synchronous>, transform_indices = @transform_0, window_bounds = array<i64: 2, 32>}, {pipeline_mode = #tpu.pipeline_mode<synchronous>, transform_indices = @transform_1, window_bounds = array<i64: 1, 32>}, {pipeline_mode = #tpu.pipeline_mode<synchronous>, transform_indices = @transform_2, window_bounds = array<i64: 1, 32>}, {pipeline_mode = #tpu.pipeline_mode<synchronous>, transform_indices = @transform_3, window_bounds = array<i64: 32, 384>}, {pipeline_mode = #tpu.pipeline_mode<synchronous>, transform_indices = @transform_4, window_bounds = array<i64: 1, 384>}, {pipeline_mode = #tpu.pipeline_mode<synchronous>, transform_indices = @transform_5, window_bounds = array<i64: 2, 384>}]} {
    %c0 = arith.constant 0 : index
    %c0_0 = arith.constant 0 : index
    %0 = vector.load %arg1[%c0, %c0_0] : memref<2x32xbf16, #tpu.memory_space<vmem>>, vector<2x32xbf16>
    %1 = arith.extf %0 : vector<2x32xbf16> to vector<2x32xf32>
    %c0_1 = arith.constant 0 : index
    %c0_2 = arith.constant 0 : index
    %2 = vector.load %arg2[%c0_1, %c0_2] : memref<1x32xf32, #tpu.memory_space<vmem>>, vector<1x32xf32>
    %c0_3 = arith.constant 0 : index
    %c0_4 = arith.constant 0 : index
    %3 = vector.load %arg3[%c0_3, %c0_4] : memref<1x32xf32, #tpu.memory_space<vmem>>, vector<1x32xf32>
    %cst = arith.constant dense<0.000000e+00> : vector<2xf32>
    %4 = vector.multi_reduction <add>, %1, %cst [1] : vector<2x32xf32> to vector<2xf32>
    %5 = vector.shape_cast %4 : vector<2xf32> to vector<2x1xf32>
    %cst_5 = arith.constant 3.200000e+01 : f32
    %6 = vector.broadcast %cst_5 : f32 to vector<2x1xf32>
    %7 = arith.divf %5, %6 : vector<2x1xf32>
    %8 = vector.broadcast %7 : vector<2x1xf32> to vector<2x32xf32>
    %9 = arith.subf %1, %8 : vector<2x32xf32>
    %10 = arith.mulf %9, %9 : vector<2x32xf32>
    %cst_6 = arith.constant dense<0.000000e+00> : vector<2xf32>
    %11 = vector.multi_reduction <add>, %10, %cst_6 [1] : vector<2x32xf32> to vector<2xf32>
    %12 = vector.shape_cast %11 : vector<2xf32> to vector<2x1xf32>
    %cst_7 = arith.constant 3.200000e+01 : f32
    %13 = vector.broadcast %cst_7 : f32 to vector<2x1xf32>
    %14 = arith.divf %12, %13 : vector<2x1xf32>
    %cst_8 = arith.constant 9.99999996E-13 : f32
    %15 = vector.broadcast %cst_8 : f32 to vector<2x1xf32>
    %16 = arith.addf %14, %15 : vector<2x1xf32>
    %17 = math.rsqrt %16 : vector<2x1xf32>
    %18 = vector.broadcast %17 : vector<2x1xf32> to vector<2x32xf32>
    %19 = arith.mulf %9, %18 : vector<2x32xf32>
    %20 = vector.broadcast %2 : vector<1x32xf32> to vector<2x32xf32>
    %21 = arith.mulf %19, %20 : vector<2x32xf32>
    %22 = vector.broadcast %3 : vector<1x32xf32> to vector<2x32xf32>
    %23 = arith.addf %21, %22 : vector<2x32xf32>
    %24 = arith.truncf %23 : vector<2x32xf32> to vector<2x32xbf16>
    %c0_9 = arith.constant 0 : index
    %c0_10 = arith.constant 0 : index
    %25 = vector.load %arg4[%c0_9, %c0_10] : memref<32x384xbf16, #tpu.memory_space<vmem>>, vector<32x384xbf16>
    %cst_11 = arith.constant dense<0.000000e+00> : vector<2x384xf32>
    %26 = tpu.matmul %24, %25, %cst_11 {dimension_numbers = #tpu.dot_dimension_numbers<[1], [0], [0], [1], [0, 0, 1, 1], [], []>} : vector<2x32xbf16>, vector<32x384xbf16>, vector<2x384xf32> -> vector<2x384xf32>
    %c0_12 = arith.constant 0 : index
    %c0_13 = arith.constant 0 : index
    %27 = vector.load %arg5[%c0_12, %c0_13] : memref<1x384xf32, #tpu.memory_space<vmem>>, vector<1x384xf32>
    %28 = vector.broadcast %27 : vector<1x384xf32> to vector<2x384xf32>
    %29 = arith.addf %26, %28 : vector<2x384xf32>
    %c0_14 = arith.constant 0 : index
    %c0_15 = arith.constant 0 : index
    %30 = vector.load %arg6[%c0_14, %c0_15] : memref<2x384xf32, #tpu.memory_space<vmem>>, vector<2x384xf32>
    tpu.vector_store %arg6[%c0_14, %c0_15], %29 {strides = array<i32>} : memref<2x384xf32, #tpu.memory_space<vmem>>, vector<2x384xf32>,
    return
  }
  func.func @transform_0(%arg0: i32) -> (i32, i32) {
    %c0_i32 = arith.constant 0 : i32
    %c0_i32_0 = arith.constant 0 : i32
    %c0_i32_1 = arith.constant 0 : i32
    return %c0_i32, %c0_i32_0 : i32, i32
  }
  func.func @transform_1(%arg0: i32) -> (i32, i32) {
    %c0_i32 = arith.constant 0 : i32
    %c0_i32_0 = arith.constant 0 : i32
    %c0_i32_1 = arith.constant 0 : i32
    return %c0_i32, %c0_i32_0 : i32, i32
  }
  func.func @transform_2(%arg0: i32) -> (i32, i32) {
    %c0_i32 = arith.constant 0 : i32
    %c0_i32_0 = arith.constant 0 : i32
    %c0_i32_1 = arith.constant 0 : i32
    return %c0_i32, %c0_i32_0 : i32, i32
  }
  func.func @transform_3(%arg0: i32) -> (i32, i32) {
    %c0_i32 = arith.constant 0 : i32
    %c0_i32_0 = arith.constant 0 : i32
    %c0_i32_1 = arith.constant 0 : i32
    return %c0_i32, %c0_i32_0 : i32, i32
  }
  func.func @transform_4(%arg0: i32) -> (i32, i32) {
    %c0_i32 = arith.constant 0 : i32
    %c0_i32_0 = arith.constant 0 : i32
    %c0_i32_1 = arith.constant 0 : i32
    return %c0_i32, %c0_i32_0 : i32, i32
  }
  func.func @transform_5(%arg0: i32) -> (i32, i32) {
    %c0_i32 = arith.constant 0 : i32
    %c0_i32_0 = arith.constant 0 : i32
    %c0_i32_1 = arith.constant 0 : i32
    return %c0_i32, %c0_i32_0 : i32, i32
  }
}

module attributes {stable_mosaic.version = 11 : i64} {
  func.func @_layer_kernel(%arg0: i32, %arg1: memref<1x24x32xbf16, #tpu.memory_space<vmem>>, %arg2: memref<1x32xf32, #tpu.memory_space<vmem>>, %arg3: memref<1x32xf32, #tpu.memory_space<vmem>>, %arg4: memref<32x96xbf16, #tpu.memory_space<vmem>>, %arg5: memref<1x96xf32, #tpu.memory_space<vmem>>, %arg6: memref<32x32xbf16, #tpu.memory_space<vmem>>, %arg7: memref<1x32xf32, #tpu.memory_space<vmem>>, %arg8: memref<1x32xf32, #tpu.memory_space<vmem>>, %arg9: memref<1x32xf32, #tpu.memory_space<vmem>>, %arg10: memref<32x128xbf16, #tpu.memory_space<vmem>>, %arg11: memref<1x128xf32, #tpu.memory_space<vmem>>, %arg12: memref<128x32xbf16, #tpu.memory_space<vmem>>, %arg13: memref<1x32xf32, #tpu.memory_space<vmem>>, %arg14: memref<1x24x32xbf16, #tpu.memory_space<vmem>>) attributes {dimension_semantics = [#tpu.dimension_semantics<parallel>], iteration_bounds = array<i64: 2>, scalar_prefetch = 0 : i64, scratch_operands = 0 : i64, tpu.core_type = #tpu.core_type<tc>, window_params = [{transform_indices = @transform_0, window_bounds = array<i64: 1, 24, 32>}, {pipeline_mode = #tpu.pipeline_mode<synchronous>, transform_indices = @transform_1, window_bounds = array<i64: 1, 32>}, {pipeline_mode = #tpu.pipeline_mode<synchronous>, transform_indices = @transform_2, window_bounds = array<i64: 1, 32>}, {pipeline_mode = #tpu.pipeline_mode<synchronous>, transform_indices = @transform_3, window_bounds = array<i64: 32, 96>}, {pipeline_mode = #tpu.pipeline_mode<synchronous>, transform_indices = @transform_4, window_bounds = array<i64: 1, 96>}, {pipeline_mode = #tpu.pipeline_mode<synchronous>, transform_indices = @transform_5, window_bounds = array<i64: 32, 32>}, {pipeline_mode = #tpu.pipeline_mode<synchronous>, transform_indices = @transform_6, window_bounds = array<i64: 1, 32>}, {pipeline_mode = #tpu.pipeline_mode<synchronous>, transform_indices = @transform_7, window_bounds = array<i64: 1, 32>}, {pipeline_mode = #tpu.pipeline_mode<synchronous>, transform_indices = @transform_8, window_bounds = array<i64: 1, 32>}, {pipeline_mode = #tpu.pipeline_mode<synchronous>, transform_indices = @transform_9, window_bounds = array<i64: 32, 128>}, {pipeline_mode = #tpu.pipeline_mode<synchronous>, transform_indices = @transform_10, window_bounds = array<i64: 1, 128>}, {pipeline_mode = #tpu.pipeline_mode<synchronous>, transform_indices = @transform_11, window_bounds = array<i64: 128, 32>}, {pipeline_mode = #tpu.pipeline_mode<synchronous>, transform_indices = @transform_12, window_bounds = array<i64: 1, 32>}, {transform_indices = @transform_13, window_bounds = array<i64: 1, 24, 32>}]} {
    %c0 = arith.constant 0 : index
    %c0_0 = arith.constant 0 : index
    %c0_1 = arith.constant 0 : index
    %0 = vector.load %arg1[%c0, %c0_0, %c0_1] : memref<1x24x32xbf16, #tpu.memory_space<vmem>>, vector<1x24x32xbf16>
    %1 = vector.shape_cast %0 : vector<1x24x32xbf16> to vector<24x32xbf16>
    %2 = arith.extf %1 : vector<24x32xbf16> to vector<24x32xf32>
    %c0_2 = arith.constant 0 : index
    %c0_3 = arith.constant 0 : index
    %3 = vector.load %arg2[%c0_2, %c0_3] : memref<1x32xf32, #tpu.memory_space<vmem>>, vector<1x32xf32>
    %c0_4 = arith.constant 0 : index
    %c0_5 = arith.constant 0 : index
    %4 = vector.load %arg3[%c0_4, %c0_5] : memref<1x32xf32, #tpu.memory_space<vmem>>, vector<1x32xf32>
    %cst = arith.constant dense<0.000000e+00> : vector<24xf32>
    %5 = vector.multi_reduction <add>, %2, %cst [1] : vector<24x32xf32> to vector<24xf32>
    %6 = vector.shape_cast %5 : vector<24xf32> to vector<24x1xf32>
    %cst_6 = arith.constant 3.200000e+01 : f32
    %7 = vector.broadcast %cst_6 : f32 to vector<24x1xf32>
    %8 = arith.divf %6, %7 : vector<24x1xf32>
    %9 = vector.broadcast %8 : vector<24x1xf32> to vector<24x32xf32>
    %10 = arith.subf %2, %9 : vector<24x32xf32>
    %11 = arith.mulf %10, %10 : vector<24x32xf32>
    %cst_7 = arith.constant dense<0.000000e+00> : vector<24xf32>
    %12 = vector.multi_reduction <add>, %11, %cst_7 [1] : vector<24x32xf32> to vector<24xf32>
    %13 = vector.shape_cast %12 : vector<24xf32> to vector<24x1xf32>
    %cst_8 = arith.constant 3.200000e+01 : f32
    %14 = vector.broadcast %cst_8 : f32 to vector<24x1xf32>
    %15 = arith.divf %13, %14 : vector<24x1xf32>
    %cst_9 = arith.constant 9.99999996E-13 : f32
    %16 = vector.broadcast %cst_9 : f32 to vector<24x1xf32>
    %17 = arith.addf %15, %16 : vector<24x1xf32>
    %18 = math.rsqrt %17 : vector<24x1xf32>
    %19 = vector.broadcast %18 : vector<24x1xf32> to vector<24x32xf32>
    %20 = arith.mulf %10, %19 : vector<24x32xf32>
    %21 = vector.broadcast %3 : vector<1x32xf32> to vector<24x32xf32>
    %22 = arith.mulf %20, %21 : vector<24x32xf32>
    %23 = vector.broadcast %4 : vector<1x32xf32> to vector<24x32xf32>
    %24 = arith.addf %22, %23 : vector<24x32xf32>
    %25 = arith.truncf %24 : vector<24x32xf32> to vector<24x32xbf16>
    %c0_10 = arith.constant 0 : index
    %c0_11 = arith.constant 0 : index
    %26 = vector.load %arg4[%c0_10, %c0_11] : memref<32x96xbf16, #tpu.memory_space<vmem>>, vector<32x96xbf16>
    %cst_12 = arith.constant dense<0.000000e+00> : vector<24x96xf32>
    %27 = tpu.matmul %25, %26, %cst_12 {dimension_numbers = #tpu.dot_dimension_numbers<[1], [0], [0], [1], [0, 0, 1, 1], [], []>} : vector<24x32xbf16>, vector<32x96xbf16>, vector<24x96xf32> -> vector<24x96xf32>
    %c0_13 = arith.constant 0 : index
    %c0_14 = arith.constant 0 : index
    %28 = vector.load %arg5[%c0_13, %c0_14] : memref<1x96xf32, #tpu.memory_space<vmem>>, vector<1x96xf32>
    %29 = vector.broadcast %28 : vector<1x96xf32> to vector<24x96xf32>
    %30 = arith.addf %27, %29 : vector<24x96xf32>
    %31 = tpu.iota {dimensions = array<i32: 1>} : vector<24x24xi32>
    %cst_15 = arith.constant 0.000000e+00 : f32
    %32 = vector.broadcast %cst_15 : f32 to vector<24x32xf32>
    %33 = vector.extract_strided_slice %30 {offsets = [0, 0], sizes = [24, 8], strides = [1, 1]} : vector<24x96xf32> to vector<24x8xf32>
    %34 = arith.truncf %33 : vector<24x8xf32> to vector<24x8xbf16>
    %35 = vector.extract_strided_slice %30 {offsets = [0, 32], sizes = [24, 8], strides = [1, 1]} : vector<24x96xf32> to vector<24x8xf32>
    %36 = arith.truncf %35 : vector<24x8xf32> to vector<24x8xbf16>
    %37 = vector.extract_strided_slice %30 {offsets = [0, 64], sizes = [24, 8], strides = [1, 1]} : vector<24x96xf32> to vector<24x8xf32>
    %38 = arith.truncf %37 : vector<24x8xf32> to vector<24x8xbf16>
    %cst_16 = arith.constant dense<0.000000e+00> : vector<24x24xf32>
    %39 = tpu.matmul %34, %36, %cst_16 {dimension_numbers = #tpu.dot_dimension_numbers<[1], [1], [0], [0], [0, 0, 1, 0], [], []>} : vector<24x8xbf16>, vector<24x8xbf16>, vector<24x24xf32> -> vector<24x24xf32>
    %cst_17 = arith.constant 0.353553385 : f32
    %40 = vector.broadcast %cst_17 : f32 to vector<24x24xf32>
    %41 = arith.mulf %39, %40 : vector<24x24xf32>
    %c17_i32 = arith.constant 17 : i32
    %42 = vector.broadcast %c17_i32 : i32 to vector<24x24xi32>
    %43 = arith.cmpi slt, %31, %42 : vector<24x24xi32>
    %cst_18 = arith.constant -1.000000e+30 : f32
    %44 = vector.broadcast %cst_18 : f32 to vector<24x24xf32>
    %45 = arith.select %43, %41, %44 : vector<24x24xi1>, vector<24x24xf32>
    %cst_19 = arith.constant dense<0xFF800000> : vector<24xf32>
    %46 = vector.multi_reduction <maximumf>, %45, %cst_19 [1] : vector<24x24xf32> to vector<24xf32>
    %47 = vector.shape_cast %46 : vector<24xf32> to vector<24x1xf32>
    %48 = vector.broadcast %47 : vector<24x1xf32> to vector<24x24xf32>
    %49 = arith.subf %45, %48 : vector<24x24xf32>
    %50 = math.exp %49 : vector<24x24xf32>
    %cst_20 = arith.constant dense<0.000000e+00> : vector<24xf32>
    %51 = vector.multi_reduction <add>, %50, %cst_20 [1] : vector<24x24xf32> to vector<24xf32>
    %52 = vector.shape_cast %51 : vector<24xf32> to vector<24x1xf32>
    %53 = tpu.reciprocal %52 {approx = true} : vector<24x1xf32> -> vector<24x1xf32>
    %54 = vector.broadcast %53 : vector<24x1xf32> to vector<24x24xf32>
    %55 = arith.mulf %50, %54 : vector<24x24xf32>
    %56 = arith.truncf %55 : vector<24x24xf32> to vector<24x24xbf16>
    %cst_21 = arith.constant dense<0.000000e+00> : vector<24x8xf32>
    %57 = tpu.matmul %56, %38, %cst_21 {dimension_numbers = #tpu.dot_dimension_numbers<[1], [0], [0], [1], [0, 0, 1, 1], [], []>} : vector<24x24xbf16>, vector<24x8xbf16>, vector<24x8xf32> -> vector<24x8xf32>
    %58 = arith.truncf %57 : vector<24x8xf32> to vector<24x8xbf16>
    %c0_22 = arith.constant 0 : index
    %c0_23 = arith.constant 0 : index
    %59 = vector.load %arg6[%c0_22, %c0_23] : memref<32x32xbf16, #tpu.memory_space<vmem>>, vector<8x32xbf16>
    %cst_24 = arith.constant dense<0.000000e+00> : vector<24x32xf32>
    %60 = tpu.matmul %58, %59, %cst_24 {dimension_numbers = #tpu.dot_dimension_numbers<[1], [0], [0], [1], [0, 0, 1, 1], [], []>} : vector<24x8xbf16>, vector<8x32xbf16>, vector<24x32xf32> -> vector<24x32xf32>
    %61 = arith.addf %32, %60 : vector<24x32xf32>
    %62 = vector.extract_strided_slice %30 {offsets = [0, 8], sizes = [24, 8], strides = [1, 1]} : vector<24x96xf32> to vector<24x8xf32>
    %63 = arith.truncf %62 : vector<24x8xf32> to vector<24x8xbf16>
    %64 = vector.extract_strided_slice %30 {offsets = [0, 40], sizes = [24, 8], strides = [1, 1]} : vector<24x96xf32> to vector<24x8xf32>
    %65 = arith.truncf %64 : vector<24x8xf32> to vector<24x8xbf16>
    %66 = vector.extract_strided_slice %30 {offsets = [0, 72], sizes = [24, 8], strides = [1, 1]} : vector<24x96xf32> to vector<24x8xf32>
    %67 = arith.truncf %66 : vector<24x8xf32> to vector<24x8xbf16>
    %cst_25 = arith.constant dense<0.000000e+00> : vector<24x24xf32>
    %68 = tpu.matmul %63, %65, %cst_25 {dimension_numbers = #tpu.dot_dimension_numbers<[1], [1], [0], [0], [0, 0, 1, 0], [], []>} : vector<24x8xbf16>, vector<24x8xbf16>, vector<24x24xf32> -> vector<24x24xf32>
    %cst_26 = arith.constant 0.353553385 : f32
    %69 = vector.broadcast %cst_26 : f32 to vector<24x24xf32>
    %70 = arith.mulf %68, %69 : vector<24x24xf32>
    %c17_i32_27 = arith.constant 17 : i32
    %71 = vector.broadcast %c17_i32_27 : i32 to vector<24x24xi32>
    %72 = arith.cmpi slt, %31, %71 : vector<24x24xi32>
    %cst_28 = arith.constant -1.000000e+30 : f32
    %73 = vector.broadcast %cst_28 : f32 to vector<24x24xf32>
    %74 = arith.select %72, %70, %73 : vector<24x24xi1>, vector<24x24xf32>
    %cst_29 = arith.constant dense<0xFF800000> : vector<24xf32>
    %75 = vector.multi_reduction <maximumf>, %74, %cst_29 [1] : vector<24x24xf32> to vector<24xf32>
    %76 = vector.shape_cast %75 : vector<24xf32> to vector<24x1xf32>
    %77 = vector.broadcast %76 : vector<24x1xf32> to vector<24x24xf32>
    %78 = arith.subf %74, %77 : vector<24x24xf32>
    %79 = math.exp %78 : vector<24x24xf32>
    %cst_30 = arith.constant dense<0.000000e+00> : vector<24xf32>
    %80 = vector.multi_reduction <add>, %79, %cst_30 [1] : vector<24x24xf32> to vector<24xf32>
    %81 = vector.shape_cast %80 : vector<24xf32> to vector<24x1xf32>
    %82 = tpu.reciprocal %81 {approx = true} : vector<24x1xf32> -> vector<24x1xf32>
    %83 = vector.broadcast %82 : vector<24x1xf32> to vector<24x24xf32>
    %84 = arith.mulf %79, %83 : vector<24x24xf32>
    %85 = arith.truncf %84 : vector<24x24xf32> to vector<24x24xbf16>
    %cst_31 = arith.constant dense<0.000000e+00> : vector<24x8xf32>
    %86 = tpu.matmul %85, %67, %cst_31 {dimension_numbers = #tpu.dot_dimension_numbers<[1], [0], [0], [1], [0, 0, 1, 1], [], []>} : vector<24x24xbf16>, vector<24x8xbf16>, vector<24x8xf32> -> vector<24x8xf32>
    %87 = arith.truncf %86 : vector<24x8xf32> to vector<24x8xbf16>
    %c8 = arith.constant 8 : index
    %c0_32 = arith.constant 0 : index
    %88 = vector.load %arg6[%c8, %c0_32] : memref<32x32xbf16, #tpu.memory_space<vmem>>, vector<8x32xbf16>
    %cst_33 = arith.constant dense<0.000000e+00> : vector<24x32xf32>
    %89 = tpu.matmul %87, %88, %cst_33 {dimension_numbers = #tpu.dot_dimension_numbers<[1], [0], [0], [1], [0, 0, 1, 1], [], []>} : vector<24x8xbf16>, vector<8x32xbf16>, vector<24x32xf32> -> vector<24x32xf32>
    %90 = arith.addf %61, %89 : vector<24x32xf32>
    %91 = vector.extract_strided_slice %30 {offsets = [0, 16], sizes = [24, 8], strides = [1, 1]} : vector<24x96xf32> to vector<24x8xf32>
    %92 = arith.truncf %91 : vector<24x8xf32> to vector<24x8xbf16>
    %93 = vector.extract_strided_slice %30 {offsets = [0, 48], sizes = [24, 8], strides = [1, 1]} : vector<24x96xf32> to vector<24x8xf32>
    %94 = arith.truncf %93 : vector<24x8xf32> to vector<24x8xbf16>
    %95 = vector.extract_strided_slice %30 {offsets = [0, 80], sizes = [24, 8], strides = [1, 1]} : vector<24x96xf32> to vector<24x8xf32>
    %96 = arith.truncf %95 : vector<24x8xf32> to vector<24x8xbf16>
    %cst_34 = arith.constant dense<0.000000e+00> : vector<24x24xf32>
    %97 = tpu.matmul %92, %94, %cst_34 {dimension_numbers = #tpu.dot_dimension_numbers<[1], [1], [0], [0], [0, 0, 1, 0], [], []>} : vector<24x8xbf16>, vector<24x8xbf16>, vector<24x24xf32> -> vector<24x24xf32>
    %cst_35 = arith.constant 0.353553385 : f32
    %98 = vector.broadcast %cst_35 : f32 to vector<24x24xf32>
    %99 = arith.mulf %97, %98 : vector<24x24xf32>
    %c17_i32_36 = arith.constant 17 : i32
    %100 = vector.broadcast %c17_i32_36 : i32 to vector<24x24xi32>
    %101 = arith.cmpi slt, %31, %100 : vector<24x24xi32>
    %cst_37 = arith.constant -1.000000e+30 : f32
    %102 = vector.broadcast %cst_37 : f32 to vector<24x24xf32>
    %103 = arith.select %101, %99, %102 : vector<24x24xi1>, vector<24x24xf32>
    %cst_38 = arith.constant dense<0xFF800000> : vector<24xf32>
    %104 = vector.multi_reduction <maximumf>, %103, %cst_38 [1] : vector<24x24xf32> to vector<24xf32>
    %105 = vector.shape_cast %104 : vector<24xf32> to vector<24x1xf32>
    %106 = vector.broadcast %105 : vector<24x1xf32> to vector<24x24xf32>
    %107 = arith.subf %103, %106 : vector<24x24xf32>
    %108 = math.exp %107 : vector<24x24xf32>
    %cst_39 = arith.constant dense<0.000000e+00> : vector<24xf32>
    %109 = vector.multi_reduction <add>, %108, %cst_39 [1] : vector<24x24xf32> to vector<24xf32>
    %110 = vector.shape_cast %109 : vector<24xf32> to vector<24x1xf32>
    %111 = tpu.reciprocal %110 {approx = true} : vector<24x1xf32> -> vector<24x1xf32>
    %112 = vector.broadcast %111 : vector<24x1xf32> to vector<24x24xf32>
    %113 = arith.mulf %108, %112 : vector<24x24xf32>
    %114 = arith.truncf %113 : vector<24x24xf32> to vector<24x24xbf16>
    %cst_40 = arith.constant dense<0.000000e+00> : vector<24x8xf32>
    %115 = tpu.matmul %114, %96, %cst_40 {dimension_numbers = #tpu.dot_dimension_numbers<[1], [0], [0], [1], [0, 0, 1, 1], [], []>} : vector<24x24xbf16>, vector<24x8xbf16>, vector<24x8xf32> -> vector<24x8xf32>
    %116 = arith.truncf %115 : vector<24x8xf32> to vector<24x8xbf16>
    %c16 = arith.constant 16 : index
    %c0_41 = arith.constant 0 : index
    %117 = vector.load %arg6[%c16, %c0_41] : memref<32x32xbf16, #tpu.memory_space<vmem>>, vector<8x32xbf16>
    %cst_42 = arith.constant dense<0.000000e+00> : vector<24x32xf32>
    %118 = tpu.matmul %116, %117, %cst_42 {dimension_numbers = #tpu.dot_dimension_numbers<[1], [0], [0], [1], [0, 0, 1, 1], [], []>} : vector<24x8xbf16>, vector<8x32xbf16>, vector<24x32xf32> -> vector<24x32xf32>
    %119 = arith.addf %90, %118 : vector<24x32xf32>
    %120 = vector.extract_strided_slice %30 {offsets = [0, 24], sizes = [24, 8], strides = [1, 1]} : vector<24x96xf32> to vector<24x8xf32>
    %121 = arith.truncf %120 : vector<24x8xf32> to vector<24x8xbf16>
    %122 = vector.extract_strided_slice %30 {offsets = [0, 56], sizes = [24, 8], strides = [1, 1]} : vector<24x96xf32> to vector<24x8xf32>
    %123 = arith.truncf %122 : vector<24x8xf32> to vector<24x8xbf16>
    %124 = vector.extract_strided_slice %30 {offsets = [0, 88], sizes = [24, 8], strides = [1, 1]} : vector<24x96xf32> to vector<24x8xf32>
    %125 = arith.truncf %124 : vector<24x8xf32> to vector<24x8xbf16>
    %cst_43 = arith.constant dense<0.000000e+00> : vector<24x24xf32>
    %126 = tpu.matmul %121, %123, %cst_43 {dimension_numbers = #tpu.dot_dimension_numbers<[1], [1], [0], [0], [0, 0, 1, 0], [], []>} : vector<24x8xbf16>, vector<24x8xbf16>, vector<24x24xf32> -> vector<24x24xf32>
    %cst_44 = arith.constant 0.353553385 : f32
    %127 = vector.broadcast %cst_44 : f32 to vector<24x24xf32>
    %128 = arith.mulf %126, %127 : vector<24x24xf32>
    %c17_i32_45 = arith.constant 17 : i32
    %129 = vector.broadcast %c17_i32_45 : i32 to vector<24x24xi32>
    %130 = arith.cmpi slt, %31, %129 : vector<24x24xi32>
    %cst_46 = arith.constant -1.000000e+30 : f32
    %131 = vector.broadcast %cst_46 : f32 to vector<24x24xf32>
    %132 = arith.select %130, %128, %131 : vector<24x24xi1>, vector<24x24xf32>
    %cst_47 = arith.constant dense<0xFF800000> : vector<24xf32>
    %133 = vector.multi_reduction <maximumf>, %132, %cst_47 [1] : vector<24x24xf32> to vector<24xf32>
    %134 = vector.shape_cast %133 : vector<24xf32> to vector<24x1xf32>
    %135 = vector.broadcast %134 : vector<24x1xf32> to vector<24x24xf32>
    %136 = arith.subf %132, %135 : vector<24x24xf32>
    %137 = math.exp %136 : vector<24x24xf32>
    %cst_48 = arith.constant dense<0.000000e+00> : vector<24xf32>
    %138 = vector.multi_reduction <add>, %137, %cst_48 [1] : vector<24x24xf32> to vector<24xf32>
    %139 = vector.shape_cast %138 : vector<24xf32> to vector<24x1xf32>
    %140 = tpu.reciprocal %139 {approx = true} : vector<24x1xf32> -> vector<24x1xf32>
    %141 = vector.broadcast %140 : vector<24x1xf32> to vector<24x24xf32>
    %142 = arith.mulf %137, %141 : vector<24x24xf32>
    %143 = arith.truncf %142 : vector<24x24xf32> to vector<24x24xbf16>
    %cst_49 = arith.constant dense<0.000000e+00> : vector<24x8xf32>
    %144 = tpu.matmul %143, %125, %cst_49 {dimension_numbers = #tpu.dot_dimension_numbers<[1], [0], [0], [1], [0, 0, 1, 1], [], []>} : vector<24x24xbf16>, vector<24x8xbf16>, vector<24x8xf32> -> vector<24x8xf32>
    %145 = arith.truncf %144 : vector<24x8xf32> to vector<24x8xbf16>
    %c24 = arith.constant 24 : index
    %c0_50 = arith.constant 0 : index
    %146 = vector.load %arg6[%c24, %c0_50] : memref<32x32xbf16, #tpu.memory_space<vmem>>, vector<8x32xbf16>
    %cst_51 = arith.constant dense<0.000000e+00> : vector<24x32xf32>
    %147 = tpu.matmul %145, %146, %cst_51 {dimension_numbers = #tpu.dot_dimension_numbers<[1], [0], [0], [1], [0, 0, 1, 1], [], []>} : vector<24x8xbf16>, vector<8x32xbf16>, vector<24x32xf32> -> vector<24x32xf32>
    %148 = arith.addf %119, %147 : vector<24x32xf32>
    %c0_52 = arith.constant 0 : index
    %c0_53 = arith.constant 0 : index
    %149 = vector.load %arg7[%c0_52, %c0_53] : memref<1x32xf32, #tpu.memory_space<vmem>>, vector<1x32xf32>
    %150 = vector.broadcast %149 : vector<1x32xf32> to vector<24x32xf32>
    %151 = arith.addf %148, %150 : vector<24x32xf32>
    %152 = arith.addf %151, %2 : vector<24x32xf32>
    %c0_54 = arith.constant 0 : index
    %c0_55 = arith.constant 0 : index
    %153 = vector.load %arg8[%c0_54, %c0_55] : memref<1x32xf32, #tpu.memory_space<vmem>>, vector<1x32xf32>
    %c0_56 = arith.constant 0 : index
    %c0_57 = arith.constant 0 : index
    %154 = vector.load %arg9[%c0_56, %c0_57] : memref<1x32xf32, #tpu.memory_space<vmem>>, vector<1x32xf32>
    %cst_58 = arith.constant dense<0.000000e+00> : vector<24xf32>
    %155 = vector.multi_reduction <add>, %152, %cst_58 [1] : vector<24x32xf32> to vector<24xf32>
    %156 = vector.shape_cast %155 : vector<24xf32> to vector<24x1xf32>
    %cst_59 = arith.constant 3.200000e+01 : f32
    %157 = vector.broadcast %cst_59 : f32 to vector<24x1xf32>
    %158 = arith.divf %156, %157 : vector<24x1xf32>
    %159 = vector.broadcast %158 : vector<24x1xf32> to vector<24x32xf32>
    %160 = arith.subf %152, %159 : vector<24x32xf32>
    %161 = arith.mulf %160, %160 : vector<24x32xf32>
    %cst_60 = arith.constant dense<0.000000e+00> : vector<24xf32>
    %162 = vector.multi_reduction <add>, %161, %cst_60 [1] : vector<24x32xf32> to vector<24xf32>
    %163 = vector.shape_cast %162 : vector<24xf32> to vector<24x1xf32>
    %cst_61 = arith.constant 3.200000e+01 : f32
    %164 = vector.broadcast %cst_61 : f32 to vector<24x1xf32>
    %165 = arith.divf %163, %164 : vector<24x1xf32>
    %cst_62 = arith.constant 9.99999996E-13 : f32
    %166 = vector.broadcast %cst_62 : f32 to vector<24x1xf32>
    %167 = arith.addf %165, %166 : vector<24x1xf32>
    %168 = math.rsqrt %167 : vector<24x1xf32>
    %169 = vector.broadcast %168 : vector<24x1xf32> to vector<24x32xf32>
    %170 = arith.mulf %160, %169 : vector<24x32xf32>
    %171 = vector.broadcast %153 : vector<1x32xf32> to vector<24x32xf32>
    %172 = arith.mulf %170, %171 : vector<24x32xf32>
    %173 = vector.broadcast %154 : vector<1x32xf32> to vector<24x32xf32>
    %174 = arith.addf %172, %173 : vector<24x32xf32>
    %175 = arith.truncf %174 : vector<24x32xf32> to vector<24x32xbf16>
    %c0_63 = arith.constant 0 : index
    %c0_64 = arith.constant 0 : index
    %176 = vector.load %arg10[%c0_63, %c0_64] : memref<32x128xbf16, #tpu.memory_space<vmem>>, vector<32x128xbf16>
    %cst_65 = arith.constant dense<0.000000e+00> : vector<24x128xf32>
    %177 = tpu.matmul %175, %176, %cst_65 {dimension_numbers = #tpu.dot_dimension_numbers<[1], [0], [0], [1], [0, 0, 1, 1], [], []>} : vector<24x32xbf16>, vector<32x128xbf16>, vector<24x128xf32> -> vector<24x128xf32>
    %c0_66 = arith.constant 0 : index
    %c0_67 = arith.constant 0 : index
    %178 = vector.load %arg11[%c0_66, %c0_67] : memref<1x128xf32, #tpu.memory_space<vmem>>, vector<1x128xf32>
    %179 = vector.broadcast %178 : vector<1x128xf32> to vector<24x128xf32>
    %180 = arith.addf %177, %179 : vector<24x128xf32>
    %cst_68 = arith.constant 5.000000e-01 : f32
    %181 = vector.broadcast %cst_68 : f32 to vector<24x128xf32>
    %182 = arith.mulf %181, %180 : vector<24x128xf32>
    %cst_69 = arith.constant 0.707106769 : f32
    %183 = vector.broadcast %cst_69 : f32 to vector<24x128xf32>
    %184 = arith.mulf %180, %183 : vector<24x128xf32>
    %185 = math.erf %184 : vector<24x128xf32>
    %cst_70 = arith.constant 1.000000e+00 : f32
    %186 = vector.broadcast %cst_70 : f32 to vector<24x128xf32>
    %187 = arith.addf %186, %185 : vector<24x128xf32>
    %188 = arith.mulf %182, %187 : vector<24x128xf32>
    %189 = arith.truncf %188 : vector<24x128xf32> to vector<24x128xbf16>
    %c0_71 = arith.constant 0 : index
    %c0_72 = arith.constant 0 : index
    %190 = vector.load %arg12[%c0_71, %c0_72] : memref<128x32xbf16, #tpu.memory_space<vmem>>, vector<128x32xbf16>
    %cst_73 = arith.constant dense<0.000000e+00> : vector<24x32xf32>
    %191 = tpu.matmul %189, %190, %cst_73 {dimension_numbers = #tpu.dot_dimension_numbers<[1], [0], [0], [1], [0, 0, 1, 1], [], []>} : vector<24x128xbf16>, vector<128x32xbf16>, vector<24x32xf32> -> vector<24x32xf32>
    %c0_74 = arith.constant 0 : index
    %c0_75 = arith.constant 0 : index
    %192 = vector.load %arg13[%c0_74, %c0_75] : memref<1x32xf32, #tpu.memory_space<vmem>>, vector<1x32xf32>
    %193 = vector.broadcast %192 : vector<1x32xf32> to vector<24x32xf32>
    %194 = arith.addf %191, %193 : vector<24x32xf32>
    %195 = arith.addf %194, %152 : vector<24x32xf32>
    %196 = arith.truncf %195 : vector<24x32xf32> to vector<24x32xbf16>
    %c0_76 = arith.constant 0 : index
    %c0_77 = arith.constant 0 : index
    %c0_78 = arith.constant 0 : index
    %197 = vector.load %arg14[%c0_76, %c0_77, %c0_78] : memref<1x24x32xbf16, #tpu.memory_space<vmem>>, vector<1x24x32xbf16>
    %198 = vector.shape_cast %197 : vector<1x24x32xbf16> to vector<24x32xbf16>
    %199 = vector.shape_cast %196 : vector<24x32xbf16> to vector<1x24x32xbf16>
    tpu.vector_store %arg14[%c0_76, %c0_77, %c0_78], %199 {strides = array<i32>} : memref<1x24x32xbf16, #tpu.memory_space<vmem>>, vector<1x24x32xbf16>,
    return
  }
  func.func @transform_0(%arg0: i32) -> (i32, i32, i32) {
    %c0_i32 = arith.constant 0 : i32
    %c0_i32_0 = arith.constant 0 : i32
    %c0_i32_1 = arith.constant 0 : i32
    return %arg0, %c0_i32, %c0_i32_0 : i32, i32, i32
  }
  func.func @transform_1(%arg0: i32) -> (i32, i32) {
    %c0_i32 = arith.constant 0 : i32
    %c0_i32_0 = arith.constant 0 : i32
    %c0_i32_1 = arith.constant 0 : i32
    return %c0_i32, %c0_i32_0 : i32, i32
  }
  func.func @transform_2(%arg0: i32) -> (i32, i32) {
    %c0_i32 = arith.constant 0 : i32
    %c0_i32_0 = arith.constant 0 : i32
    %c0_i32_1 = arith.constant 0 : i32
    return %c0_i32, %c0_i32_0 : i32, i32
  }
  func.func @transform_3(%arg0: i32) -> (i32, i32) {
    %c0_i32 = arith.constant 0 : i32
    %c0_i32_0 = arith.constant 0 : i32
    %c0_i32_1 = arith.constant 0 : i32
    return %c0_i32, %c0_i32_0 : i32, i32
  }
  func.func @transform_4(%arg0: i32) -> (i32, i32) {
    %c0_i32 = arith.constant 0 : i32
    %c0_i32_0 = arith.constant 0 : i32
    %c0_i32_1 = arith.constant 0 : i32
    return %c0_i32, %c0_i32_0 : i32, i32
  }
  func.func @transform_5(%arg0: i32) -> (i32, i32) {
    %c0_i32 = arith.constant 0 : i32
    %c0_i32_0 = arith.constant 0 : i32
    %c0_i32_1 = arith.constant 0 : i32
    return %c0_i32, %c0_i32_0 : i32, i32
  }
  func.func @transform_6(%arg0: i32) -> (i32, i32) {
    %c0_i32 = arith.constant 0 : i32
    %c0_i32_0 = arith.constant 0 : i32
    %c0_i32_1 = arith.constant 0 : i32
    return %c0_i32, %c0_i32_0 : i32, i32
  }
  func.func @transform_7(%arg0: i32) -> (i32, i32) {
    %c0_i32 = arith.constant 0 : i32
    %c0_i32_0 = arith.constant 0 : i32
    %c0_i32_1 = arith.constant 0 : i32
    return %c0_i32, %c0_i32_0 : i32, i32
  }
  func.func @transform_8(%arg0: i32) -> (i32, i32) {
    %c0_i32 = arith.constant 0 : i32
    %c0_i32_0 = arith.constant 0 : i32
    %c0_i32_1 = arith.constant 0 : i32
    return %c0_i32, %c0_i32_0 : i32, i32
  }
  func.func @transform_9(%arg0: i32) -> (i32, i32) {
    %c0_i32 = arith.constant 0 : i32
    %c0_i32_0 = arith.constant 0 : i32
    %c0_i32_1 = arith.constant 0 : i32
    return %c0_i32, %c0_i32_0 : i32, i32
  }
  func.func @transform_10(%arg0: i32) -> (i32, i32) {
    %c0_i32 = arith.constant 0 : i32
    %c0_i32_0 = arith.constant 0 : i32
    %c0_i32_1 = arith.constant 0 : i32
    return %c0_i32, %c0_i32_0 : i32, i32
  }
  func.func @transform_11(%arg0: i32) -> (i32, i32) {
    %c0_i32 = arith.constant 0 : i32
    %c0_i32_0 = arith.constant 0 : i32
    %c0_i32_1 = arith.constant 0 : i32
    return %c0_i32, %c0_i32_0 : i32, i32
  }
  func.func @transform_12(%arg0: i32) -> (i32, i32) {
    %c0_i32 = arith.constant 0 : i32
    %c0_i32_0 = arith.constant 0 : i32
    %c0_i32_1 = arith.constant 0 : i32
    return %c0_i32, %c0_i32_0 : i32, i32
  }
  func.func @transform_13(%arg0: i32) -> (i32, i32, i32) {
    %c0_i32 = arith.constant 0 : i32
    %c0_i32_0 = arith.constant 0 : i32
    %c0_i32_1 = arith.constant 0 : i32
    return %arg0, %c0_i32, %c0_i32_0 : i32, i32, i32
  }
}

</mosaic_0001>

<llo_original>
// kernel: vit_forward.7
$region0: #{vit_forward.7}
  #allocation0 [shape = 'u32[]', space=smem, size = 0x4, offset = 0x4, fixed_abs, tag = 'smem constant byte address 0x4 - core index']
  #allocation1 [shape = 'u32[144,128]{1,0:T(1,128)}', space=vmem, size = 0x12000, scoped, tag = 'internal scratch']
  %s0 = inlined_call_operand.vmem [shape: bf16[2,32], index: 0, kind: input, shape index: {}]
  %s1 = inlined_call_operand.vmem [shape: f32[1,32], index: 1, kind: input, shape index: {}]
  %s2 = inlined_call_operand.vmem [shape: f32[1,32], index: 2, kind: input, shape index: {}]
  %s3 = inlined_call_operand.vmem [shape: bf16[32,384], index: 3, kind: input, shape index: {}]
  %s4 = inlined_call_operand.vmem [shape: f32[1,384], index: 4, kind: input, shape index: {}]
  %s5 = inlined_call_operand.hbm [shape: f32[2,384], index: 5, kind: output, shape index: {}]
  %s6 = sld [smem:[#allocation0]]
  $region30: #{vit_forward.7} parent=0
    _
  %s8 = ssub.s32 1, %s6
  %s9 = scalar_select 0, %s8, %s6
  $region1: #{vit_forward.7} parent=0
    #allocation2 [shape = 'u8[3072]{0}', space=vmem, size = 0xc00, scoped, tag = 'output window, operand 0, single buffered']
    #allocation3 [shape = 's32[1]{0}', space=sflag, size = 0x4, scoped, tag = 'scoped memory for vit_forward.7']
    %10 = vsyncpa [#allocation3], 0
    // Predicated region
    $region2: #{vit_forward.7} parent=1 // pred_check
      _
    $region3: #{vit_forward.7} parent=1 // pred_check_branch
      %12 = sbr.rel (0) target = $region5
    $region4: #{vit_forward.7} parent=1 // pred_region
      _
    $region5: #{vit_forward.7} parent=1 // pred_fallthru
      _
    // Predicated region
    $region6: #{vit_forward.7} parent=1 // pred_check
      _
    $region7: #{vit_forward.7} parent=1 // pred_check_branch
      %14 = sbr.rel (0) target = $region9
    $region8: #{vit_forward.7} parent=1 // pred_region
      _
    $region9: #{vit_forward.7} parent=1 // pred_fallthru
      _
    // Predicated region
    $region10: #{vit_forward.7} parent=1 // pred_check
      _
    $region11: #{vit_forward.7} parent=1 // pred_check_branch
      %16 = sbr.rel (0) target = $region13
    $region12: #{vit_forward.7} parent=1 // pred_region
      _
    $region13: #{vit_forward.7} parent=1 // pred_fallthru
      _
    // Predicated region
    $region14: #{vit_forward.7} parent=1 // pred_check
      _
    $region15: #{vit_forward.7} parent=1 // pred_check_branch
      %18 = sbr.rel (0) target = $region17
    $region16: #{vit_forward.7} parent=1 // pred_region
      _
    $region17: #{vit_forward.7} parent=1 // pred_fallthru
      _
    // Predicated region
    $region18: #{vit_forward.7} parent=1 // pred_check
      _
    $region19: #{vit_forward.7} parent=1 // pred_check_branch
      %20 = sbr.rel (0) target = $region21
    $region20: #{vit_forward.7} parent=1 // pred_region
      _
    $region21: #{vit_forward.7} parent=1 // pred_fallthru
      _
    %v22 = vld [vmem:[%s0] sm:$0x1]
    %v23 = vunpack.c.l.bf16 %v22
    %v24 = vld [vmem:[%s1] sm:$0x1]
    %v25 = vld [vmem:[%s2] sm:$0x1]
    %vm26 = vcmask 254976
    %v27 = vsel %vm26, %v23, 0.0
    %28 = vadd.xlane.f32.xlu0 %v27
    %v29 = vpop.xlane.xlu0 %28
    %v30 = vrcp.pop 32.0
    %v31 = vmul.f32 %v29, %v30
    %v32 = vsub.f32 %v23, %v31
    %v33 = vmul.f32 %v32, %v32
    %v34 = vsel %vm26, %v33, 0.0
    %35 = vadd.xlane.f32.xlu0 %v34
    %v36 = vpop.xlane.xlu0 %35
    %v37 = vmul.f32 %v36, %v30
    %v38 = vadd.f32 %v37, 1e-12
    %v39 = vrsqrt.pop %v38
    %v40 = vmul.f32 %v32, %v39
    %v42 = vlaneseq
    %v43 = vshrl.u32 %v42, 7
    %v44 = vsub.s32 0, %v43
    %v45 = vrot.slane %v24, %v44
    %v47 = vmul.f32 %v40, %v45
    %v49 = vlaneseq
    %v50 = vshrl.u32 %v49, 7
    %v51 = vsub.s32 0, %v50
    %v52 = vrot.slane %v25, %v51
    %v54 = vadd.f32 %v47, %v52
    %v55 = vpack.c.bf16 %v54, %v54
    %v56 = vld [vmem:[%s3] sm:$0xff]
    %v57 = vld [vmem:[%s3 + $0x8] sm:$0xf]
    %v58 = vld [vmem:[%s3 + $0xc] sm:$0xff]
    %v59 = vld [vmem:[%s3 + $0x14] sm:$0xf]
    %v60 = vld [vmem:[%s3 + $0x18] sm:$0xff]
    %v61 = vld [vmem:[%s3 + $0x20] sm:$0xf]
    %v62 = vld [vmem:[%s3 + $0x24] sm:$0xff]
    %v63 = vld [vmem:[%s3 + $0x2c] sm:$0xf]
    %v64 = vld [vmem:[%s4] sm:$0x7]
    %v66 = vlaneseq
    %v67 = vshrl.u32 %v66, 7
    %v68 = vsub.s32 0, %v67
    %v69 = vrot.slane %v64, %v68
    %v70 = vlaneseq
    %v71 = vshrl.u32 %v70, 7
    %v72 = vsub.s32 1, %v71
    %v73 = vrot.slane %v64, %v72
    %v74 = vlaneseq
    %v75 = vshrl.u32 %v74, 7
    %v76 = vsub.s32 2, %v75
    %v77 = vrot.slane %v64, %v76
    %v89 = vunpack.c.l.b16 %v56
    %v90 = vunpack.c.h.b16 %v56
    %v91 = vunpack.c.l.b16 %v57
    %v92 = vunpack.c.l.b16 %v58
    %v93 = vunpack.c.h.b16 %v58
    %v94 = vunpack.c.l.b16 %v59
    %v95 = vunpack.c.l.b16 %v60
    %v96 = vunpack.c.h.b16 %v60
    %v97 = vunpack.c.l.b16 %v61
    %v98 = vunpack.c.l.b16 %v62
    %v99 = vunpack.c.h.b16 %v62
    %v100 = vunpack.c.l.b16 %v63
    %v101 = vpack.c.b16 %v92, %v89
    %v102 = vpack.c.b16 %v93, %v90
    %v103 = vpack.c.b16 %v94, %v91
    %v104 = vpack.c.b16 %v98, %v95
    %v105 = vpack.c.b16 %v99, %v96
    %v106 = vpack.c.b16 %v100, %v97
    %vm113 = vcmask 261120
    %v115 = vsel %vm113, %v55, 0
    %117 = vmatprep.subr.bf16.mxu0 %v102
    %118 = vmatpush1.bf16.msra.mxu0 %v101
    %119 = vmatprep.subr.bf16.mxu0 %v105
    %120 = vmatpush1.bf16.msra.mxu0 %v104
    %121 = vmatprep.subr.bf16.mxu0 0
    %122 = vmatpush1.bf16.msra.mxu0 0
    %123 = vmatprep.subr.bf16.mxu0 0
    %124 = vmatpush1.bf16.msra.mxu0 0
    %125 = vmatprep.subr.bf16.mxu0 0
    %126 = vmatpush1.bf16.msra.mxu0 0
    %127 = vmatprep.subr.bf16.mxu0 0
    %128 = vmatpush1.bf16.msra.mxu0 0
    %129 = vmatprep.subr.bf16.mxu0 0
    %130 = vmatpush1.bf16.msra.mxu0 0
    %131 = vmatprep.subr.bf16.mxu0 0
    %132 = vmatpush1.bf16.msra.mxu0 0
    %133 = vmatprep.subr.bf16.mxu0 0
    %134 = vmatpush1.bf16.msra.mxu0 0
    %135 = vmatprep.subr.bf16.mxu0 0
    %136 = vmatpush1.bf16.msra.mxu0 0
    %137 = vmatprep.subr.bf16.mxu0 0
    %138 = vmatpush1.bf16.msra.mxu0 0
    %139 = vmatprep.subr.bf16.mxu0 0
    %140 = vmatpush1.bf16.msra.mxu0 0
    %141 = vmatprep.subr.bf16.mxu0 0
    %142 = vmatpush1.bf16.msra.mxu0 0
    %143 = vmatprep.subr.bf16.mxu0 0
    %144 = vmatpush1.bf16.msra.mxu0 0
    %145 = vmatprep.subr.bf16.mxu0 0
    %146 = vmatpush1.bf16.msra.mxu0 0
    %147 = vmatprep.subr.bf16.mxu0 0
    %148 = vmatpush1.bf16.msra.mxu0 0
    %149 = vmatprep.mubr.bf16.mxu0 0
    %150 = vmatmul.mubr.bf16.gmra.mrb[0].mxu0 %v115
    %v151 = vpop.f32.mrb[0].mxu0
    %v152 = vadd.f32 %v69, %v151
    %v153 = vpop.f32.mrb[0].mxu0
    %v154 = vadd.f32 %v73, %v153
    %v155 = vpop.f32.mrb[0].mxu0
    %v156 = vpop.f32.mrb[0].mxu0
    %157 = vdwg.mxu0
    %158 = vmatprep.subr.bf16.mxu0 0
    %159 = vmatpush1.bf16.msra.mxu0 %v103
    %160 = vmatprep.subr.bf16.mxu0 0
    %161 = vmatpush1.bf16.msra.mxu0 %v106
    %162 = vmatprep.subr.bf16.mxu0 0
    %163 = vmatpush1.bf16.msra.mxu0 0
    %164 = vmatprep.subr.bf16.mxu0 0
    %165 = vmatpush1.bf16.msra.mxu0 0
    %166 = vmatprep.subr.bf16.mxu0 0
    %167 = vmatpush1.bf16.msra.mxu0 0
    %168 = vmatprep.subr.bf16.mxu0 0
    %169 = vmatpush1.bf16.msra.mxu0 0
    %170 = vmatprep.subr.bf16.mxu0 0
    %171 = vmatpush1.bf16.msra.mxu0 0
    %172 = vmatprep.subr.bf16.mxu0 0
    %173 = vmatpush1.bf16.msra.mxu0 0
    %174 = vmatprep.subr.bf16.mxu0 0
    %175 = vmatpush1.bf16.msra.mxu0 0
    %176 = vmatprep.subr.bf16.mxu0 0
    %177 = vmatpush1.bf16.msra.mxu0 0
    %178 = vmatprep.subr.bf16.mxu0 0
    %179 = vmatpush1.bf16.msra.mxu0 0
    %180 = vmatprep.subr.bf16.mxu0 0
    %181 = vmatpush1.bf16.msra.mxu0 0
    %182 = vmatprep.subr.bf16.mxu0 0
    %183 = vmatpush1.bf16.msra.mxu0 0
    %184 = vmatprep.subr.bf16.mxu0 0
    %185 = vmatpush1.bf16.msra.mxu0 0
    %186 = vmatprep.subr.bf16.mxu0 0
    %187 = vmatpush1.bf16.msra.mxu0 0
    %188 = vmatprep.subr.bf16.mxu0 0
    %189 = vmatpush1.bf16.msra.mxu0 0
    %190 = vmatprep.mubr.bf16.mxu0 0
    %191 = vmatmul.mubr.bf16.gmra.mrb[0].mxu0 %v115
    %v192 = vpop.f32.mrb[0].mxu0
    %v193 = vadd.f32 %v77, %v192
    %v194 = vpop.f32.mrb[0].mxu0
    %v195 = vpop.f32.mrb[0].mxu0
    %v196 = vpop.f32.mrb[0].mxu0
    %197 = vdwg.mxu0
    %v201 = vcombine.low %v152, %v154
    %v203 = vunpack.c.l.s4 1983009808
    %v204 = vunpack.c.0.s8 %v203
    %v205 = vlaneseq
    %v206 = vshrl.u32 %v205, 7
    %v207 = vsub.s32 %v204, %v206
    %v208 = vrot.slane %v201, %v207
    %v210 = vunpack.c.l.s4 1983009808
    %v211 = vunpack.c.0.s8 %v210
    %v212 = vlaneseq
    %v213 = vshrl.u32 %v212, 7
    %v214 = vsub.s32 %v211, %v213
    %v215 = vrot.slane %v193, %v214
    %v216 = vcombine.low %v208, %v215
    %218 = vst [vmem:[#allocation2] sm:$0x3f] %v216
    // Predicated region
    $region22: #{vit_forward.7} parent=1 // pred_check
      _
    $region23: #{vit_forward.7} parent=1 // pred_check_branch
      %220 = sbr.rel (0) target = $region25
    $region24: #{vit_forward.7} parent=1 // pred_region
      %s222 = ssub.s32 96, 96
      %223 = vsyncadd [#allocation3], %s222
      %s225 = sshll.u32 [#allocation2], 4
      %s226 = int_to_ptr.vmem [resolvable:$true] %s225
      %228 = dma.vmem_to_hbm [thread:$0]  %s226, 96, %s5, [#allocation3]
    $region25: #{vit_forward.7} parent=1 // pred_fallthru
      _
    // Predicated region
    $region26: #{vit_forward.7} parent=1 // pred_check
      _
    $region27: #{vit_forward.7} parent=1 // pred_check_branch
      %230 = sbr.rel (0) target = $region29
    $region28: #{vit_forward.7} parent=1 // pred_region
      %231 = dma.done [#allocation3], 96
    $region29: #{vit_forward.7} parent=1 // pred_fallthru
      _
    %232 = vsyncpa [#allocation3], 1

// kernel: vit_forward.4
$region0: #{vit_forward.4}
  #allocation0 [shape = 'u32[]', space=smem, size = 0x4, offset = 0x4, fixed_abs, tag = 'smem constant byte address 0x4 - core index']
  #allocation1 [shape = 'u32[144,128]{1,0:T(1,128)}', space=vmem, size = 0x12000, scoped, tag = 'internal scratch']
  %s0 = inlined_call_operand.vmem [shape: bf16[2,16,192], index: 0, kind: input, shape index: {}]
  %s1 = inlined_call_operand.vmem [shape: bf16[192,32], index: 1, kind: input, shape index: {}]
  %s2 = inlined_call_operand.vmem [shape: f32[1,32], index: 2, kind: input, shape index: {}]
  %s3 = inlined_call_operand.vmem [shape: f32[1,32], index: 3, kind: input, shape index: {}]
  %s4 = inlined_call_operand.vmem [shape: f32[16,32], index: 4, kind: input, shape index: {}]
  %s5 = inlined_call_operand.vmem [shape: bf16[2,24,32], index: 5, kind: output, shape index: {}]
  %s6 = sld [smem:[#allocation0]]
  $region53: #{vit_forward.4} parent=0
    _
  %s8 = ssub.s32 1, %s6
  %s9 = scalar_select 0, %s8, %s6
  loop: start=0, step=1, limit=4
  $region2: #{vit_forward.4} parent=0 // loop_pre_header
    _
  $region3: #{vit_forward.4} parent=0 // loop_header
    %s11 = sphi 0, %s15
    %p12 = scmp.ge.s32.totalorder %s11, 4
    %s21 = sphi 0, %s23
    %s24 = sphi 0, %s21
    %s25 = sphi 0, %s24
    %s41 = sphi 0, %s25
    %s45 = sphi 0, %s45
    %s47 = sphi 0, %s45
    %s48 = sphi 0, %s47
    %s62 = sphi 0, %s48
    %s66 = sphi 0, %s66
    %s68 = sphi 0, %s66
    %s69 = sphi 0, %s68
    %s83 = sphi 0, %s69
    %s87 = sphi 0, %s87
    %s89 = sphi 0, %s87
    %s90 = sphi 0, %s89
    %s104 = sphi 0, %s90
    %s108 = sphi 0, %s108
    %s110 = sphi 0, %s108
    %s111 = sphi 0, %s110
    %s125 = sphi 0, %s111
    %s131 = sphi 0, %s133
    %s134 = sphi 0, %s131
    %s135 = sphi 0, %s134
    %s151 = sphi 0, %s135
  $region4: #{vit_forward.4} parent=0 // loop_header_branch
    %14 = sbr.rel (%p12) target = $region8
  $region5: #{vit_forward.4} parent=0 // loop_body
    %s16 = ssub.s32 %s11, 1
    %s17 = ssub.s32 %s11, 2
    %s18 = sadd.s32 %s11, 1
    %s19 = ssub.s32 %s11, %s18
    %p20 = scmp.eq.s32.totalorder %s19, 0
    %s22 = sadd.s32 %s21, 1
    %s23 = scalar_select %p20, %s21, %s22
    %p26 = pneg %p20
    %p27 = scmp.eq.s32.totalorder %s11, 1
    %p28 = por %p26, %p27
    %p29 = scmp.ne.s32.totalorder %s21, %s24
    %p30 = scmp.eq.s32.totalorder %s11, 0
    %p31 = por %p29, %p30
    %p32 = scmp.ne.s32.totalorder %s21, %s24
    %p33 = scmp.eq.s32.totalorder %s16, 1
    %p34 = por %p32, %p33
    %p35 = scmp.ne.s32.totalorder %s24, %s25
    %p36 = scmp.eq.s32.totalorder %s16, 0
    %p37 = por %p35, %p36
    %p38 = scmp.ne.s32.totalorder %s24, %s25
    %p39 = scmp.eq.s32.totalorder %s17, 1
    %p40 = por %p38, %p39
    %p42 = scmp.ne.s32.totalorder %s25, %s41
    %p43 = scmp.eq.s32.totalorder %s17, 0
    %p44 = por %p42, %p43
    %s46 = sadd.s32 %s45, 1
    %p49 = scmp.eq.s32.totalorder %s11, 1
    %p50 = scmp.ne.s32.totalorder %s45, %s47
    %p51 = scmp.eq.s32.totalorder %s11, 0
    %p52 = por %p50, %p51
    %p53 = scmp.ne.s32.totalorder %s45, %s47
    %p54 = scmp.eq.s32.totalorder %s16, 1
    %p55 = por %p53, %p54
    %p56 = scmp.ne.s32.totalorder %s47, %s48
    %p57 = scmp.eq.s32.totalorder %s16, 0
    %p58 = por %p56, %p57
    %p59 = scmp.ne.s32.totalorder %s47, %s48
    %p60 = scmp.eq.s32.totalorder %s17, 1
    %p61 = por %p59, %p60
    %p63 = scmp.ne.s32.totalorder %s48, %s62
    %p64 = scmp.eq.s32.totalorder %s17, 0
    %p65 = por %p63, %p64
    %s67 = sadd.s32 %s66, 1
    %p70 = scmp.eq.s32.totalorder %s11, 1
    %p71 = scmp.ne.s32.totalorder %s66, %s68
    %p72 = scmp.eq.s32.totalorder %s11, 0
    %p73 = por %p71, %p72
    %p74 = scmp.ne.s32.totalorder %s66, %s68
    %p75 = scmp.eq.s32.totalorder %s16, 1
    %p76 = por %p74, %p75
    %p77 = scmp.ne.s32.totalorder %s68, %s69
    %p78 = scmp.eq.s32.totalorder %s16, 0
    %p79 = por %p77, %p78
    %p80 = scmp.ne.s32.totalorder %s68, %s69
    %p81 = scmp.eq.s32.totalorder %s17, 1
    %p82 = por %p80, %p81
    %p84 = scmp.ne.s32.totalorder %s69, %s83
    %p85 = scmp.eq.s32.totalorder %s17, 0
    %p86 = por %p84, %p85
    %s88 = sadd.s32 %s87, 1
    %p91 = scmp.eq.s32.totalorder %s11, 1
    %p92 = scmp.ne.s32.totalorder %s87, %s89
    %p93 = scmp.eq.s32.totalorder %s11, 0
    %p94 = por %p92, %p93
    %p95 = scmp.ne.s32.totalorder %s87, %s89
    %p96 = scmp.eq.s32.totalorder %s16, 1
    %p97 = por %p95, %p96
    %p98 = scmp.ne.s32.totalorder %s89, %s90
    %p99 = scmp.eq.s32.totalorder %s16, 0
    %p100 = por %p98, %p99
    %p101 = scmp.ne.s32.totalorder %s89, %s90
    %p102 = scmp.eq.s32.totalorder %s17, 1
    %p103 = por %p101, %p102
    %p105 = scmp.ne.s32.totalorder %s90, %s104
    %p106 = scmp.eq.s32.totalorder %s17, 0
    %p107 = por %p105, %p106
    %s109 = sadd.s32 %s108, 1
    %p112 = scmp.eq.s32.totalorder %s11, 1
    %p113 = scmp.ne.s32.totalorder %s108, %s110
    %p114 = scmp.eq.s32.totalorder %s11, 0
    %p115 = por %p113, %p114
    %p116 = scmp.ne.s32.totalorder %s108, %s110
    %p117 = scmp.eq.s32.totalorder %s16, 1
    %p118 = por %p116, %p117
    %p119 = scmp.ne.s32.totalorder %s110, %s111
    %p120 = scmp.eq.s32.totalorder %s16, 0
    %p121 = por %p119, %p120
    %p122 = scmp.ne.s32.totalorder %s110, %s111
    %p123 = scmp.eq.s32.totalorder %s17, 1
    %p124 = por %p122, %p123
    %p126 = scmp.ne.s32.totalorder %s111, %s125
    %p127 = scmp.eq.s32.totalorder %s17, 0
    %p128 = por %p126, %p127
    %s129 = ssub.s32 %s11, %s18
    %p130 = scmp.eq.s32.totalorder %s129, 0
    %s132 = sadd.s32 %s131, 1
    %s133 = scalar_select %p130, %s131, %s132
    %p136 = pneg %p130
    %p137 = scmp.eq.s32.totalorder %s11, 1
    %p138 = por %p136, %p137
    %p139 = scmp.ne.s32.totalorder %s131, %s134
    %p140 = scmp.eq.s32.totalorder %s11, 0
    %p141 = por %p139, %p140
    %p142 = scmp.ne.s32.totalorder %s131, %s134
    %p143 = scmp.eq.s32.totalorder %s16, 1
    %p144 = por %p142, %p143
    %p145 = scmp.ne.s32.totalorder %s134, %s135
    %p146 = scmp.eq.s32.totalorder %s16, 0
    %p147 = por %p145, %p146
    %p148 = scmp.ne.s32.totalorder %s134, %s135
    %p149 = scmp.eq.s32.totalorder %s17, 1
    %p150 = por %p148, %p149
    %p152 = scmp.ne.s32.totalorder %s135, %s151
    %p153 = scmp.eq.s32.totalorder %s17, 0
    %p154 = por %p152, %p153
    %p155 = scmp.le.s32.totalorder 1, %s11
    %p156 = scmp.lt.s32.totalorder %s11, 3
    %p157 = pnand %p155, %p156
    %p158 = pneg %p157
    // Predicated region
    $region9: #{vit_forward.4} parent=5 // pred_check
      _
    $region10: #{vit_forward.4} parent=5 // pred_check_branch
      %160 = sbr.rel (%p157) target = $region12
    $region11: #{vit_forward.4} parent=5 // pred_region
      %s161 = ssub.s32 %s11, 1
      // Predicated region
      $region13: #{vit_forward.4} parent=11 // pred_check
        %p162 = pneg %p58
      $region14: #{vit_forward.4} parent=11 // pred_check_branch
        %164 = sbr.rel (%p162) target = $region16
      $region15: #{vit_forward.4} parent=11 // pred_region
        _
      $region16: #{vit_forward.4} parent=11 // pred_fallthru
        _
      // Predicated region
      $region17: #{vit_forward.4} parent=11 // pred_check
        %p165 = pneg %p79
      $region18: #{vit_forward.4} parent=11 // pred_check_branch
        %167 = sbr.rel (%p165) target = $region20
      $region19: #{vit_forward.4} parent=11 // pred_region
        _
      $region20: #{vit_forward.4} parent=11 // pred_fallthru
        _
      // Predicated region
      $region21: #{vit_forward.4} parent=11 // pred_check
        %p168 = pneg %p100
      $region22: #{vit_forward.4} parent=11 // pred_check_branch
        %170 = sbr.rel (%p168) target = $region24
      $region23: #{vit_forward.4} parent=11 // pred_region
        _
      $region24: #{vit_forward.4} parent=11 // pred_fallthru
        _
      // Predicated region
      $region25: #{vit_forward.4} parent=11 // pred_check
        %p171 = pneg %p121
      $region26: #{vit_forward.4} parent=11 // pred_check_branch
        %173 = sbr.rel (%p171) target = $region28
      $region27: #{vit_forward.4} parent=11 // pred_region
        _
      $region28: #{vit_forward.4} parent=11 // pred_fallthru
        _
    $region12: #{vit_forward.4} parent=5 // pred_fallthru
      _
    %p174 = scmp.lt.s32.totalorder %s11, 2
    // Predicated region
    $region29: #{vit_forward.4} parent=5 // pred_check
      %p175 = pneg %p174
    $region30: #{vit_forward.4} parent=5 // pred_check_branch
      %177 = sbr.rel (%p175) target = $region32
    $region31: #{vit_forward.4} parent=5 // pred_region
      // Predicated region
      $region33: #{vit_forward.4} parent=31 // pred_check
        %p178 = pneg %p31
      $region34: #{vit_forward.4} parent=31 // pred_check_branch
        %180 = sbr.rel (%p178) target = $region36
      $region35: #{vit_forward.4} parent=31 // pred_region
        %p181 = scmp.lt.s32.totalorder %s11, 1
        %s182 = scalar_select %p181, %s11, 1
        %s183 = smul.addr %s182, 4
        %s184 = smul.addr %s183, 4
        %s185 = scalar_lea.vmem %s0, %s184
      $region36: #{vit_forward.4} parent=31 // pred_fallthru
        _
    $region32: #{vit_forward.4} parent=5 // pred_fallthru
      _
    %p186 = scmp.le.s32.totalorder 1, %s11
    %p187 = scmp.lt.s32.totalorder %s11, 3
    %p188 = pnand %p186, %p187
    %p189 = pneg %p188
    // Predicated region
    $region37: #{vit_forward.4} parent=5 // pred_check
      _
    $region38: #{vit_forward.4} parent=5 // pred_check_branch
      %191 = sbr.rel (%p188) target = $region40
    $region39: #{vit_forward.4} parent=5 // pred_region
      %s192 = ssub.s32 %s11, 1
      %p193 = scmp.lt.s32.totalorder %s16, 1
      %s194 = scalar_select %p193, %s16, 1
      %s195 = smul.addr %s194, 4
      %s196 = smul.addr %s195, 4
      %s197 = scalar_lea.vmem %s0, %s196
      %p198 = pneg %p37
      %p199 = pneg %p34
      %p200 = pneg %p58
      %p201 = pneg %p55
      %p202 = pneg %p79
      %p203 = pneg %p76
      %p204 = pneg %p100
      %p205 = pneg %p97
      %p206 = pneg %p121
      %p207 = pneg %p118
      %p208 = pneg %p147
      %p209 = pneg %p144
      %p210 = scmp.lt.s32.totalorder %s16, 1
      %s211 = scalar_select %p210, %s16, 1
      %s212 = smul.addr %s211, 3
      %s213 = smul.addr %s212, 4
      %s214 = scalar_lea.vmem %s5, %s213
      %p215 = scmp.lt.s32.totalorder %s16, 1
      %s216 = scalar_select %p215, %s16, 1
      %s217 = smul.addr %s216, 4
      %s218 = smul.addr %s217, 4
      %s219 = scalar_lea.vmem %s0, %s218
      %p220 = scmp.lt.s32.totalorder %s16, 1
      %s221 = scalar_select %p220, %s16, 1
      %s222 = smul.addr %s221, 3
      %s223 = smul.addr %s222, 4
      %s224 = scalar_lea.vmem %s5, %s223
      %v226 = vld [vmem:[%s219] sm:$0xff]
      %v227 = vld [vmem:[%s219 + $0x8] sm:$0xff]
      %v228 = vld [vmem:[%s1] sm:$0xf]
      %v229 = vld [vmem:[%s1 + $0x4] sm:$0xf]
      %v230 = vld [vmem:[%s1 + $0x8] sm:$0xf]
      %v231 = vld [vmem:[%s1 + $0xc] sm:$0xf]
      %v232 = vld [vmem:[%s1 + $0x10] sm:$0xf]
      %v233 = vld [vmem:[%s1 + $0x14] sm:$0xf]
      %v234 = vld [vmem:[%s1 + $0x18] sm:$0xf]
      %v235 = vld [vmem:[%s1 + $0x1c] sm:$0xf]
      %v236 = vld [vmem:[%s1 + $0x20] sm:$0xf]
      %v237 = vld [vmem:[%s1 + $0x24] sm:$0xf]
      %v238 = vld [vmem:[%s1 + $0x28] sm:$0xf]
      %v239 = vld [vmem:[%s1 + $0x2c] sm:$0xf]
      %v240 = vld [vmem:[%s1 + $0x30] sm:$0xf]
      %v241 = vld [vmem:[%s1 + $0x34] sm:$0xf]
      %v242 = vld [vmem:[%s1 + $0x38] sm:$0xf]
      %v243 = vld [vmem:[%s1 + $0x3c] sm:$0xf]
      %v244 = vld [vmem:[%s1 + $0x40] sm:$0xf]
      %v245 = vld [vmem:[%s1 + $0x44] sm:$0xf]
      %v246 = vld [vmem:[%s1 + $0x48] sm:$0xf]
      %v247 = vld [vmem:[%s1 + $0x4c] sm:$0xf]
      %v248 = vld [vmem:[%s1 + $0x50] sm:$0xf]
      %v249 = vld [vmem:[%s1 + $0x54] sm:$0xf]
      %v250 = vld [vmem:[%s1 + $0x58] sm:$0xf]
      %v251 = vld [vmem:[%s1 + $0x5c] sm:$0xf]
      %v252 = vld [vmem:[%s2] sm:$0x1]
      %v254 = vlaneseq
      %v255 = vshrl.u32 %v254, 7
      %v256 = vsub.s32 0, %v255
      %v257 = vrot.slane %v252, %v256
      %v261 = vunpack.c.l.b16 %v226
      %v262 = vunpack.c.h.b16 %v226
      %v263 = vunpack.c.l.b16 %v227
      %v264 = vunpack.c.h.b16 %v227
      %v265 = vpack.c.b16 %v263, %v261
      %v266 = vpack.c.b16 %v264, %v262
      %v292 = vunpack.c.l.b16 %v228
      %v293 = vunpack.c.l.b16 %v229
      %v294 = vunpack.c.l.b16 %v230
      %v295 = vunpack.c.l.b16 %v231
      %v296 = vunpack.c.l.b16 %v232
      %v297 = vunpack.c.l.b16 %v233
      %v298 = vunpack.c.l.b16 %v234
      %v299 = vunpack.c.l.b16 %v235
      %v300 = vunpack.c.l.b16 %v236
      %v301 = vunpack.c.l.b16 %v237
      %v302 = vunpack.c.l.b16 %v238
      %v303 = vunpack.c.l.b16 %v239
      %v304 = vunpack.c.l.b16 %v240
      %v305 = vunpack.c.l.b16 %v241
      %v306 = vunpack.c.l.b16 %v242
      %v307 = vunpack.c.l.b16 %v243
      %v308 = vunpack.c.l.b16 %v244
      %v309 = vunpack.c.l.b16 %v245
      %v310 = vunpack.c.l.b16 %v246
      %v311 = vunpack.c.l.b16 %v247
      %v312 = vunpack.c.l.b16 %v248
      %v313 = vunpack.c.l.b16 %v249
      %v314 = vunpack.c.l.b16 %v250
      %v315 = vunpack.c.l.b16 %v251
      %v316 = vpack.c.b16 %v293, %v292
      %v317 = vpack.c.b16 %v295, %v294
      %v318 = vpack.c.b16 %v297, %v296
      %v319 = vpack.c.b16 %v299, %v298
      %v320 = vpack.c.b16 %v301, %v300
      %v321 = vpack.c.b16 %v303, %v302
      %v322 = vpack.c.b16 %v305, %v304
      %v323 = vpack.c.b16 %v307, %v306
      %v324 = vpack.c.b16 %v309, %v308
      %v325 = vpack.c.b16 %v311, %v310
      %v326 = vpack.c.b16 %v313, %v312
      %v327 = vpack.c.b16 %v315, %v314
      %vm340 = vcmask 523264
      %v342 = vsel %vm340, %v266, 0
      %344 = vmatprep.subr.bf16.mxu0 0
      %345 = vmatpush1.bf16.msra.mxu0 %v316
      %346 = vmatprep.subr.bf16.mxu0 0
      %347 = vmatpush1.bf16.msra.mxu0 %v317
      %348 = vmatprep.subr.bf16.mxu0 0
      %349 = vmatpush1.bf16.msra.mxu0 %v318
      %350 = vmatprep.subr.bf16.mxu0 0
      %351 = vmatpush1.bf16.msra.mxu0 %v319
      %352 = vmatprep.subr.bf16.mxu0 0
      %353 = vmatpush1.bf16.msra.mxu0 %v320
      %354 = vmatprep.subr.bf16.mxu0 0
      %355 = vmatpush1.bf16.msra.mxu0 %v321
      %356 = vmatprep.subr.bf16.mxu0 0
      %357 = vmatpush1.bf16.msra.mxu0 %v322
      %358 = vmatprep.subr.bf16.mxu0 0
      %359 = vmatpush1.bf16.msra.mxu0 %v323
      %360 = vmatprep.subr.bf16.mxu0 0
      %361 = vmatpush1.bf16.msra.mxu0 %v324
      %362 = vmatprep.subr.bf16.mxu0 0
      %363 = vmatpush1.bf16.msra.mxu0 %v325
      %364 = vmatprep.subr.bf16.mxu0 0
      %365 = vmatpush1.bf16.msra.mxu0 %v326
      %366 = vmatprep.subr.bf16.mxu0 0
      %367 = vmatpush1.bf16.msra.mxu0 %v327
      %368 = vmatprep.subr.bf16.mxu0 0
      %369 = vmatpush1.bf16.msra.mxu0 0
      %370 = vmatprep.subr.bf16.mxu0 0
      %371 = vmatpush1.bf16.msra.mxu0 0
      %372 = vmatprep.subr.bf16.mxu0 0
      %373 = vmatpush1.bf16.msra.mxu0 0
      %374 = vmatprep.subr.bf16.mxu0 0
      %375 = vmatpush1.bf16.msra.mxu0 0
      %376 = vmatprep.mubr.bf16.mxu0 %v342
      %377 = vmatmul.mubr.bf16.gmra.mrb[0].mxu0 %v265
      %v378 = vpop.f32.mrb[0].mxu0
      %v379 = vadd.f32 %v257, %v378
      %v380 = vpop.f32.mrb[0].mxu0
      %v381 = vpop.f32.mrb[0].mxu0
      %v382 = vadd.f32 %v257, %v381
      %v383 = vpop.f32.mrb[0].mxu0
      %384 = vdwg.mxu0
      %v385 = vld [vmem:[%s4] sm:$0xff]
      %v386 = vld [vmem:[%s4 + $0x8] sm:$0xff]
      %v387 = vadd.f32 %v379, %v385
      %v388 = vadd.f32 %v382, %v386
      %v389 = vld [vmem:[%s3] sm:$0x1]
      %vm392 = vcmask 1040384
      %v393 = vrot.slane %v387, 7
      %v394 = vrot.slane %v388, 7
      %v395 = vsel %vm392, %v393, %v394
      %v399 = vsel %vm392, %v389, %v393
      %v400 = vsel %vm392, %v394, 0.0
      %v401 = vpack.c.bf16 %v395, %v399
      %v402 = vpack.c.bf16 %v400, %v400
      %v405 = vunpack.c.l.b16 %v401
      %v406 = vunpack.c.h.b16 %v401
      %v407 = vunpack.c.l.b16 %v402
      %v408 = vpack.c.b16 %v405, %v405
      %v409 = vpack.c.b16 %v406, %v406
      %v410 = vpack.c.b16 %v407, %v407
      %vm414 = vcmask 257024
      %415 = vst.msk [vmem:[%s224] sm:$0xf] %vm414, %v408
      %416 = vst.msk [vmem:[%s224 + $0x4] sm:$0xf] %vm414, %v409
      %417 = vst.msk [vmem:[%s224 + $0x8] sm:$0xf] %vm414, %v410
      %p418 = scmp.lt.s32.totalorder %s16, 1
      %s419 = scalar_select %p418, %s16, 1
      %s420 = smul.addr %s419, 3
      %s421 = smul.addr %s420, 4
      %s422 = scalar_lea.vmem %s5, %s421
      // Predicated region
      $region41: #{vit_forward.4} parent=39 // pred_check
        %p423 = pneg %p144
      $region42: #{vit_forward.4} parent=39 // pred_check_branch
        %425 = sbr.rel (%p423) target = $region44
      $region43: #{vit_forward.4} parent=39 // pred_region
        _
      $region44: #{vit_forward.4} parent=39 // pred_fallthru
        _
    $region40: #{vit_forward.4} parent=5 // pred_fallthru
      _
    %p426 = scmp.le.s32.totalorder 2, %s11
    // Predicated region
    $region45: #{vit_forward.4} parent=5 // pred_check
      %p427 = pneg %p426
    $region46: #{vit_forward.4} parent=5 // pred_check_branch
      %429 = sbr.rel (%p427) target = $region48
    $region47: #{vit_forward.4} parent=5 // pred_region
      %s430 = ssub.s32 %s11, 2
      // Predicated region
      $region49: #{vit_forward.4} parent=47 // pred_check
        %p431 = pneg %p150
      $region50: #{vit_forward.4} parent=47 // pred_check_branch
        %433 = sbr.rel (%p431) target = $region52
      $region51: #{vit_forward.4} parent=47 // pred_region
        %p434 = scmp.lt.s32.totalorder %s17, 1
        %s435 = scalar_select %p434, %s17, 1
        %s436 = smul.addr %s435, 3
        %s437 = smul.addr %s436, 4
        %s438 = scalar_lea.vmem %s5, %s437
      $region52: #{vit_forward.4} parent=47 // pred_fallthru
        _
    $region48: #{vit_forward.4} parent=5 // pred_fallthru
      _
  $region6: #{vit_forward.4} parent=0 // loop_footer
    %s15 = sadd.s32 1, %s11
  $region7: #{vit_forward.4} parent=0 // loop_footer_branch
    %10 = sbr.rel target = $region3
  $region8: #{vit_forward.4} parent=0 // loop_exit
    _

// kernel: vit_forward.5
$region0: #{vit_forward.5}
  #allocation0 [shape = 'u32[]', space=smem, size = 0x4, offset = 0x4, fixed_abs, tag = 'smem constant byte address 0x4 - core index']
  #allocation1 [shape = 'u32[144,128]{1,0:T(1,128)}', space=vmem, size = 0x12000, scoped, tag = 'internal scratch']
  %s0 = inlined_call_operand.vmem [shape: bf16[2,24,32], index: 0, kind: input, shape index: {}]
  %s1 = inlined_call_operand.vmem [shape: f32[1,32], index: 1, kind: input, shape index: {}]
  %s2 = inlined_call_operand.vmem [shape: f32[1,32], index: 2, kind: input, shape index: {}]
  %s3 = inlined_call_operand.vmem [shape: bf16[32,96], index: 3, kind: input, shape index: {}]
  %s4 = inlined_call_operand.vmem [shape: f32[1,96], index: 4, kind: input, shape index: {}]
  %s5 = inlined_call_operand.vmem [shape: bf16[32,32], index: 5, kind: input, shape index: {}]
  %s6 = inlined_call_operand.vmem [shape: f32[1,32], index: 6, kind: input, shape index: {}]
  %s7 = inlined_call_operand.vmem [shape: f32[1,32], index: 7, kind: input, shape index: {}]
  %s8 = inlined_call_operand.vmem [shape: f32[1,32], index: 8, kind: input, shape index: {}]
  %s9 = inlined_call_operand.vmem [shape: bf16[32,128], index: 9, kind: input, shape index: {}]
  %s10 = inlined_call_operand.vmem [shape: f32[1,128], index: 10, kind: input, shape index: {}]
  %s11 = inlined_call_operand.vmem [shape: bf16[128,32], index: 11, kind: input, shape index: {}]
  %s12 = inlined_call_operand.vmem [shape: f32[1,32], index: 12, kind: input, shape index: {}]
  %s13 = inlined_call_operand.vmem [shape: bf16[2,24,32], index: 13, kind: output, shape index: {}]
  %s14 = sld [smem:[#allocation0]]
  $region85: #{vit_forward.5} parent=0
    _
  %s16 = ssub.s32 1, %s14
  %s17 = scalar_select 0, %s16, %s14
  loop: start=0, step=1, limit=4
  $region2: #{vit_forward.5} parent=0 // loop_pre_header
    _
  $region3: #{vit_forward.5} parent=0 // loop_header
    %s19 = sphi 0, %s23
    %p20 = scmp.ge.s32.totalorder %s19, 4
    %s29 = sphi 0, %s31
    %s32 = sphi 0, %s29
    %s33 = sphi 0, %s32
    %s49 = sphi 0, %s33
    %s53 = sphi 0, %s53
    %s55 = sphi 0, %s53
    %s56 = sphi 0, %s55
    %s70 = sphi 0, %s56
    %s74 = sphi 0, %s74
    %s76 = sphi 0, %s74
    %s77 = sphi 0, %s76
    %s91 = sphi 0, %s77
    %s95 = sphi 0, %s95
    %s97 = sphi 0, %s95
    %s98 = sphi 0, %s97
    %s112 = sphi 0, %s98
    %s116 = sphi 0, %s116
    %s118 = sphi 0, %s116
    %s119 = sphi 0, %s118
    %s133 = sphi 0, %s119
    %s137 = sphi 0, %s137
    %s139 = sphi 0, %s137
    %s140 = sphi 0, %s139
    %s154 = sphi 0, %s140
    %s158 = sphi 0, %s158
    %s160 = sphi 0, %s158
    %s161 = sphi 0, %s160
    %s175 = sphi 0, %s161
    %s179 = sphi 0, %s179
    %s181 = sphi 0, %s179
    %s182 = sphi 0, %s181
    %s196 = sphi 0, %s182
    %s200 = sphi 0, %s200
    %s202 = sphi 0, %s200
    %s203 = sphi 0, %s202
    %s217 = sphi 0, %s203
    %s221 = sphi 0, %s221
    %s223 = sphi 0, %s221
    %s224 = sphi 0, %s223
    %s238 = sphi 0, %s224
    %s242 = sphi 0, %s242
    %s244 = sphi 0, %s242
    %s245 = sphi 0, %s244
    %s259 = sphi 0, %s245
    %s263 = sphi 0, %s263
    %s265 = sphi 0, %s263
    %s266 = sphi 0, %s265
    %s280 = sphi 0, %s266
    %s284 = sphi 0, %s284
    %s286 = sphi 0, %s284
    %s287 = sphi 0, %s286
    %s301 = sphi 0, %s287
    %s307 = sphi 0, %s309
    %s310 = sphi 0, %s307
    %s311 = sphi 0, %s310
    %s327 = sphi 0, %s311
  $region4: #{vit_forward.5} parent=0 // loop_header_branch
    %22 = sbr.rel (%p20) target = $region8
  $region5: #{vit_forward.5} parent=0 // loop_body
    %s24 = ssub.s32 %s19, 1
    %s25 = ssub.s32 %s19, 2
    %s26 = sadd.s32 %s19, 1
    %s27 = ssub.s32 %s19, %s26
    %p28 = scmp.eq.s32.totalorder %s27, 0
    %s30 = sadd.s32 %s29, 1
    %s31 = scalar_select %p28, %s29, %s30
    %p34 = pneg %p28
    %p35 = scmp.eq.s32.totalorder %s19, 1
    %p36 = por %p34, %p35
    %p37 = scmp.ne.s32.totalorder %s29, %s32
    %p38 = scmp.eq.s32.totalorder %s19, 0
    %p39 = por %p37, %p38
    %p40 = scmp.ne.s32.totalorder %s29, %s32
    %p41 = scmp.eq.s32.totalorder %s24, 1
    %p42 = por %p40, %p41
    %p43 = scmp.ne.s32.totalorder %s32, %s33
    %p44 = scmp.eq.s32.totalorder %s24, 0
    %p45 = por %p43, %p44
    %p46 = scmp.ne.s32.totalorder %s32, %s33
    %p47 = scmp.eq.s32.totalorder %s25, 1
    %p48 = por %p46, %p47
    %p50 = scmp.ne.s32.totalorder %s33, %s49
    %p51 = scmp.eq.s32.totalorder %s25, 0
    %p52 = por %p50, %p51
    %s54 = sadd.s32 %s53, 1
    %p57 = scmp.eq.s32.totalorder %s19, 1
    %p58 = scmp.ne.s32.totalorder %s53, %s55
    %p59 = scmp.eq.s32.totalorder %s19, 0
    %p60 = por %p58, %p59
    %p61 = scmp.ne.s32.totalorder %s53, %s55
    %p62 = scmp.eq.s32.totalorder %s24, 1
    %p63 = por %p61, %p62
    %p64 = scmp.ne.s32.totalorder %s55, %s56
    %p65 = scmp.eq.s32.totalorder %s24, 0
    %p66 = por %p64, %p65
    %p67 = scmp.ne.s32.totalorder %s55, %s56
    %p68 = scmp.eq.s32.totalorder %s25, 1
    %p69 = por %p67, %p68
    %p71 = scmp.ne.s32.totalorder %s56, %s70
    %p72 = scmp.eq.s32.totalorder %s25, 0
    %p73 = por %p71, %p72
    %s75 = sadd.s32 %s74, 1
    %p78 = scmp.eq.s32.totalorder %s19, 1
    %p79 = scmp.ne.s32.totalorder %s74, %s76
    %p80 = scmp.eq.s32.totalorder %s19, 0
    %p81 = por %p79, %p80
    %p82 = scmp.ne.s32.totalorder %s74, %s76
    %p83 = scmp.eq.s32.totalorder %s24, 1
    %p84 = por %p82, %p83
    %p85 = scmp.ne.s32.totalorder %s76, %s77
    %p86 = scmp.eq.s32.totalorder %s24, 0
    %p87 = por %p85, %p86
    %p88 = scmp.ne.s32.totalorder %s76, %s77
    %p89 = scmp.eq.s32.totalorder %s25, 1
    %p90 = por %p88, %p89
    %p92 = scmp.ne.s32.totalorder %s77, %s91
    %p93 = scmp.eq.s32.totalorder %s25, 0
    %p94 = por %p92, %p93
    %s96 = sadd.s32 %s95, 1
    %p99 = scmp.eq.s32.totalorder %s19, 1
    %p100 = scmp.ne.s32.totalorder %s95, %s97
    %p101 = scmp.eq.s32.totalorder %s19, 0
    %p102 = por %p100, %p101
    %p103 = scmp.ne.s32.totalorder %s95, %s97
    %p104 = scmp.eq.s32.totalorder %s24, 1
    %p105 = por %p103, %p104
    %p106 = scmp.ne.s32.totalorder %s97, %s98
    %p107 = scmp.eq.s32.totalorder %s24, 0
    %p108 = por %p106, %p107
    %p109 = scmp.ne.s32.totalorder %s97, %s98
    %p110 = scmp.eq.s32.totalorder %s25, 1
    %p111 = por %p109, %p110
    %p113 = scmp.ne.s32.totalorder %s98, %s112
    %p114 = scmp.eq.s32.totalorder %s25, 0
    %p115 = por %p113, %p114
    %s117 = sadd.s32 %s116, 1
    %p120 = scmp.eq.s32.totalorder %s19, 1
    %p121 = scmp.ne.s32.totalorder %s116, %s118
    %p122 = scmp.eq.s32.totalorder %s19, 0
    %p123 = por %p121, %p122
    %p124 = scmp.ne.s32.totalorder %s116, %s118
    %p125 = scmp.eq.s32.totalorder %s24, 1
    %p126 = por %p124, %p125
    %p127 = scmp.ne.s32.totalorder %s118, %s119
    %p128 = scmp.eq.s32.totalorder %s24, 0
    %p129 = por %p127, %p128
    %p130 = scmp.ne.s32.totalorder %s118, %s119
    %p131 = scmp.eq.s32.totalorder %s25, 1
    %p132 = por %p130, %p131
    %p134 = scmp.ne.s32.totalorder %s119, %s133
    %p135 = scmp.eq.s32.totalorder %s25, 0
    %p136 = por %p134, %p135
    %s138 = sadd.s32 %s137, 1
    %p141 = scmp.eq.s32.totalorder %s19, 1
    %p142 = scmp.ne.s32.totalorder %s137, %s139
    %p143 = scmp.eq.s32.totalorder %s19, 0
    %p144 = por %p142, %p143
    %p145 = scmp.ne.s32.totalorder %s137, %s139
    %p146 = scmp.eq.s32.totalorder %s24, 1
    %p147 = por %p145, %p146
    %p148 = scmp.ne.s32.totalorder %s139, %s140
    %p149 = scmp.eq.s32.totalorder %s24, 0
    %p150 = por %p148, %p149
    %p151 = scmp.ne.s32.totalorder %s139, %s140
    %p152 = scmp.eq.s32.totalorder %s25, 1
    %p153 = por %p151, %p152
    %p155 = scmp.ne.s32.totalorder %s140, %s154
    %p156 = scmp.eq.s32.totalorder %s25, 0
    %p157 = por %p155, %p156
    %s159 = sadd.s32 %s158, 1
    %p162 = scmp.eq.s32.totalorder %s19, 1
    %p163 = scmp.ne.s32.totalorder %s158, %s160
    %p164 = scmp.eq.s32.totalorder %s19, 0
    %p165 = por %p163, %p164
    %p166 = scmp.ne.s32.totalorder %s158, %s160
    %p167 = scmp.eq.s32.totalorder %s24, 1
    %p168 = por %p166, %p167
    %p169 = scmp.ne.s32.totalorder %s160, %s161
    %p170 = scmp.eq.s32.totalorder %s24, 0
    %p171 = por %p169, %p170
    %p172 = scmp.ne.s32.totalorder %s160, %s161
    %p173 = scmp.eq.s32.totalorder %s25, 1
    %p174 = por %p172, %p173
    %p176 = scmp.ne.s32.totalorder %s161, %s175
    %p177 = scmp.eq.s32.totalorder %s25, 0
    %p178 = por %p176, %p177
    %s180 = sadd.s32 %s179, 1
    %p183 = scmp.eq.s32.totalorder %s19, 1
    %p184 = scmp.ne.s32.totalorder %s179, %s181
    %p185 = scmp.eq.s32.totalorder %s19, 0
    %p186 = por %p184, %p185
    %p187 = scmp.ne.s32.totalorder %s179, %s181
    %p188 = scmp.eq.s32.totalorder %s24, 1
    %p189 = por %p187, %p188
    %p190 = scmp.ne.s32.totalorder %s181, %s182
    %p191 = scmp.eq.s32.totalorder %s24, 0
    %p192 = por %p190, %p191
    %p193 = scmp.ne.s32.totalorder %s181, %s182
    %p194 = scmp.eq.s32.totalorder %s25, 1
    %p195 = por %p193, %p194
    %p197 = scmp.ne.s32.totalorder %s182, %s196
    %p198 = scmp.eq.s32.totalorder %s25, 0
    %p199 = por %p197, %p198
    %s201 = sadd.s32 %s200, 1
    %p204 = scmp.eq.s32.totalorder %s19, 1
    %p205 = scmp.ne.s32.totalorder %s200, %s202
    %p206 = scmp.eq.s32.totalorder %s19, 0
    %p207 = por %p205, %p206
    %p208 = scmp.ne.s32.totalorder %s200, %s202
    %p209 = scmp.eq.s32.totalorder %s24, 1
    %p210 = por %p208, %p209
    %p211 = scmp.ne.s32.totalorder %s202, %s203
    %p212 = scmp.eq.s32.totalorder %s24, 0
    %p213 = por %p211, %p212
    %p214 = scmp.ne.s32.totalorder %s202, %s203
    %p215 = scmp.eq.s32.totalorder %s25, 1
    %p216 = por %p214, %p215
    %p218 = scmp.ne.s32.totalorder %s203, %s217
    %p219 = scmp.eq.s32.totalorder %s25, 0
    %p220 = por %p218, %p219
    %s222 = sadd.s32 %s221, 1
    %p225 = scmp.eq.s32.totalorder %s19, 1
    %p226 = scmp.ne.s32.totalorder %s221, %s223
    %p227 = scmp.eq.s32.totalorder %s19, 0
    %p228 = por %p226, %p227
    %p229 = scmp.ne.s32.totalorder %s221, %s223
    %p230 = scmp.eq.s32.totalorder %s24, 1
    %p231 = por %p229, %p230
    %p232 = scmp.ne.s32.totalorder %s223, %s224
    %p233 = scmp.eq.s32.totalorder %s24, 0
    %p234 = por %p232, %p233
    %p235 = scmp.ne.s32.totalorder %s223, %s224
    %p236 = scmp.eq.s32.totalorder %s25, 1
    %p237 = por %p235, %p236
    %p239 = scmp.ne.s32.totalorder %s224, %s238
    %p240 = scmp.eq.s32.totalorder %s25, 0
    %p241 = por %p239, %p240
    %s243 = sadd.s32 %s242, 1
    %p246 = scmp.eq.s32.totalorder %s19, 1
    %p247 = scmp.ne.s32.totalorder %s242, %s244
    %p248 = scmp.eq.s32.totalorder %s19, 0
    %p249 = por %p247, %p248
    %p250 = scmp.ne.s32.totalorder %s242, %s244
    %p251 = scmp.eq.s32.totalorder %s24, 1
    %p252 = por %p250, %p251
    %p253 = scmp.ne.s32.totalorder %s244, %s245
    %p254 = scmp.eq.s32.totalorder %s24, 0
    %p255 = por %p253, %p254
    %p256 = scmp.ne.s32.totalorder %s244, %s245
    %p257 = scmp.eq.s32.totalorder %s25, 1
    %p258 = por %p256, %p257
    %p260 = scmp.ne.s32.totalorder %s245, %s259
    %p261 = scmp.eq.s32.totalorder %s25, 0
    %p262 = por %p260, %p261
    %s264 = sadd.s32 %s263, 1
    %p267 = scmp.eq.s32.totalorder %s19, 1
    %p268 = scmp.ne.s32.totalorder %s263, %s265
    %p269 = scmp.eq.s32.totalorder %s19, 0
    %p270 = por %p268, %p269
    %p271 = scmp.ne.s32.totalorder %s263, %s265
    %p272 = scmp.eq.s32.totalorder %s24, 1
    %p273 = por %p271, %p272
    %p274 = scmp.ne.s32.totalorder %s265, %s266
    %p275 = scmp.eq.s32.totalorder %s24, 0
    %p276 = por %p274, %p275
    %p277 = scmp.ne.s32.totalorder %s265, %s266
    %p278 = scmp.eq.s32.totalorder %s25, 1
    %p279 = por %p277, %p278
    %p281 = scmp.ne.s32.totalorder %s266, %s280
    %p282 = scmp.eq.s32.totalorder %s25, 0
    %p283 = por %p281, %p282
    %s285 = sadd.s32 %s284, 1
    %p288 = scmp.eq.s32.totalorder %s19, 1
    %p289 = scmp.ne.s32.totalorder %s284, %s286
    %p290 = scmp.eq.s32.totalorder %s19, 0
    %p291 = por %p289, %p290
    %p292 = scmp.ne.s32.totalorder %s284, %s286
    %p293 = scmp.eq.s32.totalorder %s24, 1
    %p294 = por %p292, %p293
    %p295 = scmp.ne.s32.totalorder %s286, %s287
    %p296 = scmp.eq.s32.totalorder %s24, 0
    %p297 = por %p295, %p296
    %p298 = scmp.ne.s32.totalorder %s286, %s287
    %p299 = scmp.eq.s32.totalorder %s25, 1
    %p300 = por %p298, %p299
    %p302 = scmp.ne.s32.totalorder %s287, %s301
    %p303 = scmp.eq.s32.totalorder %s25, 0
    %p304 = por %p302, %p303
    %s305 = ssub.s32 %s19, %s26
    %p306 = scmp.eq.s32.totalorder %s305, 0
    %s308 = sadd.s32 %s307, 1
    %s309 = scalar_select %p306, %s307, %s308
    %p312 = pneg %p306
    %p313 = scmp.eq.s32.totalorder %s19, 1
    %p314 = por %p312, %p313
    %p315 = scmp.ne.s32.totalorder %s307, %s310
    %p316 = scmp.eq.s32.totalorder %s19, 0
    %p317 = por %p315, %p316
    %p318 = scmp.ne.s32.totalorder %s307, %s310
    %p319 = scmp.eq.s32.totalorder %s24, 1
    %p320 = por %p318, %p319
    %p321 = scmp.ne.s32.totalorder %s310, %s311
    %p322 = scmp.eq.s32.totalorder %s24, 0
    %p323 = por %p321, %p322
    %p324 = scmp.ne.s32.totalorder %s310, %s311
    %p325 = scmp.eq.s32.totalorder %s25, 1
    %p326 = por %p324, %p325
    %p328 = scmp.ne.s32.totalorder %s311, %s327
    %p329 = scmp.eq.s32.totalorder %s25, 0
    %p330 = por %p328, %p329
    %p331 = scmp.le.s32.totalorder 1, %s19
    %p332 = scmp.lt.s32.totalorder %s19, 3
    %p333 = pnand %p331, %p332
    %p334 = pneg %p333
    // Predicated region
    $region9: #{vit_forward.5} parent=5 // pred_check
      _
    $region10: #{vit_forward.5} parent=5 // pred_check_branch
      %336 = sbr.rel (%p333) target = $region12
    $region11: #{vit_forward.5} parent=5 // pred_region
      %s337 = ssub.s32 %s19, 1
      // Predicated region
      $region13: #{vit_forward.5} parent=11 // pred_check
        %p338 = pneg %p66
      $region14: #{vit_forward.5} parent=11 // pred_check_branch
        %340 = sbr.rel (%p338) target = $region16
      $region15: #{vit_forward.5} parent=11 // pred_region
        _
      $region16: #{vit_forward.5} parent=11 // pred_fallthru
        _
      // Predicated region
      $region17: #{vit_forward.5} parent=11 // pred_check
        %p341 = pneg %p87
      $region18: #{vit_forward.5} parent=11 // pred_check_branch
        %343 = sbr.rel (%p341) target = $region20
      $region19: #{vit_forward.5} parent=11 // pred_region
        _
      $region20: #{vit_forward.5} parent=11 // pred_fallthru
        _
      // Predicated region
      $region21: #{vit_forward.5} parent=11 // pred_check
        %p344 = pneg %p108
      $region22: #{vit_forward.5} parent=11 // pred_check_branch
        %346 = sbr.rel (%p344) target = $region24
      $region23: #{vit_forward.5} parent=11 // pred_region
        _
      $region24: #{vit_forward.5} parent=11 // pred_fallthru
        _
      // Predicated region
      $region25: #{vit_forward.5} parent=11 // pred_check
        %p347 = pneg %p129
      $region26: #{vit_forward.5} parent=11 // pred_check_branch
        %349 = sbr.rel (%p347) target = $region28
      $region27: #{vit_forward.5} parent=11 // pred_region
        _
      $region28: #{vit_forward.5} parent=11 // pred_fallthru
        _
      // Predicated region
      $region29: #{vit_forward.5} parent=11 // pred_check
        %p350 = pneg %p150
      $region30: #{vit_forward.5} parent=11 // pred_check_branch
        %352 = sbr.rel (%p350) target = $region32
      $region31: #{vit_forward.5} parent=11 // pred_region
        _
      $region32: #{vit_forward.5} parent=11 // pred_fallthru
        _
      // Predicated region
      $region33: #{vit_forward.5} parent=11 // pred_check
        %p353 = pneg %p171
      $region34: #{vit_forward.5} parent=11 // pred_check_branch
        %355 = sbr.rel (%p353) target = $region36
      $region35: #{vit_forward.5} parent=11 // pred_region
        _
      $region36: #{vit_forward.5} parent=11 // pred_fallthru
        _
      // Predicated region
      $region37: #{vit_forward.5} parent=11 // pred_check
        %p356 = pneg %p192
      $region38: #{vit_forward.5} parent=11 // pred_check_branch
        %358 = sbr.rel (%p356) target = $region40
      $region39: #{vit_forward.5} parent=11 // pred_region
        _
      $region40: #{vit_forward.5} parent=11 // pred_fallthru
        _
      // Predicated region
      $region41: #{vit_forward.5} parent=11 // pred_check
        %p359 = pneg %p213
      $region42: #{vit_forward.5} parent=11 // pred_check_branch
        %361 = sbr.rel (%p359) target = $region44
      $region43: #{vit_forward.5} parent=11 // pred_region
        _
      $region44: #{vit_forward.5} parent=11 // pred_fallthru
        _
      // Predicated region
      $region45: #{vit_forward.5} parent=11 // pred_check
        %p362 = pneg %p234
      $region46: #{vit_forward.5} parent=11 // pred_check_branch
        %364 = sbr.rel (%p362) target = $region48
      $region47: #{vit_forward.5} parent=11 // pred_region
        _
      $region48: #{vit_forward.5} parent=11 // pred_fallthru
        _
      // Predicated region
      $region49: #{vit_forward.5} parent=11 // pred_check
        %p365 = pneg %p255
      $region50: #{vit_forward.5} parent=11 // pred_check_branch
        %367 = sbr.rel (%p365) target = $region52
      $region51: #{vit_forward.5} parent=11 // pred_region
        _
      $region52: #{vit_forward.5} parent=11 // pred_fallthru
        _
      // Predicated region
      $region53: #{vit_forward.5} parent=11 // pred_check
        %p368 = pneg %p276
      $region54: #{vit_forward.5} parent=11 // pred_check_branch
        %370 = sbr.rel (%p368) target = $region56
      $region55: #{vit_forward.5} parent=11 // pred_region
        _
      $region56: #{vit_forward.5} parent=11 // pred_fallthru
        _
      // Predicated region
      $region57: #{vit_forward.5} parent=11 // pred_check
        %p371 = pneg %p297
      $region58: #{vit_forward.5} parent=11 // pred_check_branch
        %373 = sbr.rel (%p371) target = $region60
      $region59: #{vit_forward.5} parent=11 // pred_region
        _
      $region60: #{vit_forward.5} parent=11 // pred_fallthru
        _
    $region12: #{vit_forward.5} parent=5 // pred_fallthru
      _
    %p374 = scmp.lt.s32.totalorder %s19, 2
    // Predicated region
    $region61: #{vit_forward.5} parent=5 // pred_check
      %p375 = pneg %p374
    $region62: #{vit_forward.5} parent=5 // pred_check_branch
      %377 = sbr.rel (%p375) target = $region64
    $region63: #{vit_forward.5} parent=5 // pred_region
      // Predicated region
      $region65: #{vit_forward.5} parent=63 // pred_check
        %p378 = pneg %p39
      $region66: #{vit_forward.5} parent=63 // pred_check_branch
        %380 = sbr.rel (%p378) target = $region68
      $region67: #{vit_forward.5} parent=63 // pred_region
        %p381 = scmp.lt.s32.totalorder %s19, 1
        %s382 = scalar_select %p381, %s19, 1
        %s383 = smul.addr %s382, 3
        %s384 = smul.addr %s383, 4
        %s385 = scalar_lea.vmem %s0, %s384
      $region68: #{vit_forward.5} parent=63 // pred_fallthru
        _
    $region64: #{vit_forward.5} parent=5 // pred_fallthru
      _
    %p386 = scmp.le.s32.totalorder 1, %s19
    %p387 = scmp.lt.s32.totalorder %s19, 3
    %p388 = pnand %p386, %p387
    %p389 = pneg %p388
    // Predicated region
    $region69: #{vit_forward.5} parent=5 // pred_check
      _
    $region70: #{vit_forward.5} parent=5 // pred_check_branch
      %391 = sbr.rel (%p388) target = $region72
    $region71: #{vit_forward.5} parent=5 // pred_region
      %s392 = ssub.s32 %s19, 1
      %p393 = scmp.lt.s32.totalorder %s24, 1
      %s394 = scalar_select %p393, %s24, 1
      %s395 = smul.addr %s394, 3
      %s396 = smul.addr %s395, 4
      %s397 = scalar_lea.vmem %s0, %s396
      %p398 = pneg %p45
      %p399 = pneg %p42
      %p400 = pneg %p66
      %p401 = pneg %p63
      %p402 = pneg %p87
      %p403 = pneg %p84
      %p404 = pneg %p108
      %p405 = pneg %p105
      %p406 = pneg %p129
      %p407 = pneg %p126
      %p408 = pneg %p150
      %p409 = pneg %p147
      %p410 = pneg %p171
      %p411 = pneg %p168
      %p412 = pneg %p192
      %p413 = pneg %p189
      %p414 = pneg %p213
      %p415 = pneg %p210
      %p416 = pneg %p234
      %p417 = pneg %p231
      %p418 = pneg %p255
      %p419 = pneg %p252
      %p420 = pneg %p276
      %p421 = pneg %p273
      %p422 = pneg %p297
      %p423 = pneg %p294
      %p424 = pneg %p323
      %p425 = pneg %p320
      %p426 = scmp.lt.s32.totalorder %s24, 1
      %s427 = scalar_select %p426, %s24, 1
      %s428 = smul.addr %s427, 3
      %s429 = smul.addr %s428, 4
      %s430 = scalar_lea.vmem %s13, %s429
      %p431 = scmp.lt.s32.totalorder %s24, 1
      %s432 = scalar_select %p431, %s24, 1
      %s433 = smul.addr %s432, 3
      %s434 = smul.addr %s433, 4
      %s435 = scalar_lea.vmem %s0, %s434
      %p436 = scmp.lt.s32.totalorder %s24, 1
      %s437 = scalar_select %p436, %s24, 1
      %s438 = smul.addr %s437, 3
      %s439 = smul.addr %s438, 4
      %s440 = scalar_lea.vmem %s13, %s439
      %v442 = vld [vmem:[%s435] sm:$0xf]
      %v443 = vld [vmem:[%s435 + $0x4] sm:$0xf]
      %v444 = vld [vmem:[%s435 + $0x8] sm:$0xf]
      %v445 = vunpack.c.l.bf16 %v442
      %v446 = vunpack.c.l.bf16 %v443
      %v447 = vunpack.c.l.bf16 %v444
      %v448 = vld [vmem:[%s1] sm:$0x1]
      %v449 = vld [vmem:[%s2] sm:$0x1]
      %vm450 = vcmask 261120
      %v451 = vsel %vm450, %v445, 0.0
      %452 = vadd.xlane.f32.xlu0 %v451
      %v453 = vpop.xlane.xlu0 %452
      %v454 = vsel %vm450, %v446, 0.0
      %455 = vadd.xlane.f32.xlu0 %v454
      %v456 = vpop.xlane.xlu0 %455
      %v457 = vsel %vm450, %v447, 0.0
      %458 = vadd.xlane.f32.xlu0 %v457
      %v459 = vpop.xlane.xlu0 %458
      %v460 = vrcp.pop 32.0
      %v461 = vmul.f32 %v453, %v460
      %v462 = vmul.f32 %v456, %v460
      %v463 = vmul.f32 %v459, %v460
      %v464 = vsub.f32 %v445, %v461
      %v465 = vsub.f32 %v446, %v462
      %v466 = vsub.f32 %v447, %v463
      %v467 = vmul.f32 %v464, %v464
      %v468 = vmul.f32 %v465, %v465
      %v469 = vmul.f32 %v466, %v466
      %v470 = vsel %vm450, %v467, 0.0
      %471 = vadd.xlane.f32.xlu0 %v470
      %v472 = vpop.xlane.xlu0 %471
      %v473 = vsel %vm450, %v468, 0.0
      %474 = vadd.xlane.f32.xlu0 %v473
      %v475 = vpop.xlane.xlu0 %474
      %v476 = vsel %vm450, %v469, 0.0
      %477 = vadd.xlane.f32.xlu0 %v476
      %v478 = vpop.xlane.xlu0 %477
      %v479 = vmul.f32 %v472, %v460
      %v480 = vmul.f32 %v475, %v460
      %v481 = vmul.f32 %v478, %v460
      %v482 = vadd.f32 %v479, 1e-12
      %v483 = vadd.f32 %v480, 1e-12
      %v484 = vadd.f32 %v481, 1e-12
      %v485 = vrsqrt.pop %v482
      %v486 = vrsqrt.pop %v483
      %v487 = vrsqrt.pop %v484
      %v488 = vmul.f32 %v464, %v485
      %v489 = vmul.f32 %v465, %v486
      %v490 = vmul.f32 %v466, %v487
      %v492 = vlaneseq
      %v493 = vshrl.u32 %v492, 7
      %v494 = vsub.s32 0, %v493
      %v495 = vrot.slane %v448, %v494
      %v497 = vmul.f32 %v488, %v495
      %v498 = vmul.f32 %v489, %v495
      %v499 = vmul.f32 %v490, %v495
      %v501 = vlaneseq
      %v502 = vshrl.u32 %v501, 7
      %v503 = vsub.s32 0, %v502
      %v504 = vrot.slane %v449, %v503
      %v506 = vadd.f32 %v497, %v504
      %v507 = vadd.f32 %v498, %v504
      %v508 = vadd.f32 %v499, %v504
      %v509 = vpack.c.bf16 %v507, %v506
      %v510 = vpack.c.bf16 %v508, %v508
      %v511 = vld [vmem:[%s3] sm:$0xf]
      %v512 = vld [vmem:[%s3 + $0x4] sm:$0xf]
      %v513 = vld [vmem:[%s3 + $0x8] sm:$0xf]
      %v514 = vld [vmem:[%s3 + $0xc] sm:$0xf]
      %v515 = vld [vmem:[%s4] sm:$0x1]
      %v517 = vlaneseq
      %v518 = vshrl.u32 %v517, 7
      %v519 = vsub.s32 0, %v518
      %v520 = vrot.slane %v515, %v519
      %v526 = vunpack.c.l.b16 %v511
      %v527 = vunpack.c.l.b16 %v512
      %v528 = vunpack.c.l.b16 %v513
      %v529 = vunpack.c.l.b16 %v514
      %v530 = vpack.c.b16 %v527, %v526
      %v531 = vpack.c.b16 %v529, %v528
      %v535 = vsel %vm450, %v509, 0
      %v538 = vsel %vm450, %v510, 0
      %540 = vmatprep.subr.bf16.mxu0 0
      %541 = vmatpush1.bf16.msra.mxu0 %v530
      %542 = vmatprep.subr.bf16.mxu0 0
      %543 = vmatpush1.bf16.msra.mxu0 %v531
      %544 = vmatprep.subr.bf16.mxu0 0
      %545 = vmatpush1.bf16.msra.mxu0 0
      %546 = vmatprep.subr.bf16.mxu0 0
      %547 = vmatpush1.bf16.msra.mxu0 0
      %548 = vmatprep.subr.bf16.mxu0 0
      %549 = vmatpush1.bf16.msra.mxu0 0
      %550 = vmatprep.subr.bf16.mxu0 0
      %551 = vmatpush1.bf16.msra.mxu0 0
      %552 = vmatprep.subr.bf16.mxu0 0
      %553 = vmatpush1.bf16.msra.mxu0 0
      %554 = vmatprep.subr.bf16.mxu0 0
      %555 = vmatpush1.bf16.msra.mxu0 0
      %556 = vmatprep.subr.bf16.mxu0 0
      %557 = vmatpush1.bf16.msra.mxu0 0
      %558 = vmatprep.subr.bf16.mxu0 0
      %559 = vmatpush1.bf16.msra.mxu0 0
      %560 = vmatprep.subr.bf16.mxu0 0
      %561 = vmatpush1.bf16.msra.mxu0 0
      %562 = vmatprep.subr.bf16.mxu0 0
      %563 = vmatpush1.bf16.msra.mxu0 0
      %564 = vmatprep.subr.bf16.mxu0 0
      %565 = vmatpush1.bf16.msra.mxu0 0
      %566 = vmatprep.subr.bf16.mxu0 0
      %567 = vmatpush1.bf16.msra.mxu0 0
      %568 = vmatprep.subr.bf16.mxu0 0
      %569 = vmatpush1.bf16.msra.mxu0 0
      %570 = vmatprep.subr.bf16.mxu0 0
      %571 = vmatpush1.bf16.msra.mxu0 0
      %572 = vmatprep.mubr.bf16.mxu0 0
      %573 = vmatmul.mubr.bf16.gmra.mrb[0].mxu0 %v535
      %v574 = vpop.f32.mrb[0].mxu0
      %v575 = vadd.f32 %v520, %v574
      %v576 = vpop.f32.mrb[0].mxu0
      %v577 = vpop.f32.mrb[0].mxu0
      %v578 = vadd.f32 %v520, %v577
      %v579 = vpop.f32.mrb[0].mxu0
      %580 = vmatprep.mubr.bf16.mxu0 0
      %581 = vmatmul.mubr.bf16.gmra.mrb[0].mxu0 %v538
      %v582 = vpop.f32.mrb[0].mxu0
      %v583 = vadd.f32 %v520, %v582
      %v584 = vpop.f32.mrb[0].mxu0
      %v585 = vpop.f32.mrb[0].mxu0
      %v586 = vpop.f32.mrb[0].mxu0
      %587 = vdwg.mxu0
      %v588 = vlaneseq
      %v589 = vand.u32 %v588, 127
      %v590 = vpack.c.bf16 %v578, %v575
      %v591 = vpack.c.bf16 %v583, %v583
      %594 = vrot.lane.b32.xlu0 %v590, 96
      %v595 = vpop.permute.xlu0 %594
      %596 = vrot.lane.b32.xlu0 %v591, 96
      %v597 = vpop.permute.xlu0 %596
      %vm598 = vcmask 64512
      %v600 = vsel %vm598, %v590, 0
      %v603 = vsel %vm598, %v591, 0
      %v606 = vsel %vm598, %v595, 0
      %v609 = vsel %vm598, %v597, 0
      %611 = vmatprep.subr.bf16.mxu0 0
      %612 = vmatpush1.bf16.xpose.msra.mxu0 %v606
      %613 = vmatprep.subr.bf16.mxu0 0
      %614 = vmatpush1.bf16.xpose.msra.mxu0 %v609
      %615 = vmatprep.subr.bf16.mxu0 0
      %616 = vmatpush1.bf16.xpose.msra.mxu0 0
      %617 = vmatprep.subr.bf16.mxu0 0
      %618 = vmatpush1.bf16.xpose.msra.mxu0 0
      %619 = vmatprep.subr.bf16.mxu0 0
      %620 = vmatpush1.bf16.xpose.msra.mxu0 0
      %621 = vmatprep.subr.bf16.mxu0 0
      %622 = vmatpush1.bf16.xpose.msra.mxu0 0
      %623 = vmatprep.subr.bf16.mxu0 0
      %624 = vmatpush1.bf16.xpose.msra.mxu0 0
      %625 = vmatprep.subr.bf16.mxu0 0
      %626 = vmatpush1.bf16.xpose.msra.mxu0 0
      %627 = vmatprep.subr.bf16.mxu0 0
      %628 = vmatpush1.bf16.xpose.msra.mxu0 0
      %629 = vmatprep.subr.bf16.mxu0 0
      %630 = vmatpush1.bf16.xpose.msra.mxu0 0
      %631 = vmatprep.subr.bf16.mxu0 0
      %632 = vmatpush1.bf16.xpose.msra.mxu0 0
      %633 = vmatprep.subr.bf16.mxu0 0
      %634 = vmatpush1.bf16.xpose.msra.mxu0 0
      %635 = vmatprep.subr.bf16.mxu0 0
      %636 = vmatpush1.bf16.xpose.msra.mxu0 0
      %637 = vmatprep.subr.bf16.mxu0 0
      %638 = vmatpush1.bf16.xpose.msra.mxu0 0
      %639 = vmatprep.subr.bf16.mxu0 0
      %640 = vmatpush1.bf16.xpose.msra.mxu0 0
      %641 = vmatprep.subr.bf16.mxu0 0
      %642 = vmatpush1.bf16.xpose.msra.mxu0 0
      %643 = vmatprep.mubr.bf16.mxu0 0
      %644 = vmatmul.mubr.bf16.gmra.mrb[0].mxu0 %v600
      %v645 = vpop.f32.mrb[0].mxu0
      %v646 = vadd.f32 0.0, %v645
      %v647 = vpop.f32.mrb[0].mxu0
      %v648 = vpop.f32.mrb[0].mxu0
      %v649 = vadd.f32 0.0, %v648
      %v650 = vpop.f32.mrb[0].mxu0
      %651 = vmatprep.mubr.bf16.mxu0 0
      %652 = vmatmul.mubr.bf16.gmra.mrb[0].mxu0 %v603
      %v653 = vpop.f32.mrb[0].mxu0
      %v654 = vadd.f32 0.0, %v653
      %v655 = vpop.f32.mrb[0].mxu0
      %v656 = vpop.f32.mrb[0].mxu0
      %v657 = vpop.f32.mrb[0].mxu0
      %658 = vdwg.mxu0
      %v659 = vmul.f32 %v646, 0.35355338
      %v660 = vmul.f32 %v649, 0.35355338
      %v661 = vmul.f32 %v654, 0.35355338
      %vm662 = vcmp.lt.s32.totalorder %v589, 17
      %v663 = vsel %vm662, %v659, -1e+30
      %v664 = vsel %vm662, %v660, -1e+30
      %v665 = vsel %vm662, %v661, -1e+30
      %vm666 = vcmask 195584
      %v667 = vsel %vm666, %v663, -inf
      %668 = vmax.xlane.f32.xlu0 %v667
      %v669 = vpop.xlane.xlu0 %668
      %v670 = vsel %vm666, %v664, -inf
      %671 = vmax.xlane.f32.xlu0 %v670
      %v672 = vpop.xlane.xlu0 %671
      %v673 = vsel %vm666, %v665, -inf
      %674 = vmax.xlane.f32.xlu0 %v673
      %v675 = vpop.xlane.xlu0 %674
      %v676 = vsub.f32 %v663, %v669
      %v677 = vsub.f32 %v664, %v672
      %v678 = vsub.f32 %v665, %v675
      %v679 = vmul.f32 %v676, 1.442695
      %v680 = vpow.pop %v679
      %v681 = vmul.f32 %v677, 1.442695
      %v682 = vpow.pop %v681
      %v683 = vmul.f32 %v678, 1.442695
      %v684 = vpow.pop %v683
      %v685 = vsel %vm666, %v680, 0.0
      %686 = vadd.xlane.f32.xlu0 %v685
      %v687 = vpop.xlane.xlu0 %686
      %v688 = vsel %vm666, %v682, 0.0
      %689 = vadd.xlane.f32.xlu0 %v688
      %v690 = vpop.xlane.xlu0 %689
      %v691 = vsel %vm666, %v684, 0.0
      %692 = vadd.xlane.f32.xlu0 %v691
      %v693 = vpop.xlane.xlu0 %692
      %v694 = vrcp.pop %v687
      %v695 = vrcp.pop %v690
      %v696 = vrcp.pop %v693
      %v697 = vmul.f32 %v680, %v694
      %v698 = vmul.f32 %v682, %v695
      %v699 = vmul.f32 %v684, %v696
      %v700 = vpack.c.bf16 %v698, %v697
      %v701 = vpack.c.bf16 %v699, %v699
      %702 = vrot.lane.b32.xlu0 %v590, 64
      %v703 = vpop.permute.xlu0 %702
      %704 = vrot.lane.b32.xlu0 %v591, 64
      %v705 = vpop.permute.xlu0 %704
      %v708 = vsel %vm666, %v700, 0
      %v711 = vsel %vm666, %v701, 0
      %vm713 = vcmask 1043456
      %v715 = vsel %vm713, %v705, 0
      %717 = vmatprep.subr.bf16.mxu0 0
      %718 = vmatpush1.bf16.msra.mxu0 %v703
      %719 = vmatprep.subr.bf16.mxu0 0
      %720 = vmatpush1.bf16.msra.mxu0 %v715
      %721 = vmatprep.subr.bf16.mxu0 0
      %722 = vmatpush1.bf16.msra.mxu0 0
      %723 = vmatprep.subr.bf16.mxu0 0
      %724 = vmatpush1.bf16.msra.mxu0 0
      %725 = vmatprep.subr.bf16.mxu0 0
      %726 = vmatpush1.bf16.msra.mxu0 0
      %727 = vmatprep.subr.bf16.mxu0 0
      %728 = vmatpush1.bf16.msra.mxu0 0
      %729 = vmatprep.subr.bf16.mxu0 0
      %730 = vmatpush1.bf16.msra.mxu0 0
      %731 = vmatprep.subr.bf16.mxu0 0
      %732 = vmatpush1.bf16.msra.mxu0 0
      %733 = vmatprep.subr.bf16.mxu0 0
      %734 = vmatpush1.bf16.msra.mxu0 0
      %735 = vmatprep.subr.bf16.mxu0 0
      %736 = vmatpush1.bf16.msra.mxu0 0
      %737 = vmatprep.subr.bf16.mxu0 0
      %738 = vmatpush1.bf16.msra.mxu0 0
      %739 = vmatprep.subr.bf16.mxu0 0
      %740 = vmatpush1.bf16.msra.mxu0 0
      %741 = vmatprep.subr.bf16.mxu0 0
      %742 = vmatpush1.bf16.msra.mxu0 0
      %743 = vmatprep.subr.bf16.mxu0 0
      %744 = vmatpush1.bf16.msra.mxu0 0
      %745 = vmatprep.subr.bf16.mxu0 0
      %746 = vmatpush1.bf16.msra.mxu0 0
      %747 = vmatprep.subr.bf16.mxu0 0
      %748 = vmatpush1.bf16.msra.mxu0 0
      %749 = vmatprep.mubr.bf16.mxu0 0
      %750 = vmatmul.mubr.bf16.gmra.mrb[0].mxu0 %v708
      %v751 = vpop.f32.mrb[0].mxu0
      %v752 = vadd.f32 0.0, %v751
      %v753 = vpop.f32.mrb[0].mxu0
      %v754 = vpop.f32.mrb[0].mxu0
      %v755 = vadd.f32 0.0, %v754
      %v756 = vpop.f32.mrb[0].mxu0
      %757 = vmatprep.mubr.bf16.mxu0 0
      %758 = vmatmul.mubr.bf16.gmra.mrb[0].mxu0 %v711
      %v759 = vpop.f32.mrb[0].mxu0
      %v760 = vadd.f32 0.0, %v759
      %v761 = vpop.f32.mrb[0].mxu0
      %v762 = vpop.f32.mrb[0].mxu0
      %v763 = vpop.f32.mrb[0].mxu0
      %764 = vdwg.mxu0
      %v765 = vpack.c.bf16 %v755, %v752
      %v766 = vpack.c.bf16 %v760, %v760
      %v767 = vld [vmem:[%s5] sm:$0xf]
      %768 = vrot.lane.b32.xlu0 %v590, 120
      %v769 = vpop.permute.xlu0 %768
      %770 = vrot.lane.b32.xlu0 %v591, 120
      %v771 = vpop.permute.xlu0 %770
      %772 = vrot.lane.b32.xlu0 %v590, 88
      %v773 = vpop.permute.xlu0 %772
      %774 = vrot.lane.b32.xlu0 %v591, 88
      %v775 = vpop.permute.xlu0 %774
      %v777 = vsel %vm598, %v769, 0
      %v780 = vsel %vm598, %v771, 0
      %v783 = vsel %vm598, %v773, 0
      %v786 = vsel %vm598, %v775, 0
      %788 = vmatprep.subr.bf16.mxu0 0
      %789 = vmatpush1.bf16.xpose.msra.mxu0 %v783
      %790 = vmatprep.subr.bf16.mxu0 0
      %791 = vmatpush1.bf16.xpose.msra.mxu0 %v786
      %792 = vmatprep.subr.bf16.mxu0 0
      %793 = vmatpush1.bf16.xpose.msra.mxu0 0
      %794 = vmatprep.subr.bf16.mxu0 0
      %795 = vmatpush1.bf16.xpose.msra.mxu0 0
      %796 = vmatprep.subr.bf16.mxu0 0
      %797 = vmatpush1.bf16.xpose.msra.mxu0 0
      %798 = vmatprep.subr.bf16.mxu0 0
      %799 = vmatpush1.bf16.xpose.msra.mxu0 0
      %800 = vmatprep.subr.bf16.mxu0 0
      %801 = vmatpush1.bf16.xpose.msra.mxu0 0
      %802 = vmatprep.subr.bf16.mxu0 0
      %803 = vmatpush1.bf16.xpose.msra.mxu0 0
      %804 = vmatprep.subr.bf16.mxu0 0
      %805 = vmatpush1.bf16.xpose.msra.mxu0 0
      %806 = vmatprep.subr.bf16.mxu0 0
      %807 = vmatpush1.bf16.xpose.msra.mxu0 0
      %808 = vmatprep.subr.bf16.mxu0 0
      %809 = vmatpush1.bf16.xpose.msra.mxu0 0
      %810 = vmatprep.subr.bf16.mxu0 0
      %811 = vmatpush1.bf16.xpose.msra.mxu0 0
      %812 = vmatprep.subr.bf16.mxu0 0
      %813 = vmatpush1.bf16.xpose.msra.mxu0 0
      %814 = vmatprep.subr.bf16.mxu0 0
      %815 = vmatpush1.bf16.xpose.msra.mxu0 0
      %816 = vmatprep.subr.bf16.mxu0 0
      %817 = vmatpush1.bf16.xpose.msra.mxu0 0
      %818 = vmatprep.subr.bf16.mxu0 0
      %819 = vmatpush1.bf16.xpose.msra.mxu0 0
      %820 = vmatprep.mubr.bf16.mxu0 0
      %821 = vmatmul.mubr.bf16.gmra.mrb[0].mxu0 %v777
      %v822 = vpop.f32.mrb[0].mxu0
      %v823 = vadd.f32 0.0, %v822
      %v824 = vpop.f32.mrb[0].mxu0
      %v825 = vpop.f32.mrb[0].mxu0
      %v826 = vadd.f32 0.0, %v825
      %v827 = vpop.f32.mrb[0].mxu0
      %828 = vmatprep.mubr.bf16.mxu0 0
      %829 = vmatmul.mubr.bf16.gmra.mrb[0].mxu0 %v780
      %v830 = vpop.f32.mrb[0].mxu0
      %v831 = vadd.f32 0.0, %v830
      %v832 = vpop.f32.mrb[0].mxu0
      %v833 = vpop.f32.mrb[0].mxu0
      %v834 = vpop.f32.mrb[0].mxu0
      %835 = vdwg.mxu0
      %v836 = vmul.f32 %v823, 0.35355338
      %v837 = vmul.f32 %v826, 0.35355338
      %v838 = vmul.f32 %v831, 0.35355338
      %v839 = vsel %vm662, %v836, -1e+30
      %v840 = vsel %vm662, %v837, -1e+30
      %v841 = vsel %vm662, %v838, -1e+30
      %v842 = vsel %vm666, %v839, -inf
      %843 = vmax.xlane.f32.xlu0 %v842
      %v844 = vpop.xlane.xlu0 %843
      %v845 = vsel %vm666, %v840, -inf
      %846 = vmax.xlane.f32.xlu0 %v845
      %v847 = vpop.xlane.xlu0 %846
      %v848 = vsel %vm666, %v841, -inf
      %849 = vmax.xlane.f32.xlu0 %v848
      %v850 = vpop.xlane.xlu0 %849
      %v851 = vsub.f32 %v839, %v844
      %v852 = vsub.f32 %v840, %v847
      %v853 = vsub.f32 %v841, %v850
      %v854 = vmul.f32 %v851, 1.442695
      %v855 = vpow.pop %v854
      %v856 = vmul.f32 %v852, 1.442695
      %v857 = vpow.pop %v856
      %v858 = vmul.f32 %v853, 1.442695
      %v859 = vpow.pop %v858
      %v860 = vsel %vm666, %v855, 0.0
      %861 = vadd.xlane.f32.xlu0 %v860
      %v862 = vpop.xlane.xlu0 %861
      %v863 = vsel %vm666, %v857, 0.0
      %864 = vadd.xlane.f32.xlu0 %v863
      %v865 = vpop.xlane.xlu0 %864
      %v866 = vsel %vm666, %v859, 0.0
      %867 = vadd.xlane.f32.xlu0 %v866
      %v868 = vpop.xlane.xlu0 %867
      %v869 = vrcp.pop %v862
      %v870 = vrcp.pop %v865
      %v871 = vrcp.pop %v868
      %v872 = vmul.f32 %v855, %v869
      %v873 = vmul.f32 %v857, %v870
      %v874 = vmul.f32 %v859, %v871
      %v875 = vpack.c.bf16 %v873, %v872
      %v876 = vpack.c.bf16 %v874, %v874
      %877 = vrot.lane.b32.xlu0 %v590, 56
      %v878 = vpop.permute.xlu0 %877
      %879 = vrot.lane.b32.xlu0 %v591, 56
      %v880 = vpop.permute.xlu0 %879
      %v883 = vsel %vm666, %v875, 0
      %v886 = vsel %vm666, %v876, 0
      %v889 = vsel %vm713, %v880, 0
      %891 = vmatprep.subr.bf16.mxu0 0
      %892 = vmatpush1.bf16.msra.mxu0 %v878
      %893 = vmatprep.subr.bf16.mxu0 0
      %894 = vmatpush1.bf16.msra.mxu0 %v889
      %895 = vmatprep.subr.bf16.mxu0 0
      %896 = vmatpush1.bf16.msra.mxu0 0
      %897 = vmatprep.subr.bf16.mxu0 0
      %898 = vmatpush1.bf16.msra.mxu0 0
      %899 = vmatprep.subr.bf16.mxu0 0
      %900 = vmatpush1.bf16.msra.mxu0 0
      %901 = vmatprep.subr.bf16.mxu0 0
      %902 = vmatpush1.bf16.msra.mxu0 0
      %903 = vmatprep.subr.bf16.mxu0 0
      %904 = vmatpush1.bf16.msra.mxu0 0
      %905 = vmatprep.subr.bf16.mxu0 0
      %906 = vmatpush1.bf16.msra.mxu0 0
      %907 = vmatprep.subr.bf16.mxu0 0
      %908 = vmatpush1.bf16.msra.mxu0 0
      %909 = vmatprep.subr.bf16.mxu0 0
      %910 = vmatpush1.bf16.msra.mxu0 0
      %911 = vmatprep.subr.bf16.mxu0 0
      %912 = vmatpush1.bf16.msra.mxu0 0
      %913 = vmatprep.subr.bf16.mxu0 0
      %914 = vmatpush1.bf16.msra.mxu0 0
      %915 = vmatprep.subr.bf16.mxu0 0
      %916 = vmatpush1.bf16.msra.mxu0 0
      %917 = vmatprep.subr.bf16.mxu0 0
      %918 = vmatpush1.bf16.msra.mxu0 0
      %919 = vmatprep.subr.bf16.mxu0 0
      %920 = vmatpush1.bf16.msra.mxu0 0
      %921 = vmatprep.subr.bf16.mxu0 0
      %922 = vmatpush1.bf16.msra.mxu0 0
      %923 = vmatprep.mubr.bf16.mxu0 0
      %924 = vmatmul.mubr.bf16.gmra.mrb[0].mxu0 %v883
      %v925 = vpop.f32.mrb[0].mxu0
      %v926 = vadd.f32 0.0, %v925
      %v927 = vpop.f32.mrb[0].mxu0
      %v928 = vpop.f32.mrb[0].mxu0
      %v929 = vadd.f32 0.0, %v928
      %v930 = vpop.f32.mrb[0].mxu0
      %931 = vmatprep.mubr.bf16.mxu0 0
      %932 = vmatmul.mubr.bf16.gmra.mrb[0].mxu0 %v886
      %v933 = vpop.f32.mrb[0].mxu0
      %v934 = vadd.f32 0.0, %v933
      %v935 = vpop.f32.mrb[0].mxu0
      %v936 = vpop.f32.mrb[0].mxu0
      %v937 = vpop.f32.mrb[0].mxu0
      %938 = vdwg.mxu0
      %v939 = vpack.c.bf16 %v929, %v926
      %v940 = vpack.c.bf16 %v934, %v934
      %v941 = vld [vmem:[%s5 + $0x4] sm:$0xf]
      %v943 = vsel %vm598, %v939, 0
      %v946 = vsel %vm598, %v940, 0
      %v949 = vsel %vm713, %v941, 0
      %951 = vmatprep.subr.bf16.mxu0 0
      %952 = vmatpush1.bf16.msra.mxu0 %v949
      %953 = vmatprep.subr.bf16.mxu0 0
      %954 = vmatpush1.bf16.msra.mxu0 0
      %955 = vmatprep.subr.bf16.mxu0 0
      %956 = vmatpush1.bf16.msra.mxu0 0
      %957 = vmatprep.subr.bf16.mxu0 0
      %958 = vmatpush1.bf16.msra.mxu0 0
      %959 = vmatprep.subr.bf16.mxu0 0
      %960 = vmatpush1.bf16.msra.mxu0 0
      %961 = vmatprep.subr.bf16.mxu0 0
      %962 = vmatpush1.bf16.msra.mxu0 0
      %963 = vmatprep.subr.bf16.mxu0 0
      %964 = vmatpush1.bf16.msra.mxu0 0
      %965 = vmatprep.subr.bf16.mxu0 0
      %966 = vmatpush1.bf16.msra.mxu0 0
      %967 = vmatprep.subr.bf16.mxu0 0
      %968 = vmatpush1.bf16.msra.mxu0 0
      %969 = vmatprep.subr.bf16.mxu0 0
      %970 = vmatpush1.bf16.msra.mxu0 0
      %971 = vmatprep.subr.bf16.mxu0 0
      %972 = vmatpush1.bf16.msra.mxu0 0
      %973 = vmatprep.subr.bf16.mxu0 0
      %974 = vmatpush1.bf16.msra.mxu0 0
      %975 = vmatprep.subr.bf16.mxu0 0
      %976 = vmatpush1.bf16.msra.mxu0 0
      %977 = vmatprep.subr.bf16.mxu0 0
      %978 = vmatpush1.bf16.msra.mxu0 0
      %979 = vmatprep.subr.bf16.mxu0 0
      %980 = vmatpush1.bf16.msra.mxu0 0
      %981 = vmatprep.subr.bf16.mxu0 0
      %982 = vmatpush1.bf16.msra.mxu0 0
      %983 = vmatprep.mubr.bf16.mxu0 0
      %984 = vmatmul.mubr.bf16.gmra.mrb[0].mxu0 %v943
      %v985 = vpop.f32.mrb[0].mxu0
      %v986 = vadd.f32 0.0, %v985
      %v987 = vpop.f32.mrb[0].mxu0
      %v988 = vpop.f32.mrb[0].mxu0
      %v989 = vadd.f32 0.0, %v988
      %v990 = vpop.f32.mrb[0].mxu0
      %991 = vmatprep.mubr.bf16.mxu0 0
      %992 = vmatmul.mubr.bf16.gmra.mrb[0].mxu0 %v946
      %v993 = vpop.f32.mrb[0].mxu0
      %v994 = vadd.f32 0.0, %v993
      %v995 = vpop.f32.mrb[0].mxu0
      %v996 = vpop.f32.mrb[0].mxu0
      %v997 = vpop.f32.mrb[0].mxu0
      %998 = vdwg.mxu0
      %v1000 = vsel %vm598, %v765, 0
      %v1003 = vsel %vm598, %v766, 0
      %v1006 = vsel %vm713, %v767, 0
      %1008 = vmatprep.subr.bf16.mxu0 0
      %1009 = vmatpush1.bf16.msra.mxu0 %v1006
      %1010 = vmatprep.subr.bf16.mxu0 0
      %1011 = vmatpush1.bf16.msra.mxu0 0
      %1012 = vmatprep.subr.bf16.mxu0 0
      %1013 = vmatpush1.bf16.msra.mxu0 0
      %1014 = vmatprep.subr.bf16.mxu0 0
      %1015 = vmatpush1.bf16.msra.mxu0 0
      %1016 = vmatprep.subr.bf16.mxu0 0
      %1017 = vmatpush1.bf16.msra.mxu0 0
      %1018 = vmatprep.subr.bf16.mxu0 0
      %1019 = vmatpush1.bf16.msra.mxu0 0
      %1020 = vmatprep.subr.bf16.mxu0 0
      %1021 = vmatpush1.bf16.msra.mxu0 0
      %1022 = vmatprep.subr.bf16.mxu0 0
      %1023 = vmatpush1.bf16.msra.mxu0 0
      %1024 = vmatprep.subr.bf16.mxu0 0
      %1025 = vmatpush1.bf16.msra.mxu0 0
      %1026 = vmatprep.subr.bf16.mxu0 0
      %1027 = vmatpush1.bf16.msra.mxu0 0
      %1028 = vmatprep.subr.bf16.mxu0 0
      %1029 = vmatpush1.bf16.msra.mxu0 0
      %1030 = vmatprep.subr.bf16.mxu0 0
      %1031 = vmatpush1.bf16.msra.mxu0 0
      %1032 = vmatprep.subr.bf16.mxu0 0
      %1033 = vmatpush1.bf16.msra.mxu0 0
      %1034 = vmatprep.subr.bf16.mxu0 0
      %1035 = vmatpush1.bf16.msra.mxu0 0
      %1036 = vmatprep.subr.bf16.mxu0 0
      %1037 = vmatpush1.bf16.msra.mxu0 0
      %1038 = vmatprep.subr.bf16.mxu0 0
      %1039 = vmatpush1.bf16.msra.mxu0 0
      %1040 = vmatprep.mubr.bf16.mxu0 0
      %1041 = vmatmul.mubr.bf16.gmra.mrb[0].mxu0 %v1000
      %v1042 = vpop.f32.mrb[0].mxu0
      %v1043 = vadd.f32 %v986, %v1042
      %v1044 = vpop.f32.mrb[0].mxu0
      %v1045 = vpop.f32.mrb[0].mxu0
      %v1046 = vadd.f32 %v989, %v1045
      %v1047 = vpop.f32.mrb[0].mxu0
      %1048 = vmatprep.mubr.bf16.mxu0 0
      %1049 = vmatmul.mubr.bf16.gmra.mrb[0].mxu0 %v1003
      %v1050 = vpop.f32.mrb[0].mxu0
      %v1051 = vadd.f32 %v994, %v1050
      %v1052 = vpop.f32.mrb[0].mxu0
      %v1053 = vpop.f32.mrb[0].mxu0
      %v1054 = vpop.f32.mrb[0].mxu0
      %1055 = vdwg.mxu0
      %1056 = vrot.lane.b32.xlu0 %v590, 112
      %v1057 = vpop.permute.xlu0 %1056
      %1058 = vrot.lane.b32.xlu0 %v591, 112
      %v1059 = vpop.permute.xlu0 %1058
      %1060 = vrot.lane.b32.xlu0 %v590, 80
      %v1061 = vpop.permute.xlu0 %1060
      %1062 = vrot.lane.b32.xlu0 %v591, 80
      %v1063 = vpop.permute.xlu0 %1062
      %v1065 = vsel %vm598, %v1057, 0
      %v1068 = vsel %vm598, %v1059, 0
      %v1071 = vsel %vm598, %v1061, 0
      %v1074 = vsel %vm598, %v1063, 0
      %1076 = vmatprep.subr.bf16.mxu0 0
      %1077 = vmatpush1.bf16.xpose.msra.mxu0 %v1071
      %1078 = vmatprep.subr.bf16.mxu0 0
      %1079 = vmatpush1.bf16.xpose.msra.mxu0 %v1074
      %1080 = vmatprep.subr.bf16.mxu0 0
      %1081 = vmatpush1.bf16.xpose.msra.mxu0 0
      %1082 = vmatprep.subr.bf16.mxu0 0
      %1083 = vmatpush1.bf16.xpose.msra.mxu0 0
      %1084 = vmatprep.subr.bf16.mxu0 0
      %1085 = vmatpush1.bf16.xpose.msra.mxu0 0
      %1086 = vmatprep.subr.bf16.mxu0 0
      %1087 = vmatpush1.bf16.xpose.msra.mxu0 0
      %1088 = vmatprep.subr.bf16.mxu0 0
      %1089 = vmatpush1.bf16.xpose.msra.mxu0 0
      %1090 = vmatprep.subr.bf16.mxu0 0
      %1091 = vmatpush1.bf16.xpose.msra.mxu0 0
      %1092 = vmatprep.subr.bf16.mxu0 0
      %1093 = vmatpush1.bf16.xpose.msra.mxu0 0
      %1094 = vmatprep.subr.bf16.mxu0 0
      %1095 = vmatpush1.bf16.xpose.msra.mxu0 0
      %1096 = vmatprep.subr.bf16.mxu0 0
      %1097 = vmatpush1.bf16.xpose.msra.mxu0 0
      %1098 = vmatprep.subr.bf16.mxu0 0
      %1099 = vmatpush1.bf16.xpose.msra.mxu0 0
      %1100 = vmatprep.subr.bf16.mxu0 0
      %1101 = vmatpush1.bf16.xpose.msra.mxu0 0
      %1102 = vmatprep.subr.bf16.mxu0 0
      %1103 = vmatpush1.bf16.xpose.msra.mxu0 0
      %1104 = vmatprep.subr.bf16.mxu0 0
      %1105 = vmatpush1.bf16.xpose.msra.mxu0 0
      %1106 = vmatprep.subr.bf16.mxu0 0
      %1107 = vmatpush1.bf16.xpose.msra.mxu0 0
      %1108 = vmatprep.mubr.bf16.mxu0 0
      %1109 = vmatmul.mubr.bf16.gmra.mrb[0].mxu0 %v1065
      %v1110 = vpop.f32.mrb[0].mxu0
      %v1111 = vadd.f32 0.0, %v1110
      %v1112 = vpop.f32.mrb[0].mxu0
      %v1113 = vpop.f32.mrb[0].mxu0
      %v1114 = vadd.f32 0.0, %v1113
      %v1115 = vpop.f32.mrb[0].mxu0
      %1116 = vmatprep.mubr.bf16.mxu0 0
      %1117 = vmatmul.mubr.bf16.gmra.mrb[0].mxu0 %v1068
      %v1118 = vpop.f32.mrb[0].mxu0
      %v1119 = vadd.f32 0.0, %v1118
      %v1120 = vpop.f32.mrb[0].mxu0
      %v1121 = vpop.f32.mrb[0].mxu0
      %v1122 = vpop.f32.mrb[0].mxu0
      %1123 = vdwg.mxu0
      %v1124 = vmul.f32 %v1111, 0.35355338
      %v1125 = vmul.f32 %v1114, 0.35355338
      %v1126 = vmul.f32 %v1119, 0.35355338
      %v1127 = vsel %vm662, %v1124, -1e+30
      %v1128 = vsel %vm662, %v1125, -1e+30
      %v1129 = vsel %vm662, %v1126, -1e+30
      %v1130 = vsel %vm666, %v1127, -inf
      %1131 = vmax.xlane.f32.xlu0 %v1130
      %v1132 = vpop.xlane.xlu0 %1131
      %v1133 = vsel %vm666, %v1128, -inf
      %1134 = vmax.xlane.f32.xlu0 %v1133
      %v1135 = vpop.xlane.xlu0 %1134
      %v1136 = vsel %vm666, %v1129, -inf
      %1137 = vmax.xlane.f32.xlu0 %v1136
      %v1138 = vpop.xlane.xlu0 %1137
      %v1139 = vsub.f32 %v1127, %v1132
      %v1140 = vsub.f32 %v1128, %v1135
      %v1141 = vsub.f32 %v1129, %v1138
      %v1142 = vmul.f32 %v1139, 1.442695
      %v1143 = vpow.pop %v1142
      %v1144 = vmul.f32 %v1140, 1.442695
      %v1145 = vpow.pop %v1144
      %v1146 = vmul.f32 %v1141, 1.442695
      %v1147 = vpow.pop %v1146
      %v1148 = vsel %vm666, %v1143, 0.0
      %1149 = vadd.xlane.f32.xlu0 %v1148
      %v1150 = vpop.xlane.xlu0 %1149
      %v1151 = vsel %vm666, %v1145, 0.0
      %1152 = vadd.xlane.f32.xlu0 %v1151
      %v1153 = vpop.xlane.xlu0 %1152
      %v1154 = vsel %vm666, %v1147, 0.0
      %1155 = vadd.xlane.f32.xlu0 %v1154
      %v1156 = vpop.xlane.xlu0 %1155
      %v1157 = vrcp.pop %v1150
      %v1158 = vrcp.pop %v1153
      %v1159 = vrcp.pop %v1156
      %v1160 = vmul.f32 %v1143, %v1157
      %v1161 = vmul.f32 %v1145, %v1158
      %v1162 = vmul.f32 %v1147, %v1159
      %v1163 = vpack.c.bf16 %v1161, %v1160
      %v1164 = vpack.c.bf16 %v1162, %v1162
      %1165 = vrot.lane.b32.xlu0 %v590, 48
      %v1166 = vpop.permute.xlu0 %1165
      %1167 = vrot.lane.b32.xlu0 %v591, 48
      %v1168 = vpop.permute.xlu0 %1167
      %v1171 = vsel %vm666, %v1163, 0
      %v1174 = vsel %vm666, %v1164, 0
      %v1177 = vsel %vm713, %v1168, 0
      %1179 = vmatprep.subr.bf16.mxu0 0
      %1180 = vmatpush1.bf16.msra.mxu0 %v1166
      %1181 = vmatprep.subr.bf16.mxu0 0
      %1182 = vmatpush1.bf16.msra.mxu0 %v1177
      %1183 = vmatprep.subr.bf16.mxu0 0
      %1184 = vmatpush1.bf16.msra.mxu0 0
      %1185 = vmatprep.subr.bf16.mxu0 0
      %1186 = vmatpush1.bf16.msra.mxu0 0
      %1187 = vmatprep.subr.bf16.mxu0 0
      %1188 = vmatpush1.bf16.msra.mxu0 0
      %1189 = vmatprep.subr.bf16.mxu0 0
      %1190 = vmatpush1.bf16.msra.mxu0 0
      %1191 = vmatprep.subr.bf16.mxu0 0
      %1192 = vmatpush1.bf16.msra.mxu0 0
      %1193 = vmatprep.subr.bf16.mxu0 0
      %1194 = vmatpush1.bf16.msra.mxu0 0
      %1195 = vmatprep.subr.bf16.mxu0 0
      %1196 = vmatpush1.bf16.msra.mxu0 0
      %1197 = vmatprep.subr.bf16.mxu0 0
      %1198 = vmatpush1.bf16.msra.mxu0 0
      %1199 = vmatprep.subr.bf16.mxu0 0
      %1200 = vmatpush1.bf16.msra.mxu0 0
      %1201 = vmatprep.subr.bf16.mxu0 0
      %1202 = vmatpush1.bf16.msra.mxu0 0
      %1203 = vmatprep.subr.bf16.mxu0 0
      %1204 = vmatpush1.bf16.msra.mxu0 0
      %1205 = vmatprep.subr.bf16.mxu0 0
      %1206 = vmatpush1.bf16.msra.mxu0 0
      %1207 = vmatprep.subr.bf16.mxu0 0
      %1208 = vmatpush1.bf16.msra.mxu0 0
      %1209 = vmatprep.subr.bf16.mxu0 0
      %1210 = vmatpush1.bf16.msra.mxu0 0
      %1211 = vmatprep.mubr.bf16.mxu0 0
      %1212 = vmatmul.mubr.bf16.gmra.mrb[0].mxu0 %v1171
      %v1213 = vpop.f32.mrb[0].mxu0
      %v1214 = vadd.f32 0.0, %v1213
      %v1215 = vpop.f32.mrb[0].mxu0
      %v1216 = vpop.f32.mrb[0].mxu0
      %v1217 = vadd.f32 0.0, %v1216
      %v1218 = vpop.f32.mrb[0].mxu0
      %1219 = vmatprep.mubr.bf16.mxu0 0
      %1220 = vmatmul.mubr.bf16.gmra.mrb[0].mxu0 %v1174
      %v1221 = vpop.f32.mrb[0].mxu0
      %v1222 = vadd.f32 0.0, %v1221
      %v1223 = vpop.f32.mrb[0].mxu0
      %v1224 = vpop.f32.mrb[0].mxu0
      %v1225 = vpop.f32.mrb[0].mxu0
      %1226 = vdwg.mxu0
      %v1227 = vpack.c.bf16 %v1217, %v1214
      %v1228 = vpack.c.bf16 %v1222, %v1222
      %v1229 = vld [vmem:[%s5 + $0x8] sm:$0xf]
      %v1231 = vsel %vm598, %v1227, 0
      %v1234 = vsel %vm598, %v1228, 0
      %v1237 = vsel %vm713, %v1229, 0
      %1239 = vmatprep.subr.bf16.mxu0 0
      %1240 = vmatpush1.bf16.msra.mxu0 %v1237
      %1241 = vmatprep.subr.bf16.mxu0 0
      %1242 = vmatpush1.bf16.msra.mxu0 0
      %1243 = vmatprep.subr.bf16.mxu0 0
      %1244 = vmatpush1.bf16.msra.mxu0 0
      %1245 = vmatprep.subr.bf16.mxu0 0
      %1246 = vmatpush1.bf16.msra.mxu0 0
      %1247 = vmatprep.subr.bf16.mxu0 0
      %1248 = vmatpush1.bf16.msra.mxu0 0
      %1249 = vmatprep.subr.bf16.mxu0 0
      %1250 = vmatpush1.bf16.msra.mxu0 0
      %1251 = vmatprep.subr.bf16.mxu0 0
      %1252 = vmatpush1.bf16.msra.mxu0 0
      %1253 = vmatprep.subr.bf16.mxu0 0
      %1254 = vmatpush1.bf16.msra.mxu0 0
      %1255 = vmatprep.subr.bf16.mxu0 0
      %1256 = vmatpush1.bf16.msra.mxu0 0
      %1257 = vmatprep.subr.bf16.mxu0 0
      %1258 = vmatpush1.bf16.msra.mxu0 0
      %1259 = vmatprep.subr.bf16.mxu0 0
      %1260 = vmatpush1.bf16.msra.mxu0 0
      %1261 = vmatprep.subr.bf16.mxu0 0
      %1262 = vmatpush1.bf16.msra.mxu0 0
      %1263 = vmatprep.subr.bf16.mxu0 0
      %1264 = vmatpush1.bf16.msra.mxu0 0
      %1265 = vmatprep.subr.bf16.mxu0 0
      %1266 = vmatpush1.bf16.msra.mxu0 0
      %1267 = vmatprep.subr.bf16.mxu0 0
      %1268 = vmatpush1.bf16.msra.mxu0 0
      %1269 = vmatprep.subr.bf16.mxu0 0
      %1270 = vmatpush1.bf16.msra.mxu0 0
      %1271 = vmatprep.mubr.bf16.mxu0 0
      %1272 = vmatmul.mubr.bf16.gmra.mrb[0].mxu0 %v1231
      %v1273 = vpop.f32.mrb[0].mxu0
      %v1274 = vadd.f32 0.0, %v1273
      %v1275 = vpop.f32.mrb[0].mxu0
      %v1276 = vpop.f32.mrb[0].mxu0
      %v1277 = vadd.f32 0.0, %v1276
      %v1278 = vpop.f32.mrb[0].mxu0
      %1279 = vmatprep.mubr.bf16.mxu0 0
      %1280 = vmatmul.mubr.bf16.gmra.mrb[0].mxu0 %v1234
      %v1281 = vpop.f32.mrb[0].mxu0
      %v1282 = vadd.f32 0.0, %v1281
      %v1283 = vpop.f32.mrb[0].mxu0
      %v1284 = vpop.f32.mrb[0].mxu0
      %v1285 = vpop.f32.mrb[0].mxu0
      %1286 = vdwg.mxu0
      %v1287 = vadd.f32 %v1043, %v1274
      %v1288 = vadd.f32 %v1046, %v1277
      %v1289 = vadd.f32 %v1051, %v1282
      %1290 = vrot.lane.b32.xlu0 %v590, 104
      %v1291 = vpop.permute.xlu0 %1290
      %1292 = vrot.lane.b32.xlu0 %v591, 104
      %v1293 = vpop.permute.xlu0 %1292
      %1294 = vrot.lane.b32.xlu0 %v590, 72
      %v1295 = vpop.permute.xlu0 %1294
      %1296 = vrot.lane.b32.xlu0 %v591, 72
      %v1297 = vpop.permute.xlu0 %1296
      %v1299 = vsel %vm598, %v1291, 0
      %v1302 = vsel %vm598, %v1293, 0
      %v1305 = vsel %vm598, %v1295, 0
      %v1308 = vsel %vm598, %v1297, 0
      %1310 = vmatprep.subr.bf16.mxu0 0
      %1311 = vmatpush1.bf16.xpose.msra.mxu0 %v1305
      %1312 = vmatprep.subr.bf16.mxu0 0
      %1313 = vmatpush1.bf16.xpose.msra.mxu0 %v1308
      %1314 = vmatprep.subr.bf16.mxu0 0
      %1315 = vmatpush1.bf16.xpose.msra.mxu0 0
      %1316 = vmatprep.subr.bf16.mxu0 0
      %1317 = vmatpush1.bf16.xpose.msra.mxu0 0
      %1318 = vmatprep.subr.bf16.mxu0 0
      %1319 = vmatpush1.bf16.xpose.msra.mxu0 0
      %1320 = vmatprep.subr.bf16.mxu0 0
      %1321 = vmatpush1.bf16.xpose.msra.mxu0 0
      %1322 = vmatprep.subr.bf16.mxu0 0
      %1323 = vmatpush1.bf16.xpose.msra.mxu0 0
      %1324 = vmatprep.subr.bf16.mxu0 0
      %1325 = vmatpush1.bf16.xpose.msra.mxu0 0
      %1326 = vmatprep.subr.bf16.mxu0 0
      %1327 = vmatpush1.bf16.xpose.msra.mxu0 0
      %1328 = vmatprep.subr.bf16.mxu0 0
      %1329 = vmatpush1.bf16.xpose.msra.mxu0 0
      %1330 = vmatprep.subr.bf16.mxu0 0
      %1331 = vmatpush1.bf16.xpose.msra.mxu0 0
      %1332 = vmatprep.subr.bf16.mxu0 0
      %1333 = vmatpush1.bf16.xpose.msra.mxu0 0
      %1334 = vmatprep.subr.bf16.mxu0 0
      %1335 = vmatpush1.bf16.xpose.msra.mxu0 0
      %1336 = vmatprep.subr.bf16.mxu0 0
      %1337 = vmatpush1.bf16.xpose.msra.mxu0 0
      %1338 = vmatprep.subr.bf16.mxu0 0
      %1339 = vmatpush1.bf16.xpose.msra.mxu0 0
      %1340 = vmatprep.subr.bf16.mxu0 0
      %1341 = vmatpush1.bf16.xpose.msra.mxu0 0
      %1342 = vmatprep.mubr.bf16.mxu0 0
      %1343 = vmatmul.mubr.bf16.gmra.mrb[0].mxu0 %v1299
      %v1344 = vpop.f32.mrb[0].mxu0
      %v1345 = vadd.f32 0.0, %v1344
      %v1346 = vpop.f32.mrb[0].mxu0
      %v1347 = vpop.f32.mrb[0].mxu0
      %v1348 = vadd.f32 0.0, %v1347
      %v1349 = vpop.f32.mrb[0].mxu0
      %1350 = vmatprep.mubr.bf16.mxu0 0
      %1351 = vmatmul.mubr.bf16.gmra.mrb[0].mxu0 %v1302
      %v1352 = vpop.f32.mrb[0].mxu0
      %v1353 = vadd.f32 0.0, %v1352
      %v1354 = vpop.f32.mrb[0].mxu0
      %v1355 = vpop.f32.mrb[0].mxu0
      %v1356 = vpop.f32.mrb[0].mxu0
      %1357 = vdwg.mxu0
      %v1358 = vmul.f32 %v1345, 0.35355338
      %v1359 = vmul.f32 %v1348, 0.35355338
      %v1360 = vmul.f32 %v1353, 0.35355338
      %v1361 = vsel %vm662, %v1358, -1e+30
      %v1362 = vsel %vm662, %v1359, -1e+30
      %v1363 = vsel %vm662, %v1360, -1e+30
      %v1364 = vsel %vm666, %v1361, -inf
      %1365 = vmax.xlane.f32.xlu0 %v1364
      %v1366 = vpop.xlane.xlu0 %1365
      %v1367 = vsel %vm666, %v1362, -inf
      %1368 = vmax.xlane.f32.xlu0 %v1367
      %v1369 = vpop.xlane.xlu0 %1368
      %v1370 = vsel %vm666, %v1363, -inf
      %1371 = vmax.xlane.f32.xlu0 %v1370
      %v1372 = vpop.xlane.xlu0 %1371
      %v1373 = vsub.f32 %v1361, %v1366
      %v1374 = vsub.f32 %v1362, %v1369
      %v1375 = vsub.f32 %v1363, %v1372
      %v1376 = vmul.f32 %v1373, 1.442695
      %v1377 = vpow.pop %v1376
      %v1378 = vmul.f32 %v1374, 1.442695
      %v1379 = vpow.pop %v1378
      %v1380 = vmul.f32 %v1375, 1.442695
      %v1381 = vpow.pop %v1380
      %v1382 = vsel %vm666, %v1377, 0.0
      %1383 = vadd.xlane.f32.xlu0 %v1382
      %v1384 = vpop.xlane.xlu0 %1383
      %v1385 = vsel %vm666, %v1379, 0.0
      %1386 = vadd.xlane.f32.xlu0 %v1385
      %v1387 = vpop.xlane.xlu0 %1386
      %v1388 = vsel %vm666, %v1381, 0.0
      %1389 = vadd.xlane.f32.xlu0 %v1388
      %v1390 = vpop.xlane.xlu0 %1389
      %v1391 = vrcp.pop %v1384
      %v1392 = vrcp.pop %v1387
      %v1393 = vrcp.pop %v1390
      %v1394 = vmul.f32 %v1377, %v1391
      %v1395 = vmul.f32 %v1379, %v1392
      %v1396 = vmul.f32 %v1381, %v1393
      %v1397 = vpack.c.bf16 %v1395, %v1394
      %v1398 = vpack.c.bf16 %v1396, %v1396
      %1399 = vrot.lane.b32.xlu0 %v590, 40
      %v1400 = vpop.permute.xlu0 %1399
      %1401 = vrot.lane.b32.xlu0 %v591, 40
      %v1402 = vpop.permute.xlu0 %1401
      %v1405 = vsel %vm666, %v1397, 0
      %v1408 = vsel %vm666, %v1398, 0
      %v1411 = vsel %vm713, %v1402, 0
      %1413 = vmatprep.subr.bf16.mxu0 0
      %1414 = vmatpush1.bf16.msra.mxu0 %v1400
      %1415 = vmatprep.subr.bf16.mxu0 0
      %1416 = vmatpush1.bf16.msra.mxu0 %v1411
      %1417 = vmatprep.subr.bf16.mxu0 0
      %1418 = vmatpush1.bf16.msra.mxu0 0
      %1419 = vmatprep.subr.bf16.mxu0 0
      %1420 = vmatpush1.bf16.msra.mxu0 0
      %1421 = vmatprep.subr.bf16.mxu0 0
      %1422 = vmatpush1.bf16.msra.mxu0 0
      %1423 = vmatprep.subr.bf16.mxu0 0
      %1424 = vmatpush1.bf16.msra.mxu0 0
      %1425 = vmatprep.subr.bf16.mxu0 0
      %1426 = vmatpush1.bf16.msra.mxu0 0
      %1427 = vmatprep.subr.bf16.mxu0 0
      %1428 = vmatpush1.bf16.msra.mxu0 0
      %1429 = vmatprep.subr.bf16.mxu0 0
      %1430 = vmatpush1.bf16.msra.mxu0 0
      %1431 = vmatprep.subr.bf16.mxu0 0
      %1432 = vmatpush1.bf16.msra.mxu0 0
      %1433 = vmatprep.subr.bf16.mxu0 0
      %1434 = vmatpush1.bf16.msra.mxu0 0
      %1435 = vmatprep.subr.bf16.mxu0 0
      %1436 = vmatpush1.bf16.msra.mxu0 0
      %1437 = vmatprep.subr.bf16.mxu0 0
      %1438 = vmatpush1.bf16.msra.mxu0 0
      %1439 = vmatprep.subr.bf16.mxu0 0
      %1440 = vmatpush1.bf16.msra.mxu0 0
      %1441 = vmatprep.subr.bf16.mxu0 0
      %1442 = vmatpush1.bf16.msra.mxu0 0
      %1443 = vmatprep.subr.bf16.mxu0 0
      %1444 = vmatpush1.bf16.msra.mxu0 0
      %1445 = vmatprep.mubr.bf16.mxu0 0
      %1446 = vmatmul.mubr.bf16.gmra.mrb[0].mxu0 %v1405
      %v1447 = vpop.f32.mrb[0].mxu0
      %v1448 = vadd.f32 0.0, %v1447
      %v1449 = vpop.f32.mrb[0].mxu0
      %v1450 = vpop.f32.mrb[0].mxu0
      %v1451 = vadd.f32 0.0, %v1450
      %v1452 = vpop.f32.mrb[0].mxu0
      %1453 = vmatprep.mubr.bf16.mxu0 0
      %1454 = vmatmul.mubr.bf16.gmra.mrb[0].mxu0 %v1408
      %v1455 = vpop.f32.mrb[0].mxu0
      %v1456 = vadd.f32 0.0, %v1455
      %v1457 = vpop.f32.mrb[0].mxu0
      %v1458 = vpop.f32.mrb[0].mxu0
      %v1459 = vpop.f32.mrb[0].mxu0
      %1460 = vdwg.mxu0
      %v1461 = vpack.c.bf16 %v1451, %v1448
      %v1462 = vpack.c.bf16 %v1456, %v1456
      %v1463 = vld [vmem:[%s5 + $0xc] sm:$0xf]
      %v1465 = vsel %vm598, %v1461, 0
      %v1468 = vsel %vm598, %v1462, 0
      %v1471 = vsel %vm713, %v1463, 0
      %1473 = vmatprep.subr.bf16.mxu0 0
      %1474 = vmatpush1.bf16.msra.mxu0 %v1471
      %1475 = vmatprep.subr.bf16.mxu0 0
      %1476 = vmatpush1.bf16.msra.mxu0 0
      %1477 = vmatprep.subr.bf16.mxu0 0
      %1478 = vmatpush1.bf16.msra.mxu0 0
      %1479 = vmatprep.subr.bf16.mxu0 0
      %1480 = vmatpush1.bf16.msra.mxu0 0
      %1481 = vmatprep.subr.bf16.mxu0 0
      %1482 = vmatpush1.bf16.msra.mxu0 0
      %1483 = vmatprep.subr.bf16.mxu0 0
      %1484 = vmatpush1.bf16.msra.mxu0 0
      %1485 = vmatprep.subr.bf16.mxu0 0
      %1486 = vmatpush1.bf16.msra.mxu0 0
      %1487 = vmatprep.subr.bf16.mxu0 0
      %1488 = vmatpush1.bf16.msra.mxu0 0
      %1489 = vmatprep.subr.bf16.mxu0 0
      %1490 = vmatpush1.bf16.msra.mxu0 0
      %1491 = vmatprep.subr.bf16.mxu0 0
      %1492 = vmatpush1.bf16.msra.mxu0 0
      %1493 = vmatprep.subr.bf16.mxu0 0
      %1494 = vmatpush1.bf16.msra.mxu0 0
      %1495 = vmatprep.subr.bf16.mxu0 0
      %1496 = vmatpush1.bf16.msra.mxu0 0
      %1497 = vmatprep.subr.bf16.mxu0 0
      %1498 = vmatpush1.bf16.msra.mxu0 0
      %1499 = vmatprep.subr.bf16.mxu0 0
      %1500 = vmatpush1.bf16.msra.mxu0 0
      %1501 = vmatprep.subr.bf16.mxu0 0
      %1502 = vmatpush1.bf16.msra.mxu0 0
      %1503 = vmatprep.subr.bf16.mxu0 0
      %1504 = vmatpush1.bf16.msra.mxu0 0
      %1505 = vmatprep.mubr.bf16.mxu0 0
      %1506 = vmatmul.mubr.bf16.gmra.mrb[0].mxu0 %v1465
      %v1507 = vpop.f32.mrb[0].mxu0
      %v1508 = vadd.f32 0.0, %v1507
      %v1509 = vpop.f32.mrb[0].mxu0
      %v1510 = vpop.f32.mrb[0].mxu0
      %v1511 = vadd.f32 0.0, %v1510
      %v1512 = vpop.f32.mrb[0].mxu0
      %1513 = vmatprep.mubr.bf16.mxu0 0
      %1514 = vmatmul.mubr.bf16.gmra.mrb[0].mxu0 %v1468
      %v1515 = vpop.f32.mrb[0].mxu0
      %v1516 = vadd.f32 0.0, %v1515
      %v1517 = vpop.f32.mrb[0].mxu0
      %v1518 = vpop.f32.mrb[0].mxu0
      %v1519 = vpop.f32.mrb[0].mxu0
      %1520 = vdwg.mxu0
      %v1521 = vadd.f32 %v1287, %v1508
      %v1522 = vadd.f32 %v1288, %v1511
      %v1523 = vadd.f32 %v1289, %v1516
      %v1524 = vld [vmem:[%s6] sm:$0x1]
      %v1526 = vlaneseq
      %v1527 = vshrl.u32 %v1526, 7
      %v1528 = vsub.s32 0, %v1527
      %v1529 = vrot.slane %v1524, %v1528
      %v1531 = vadd.f32 %v1521, %v1529
      %v1532 = vadd.f32 %v1522, %v1529
      %v1533 = vadd.f32 %v1523, %v1529
      %v1534 = vadd.f32 %v1531, %v445
      %v1535 = vadd.f32 %v1532, %v446
      %v1536 = vadd.f32 %v1533, %v447
      %v1537 = vld [vmem:[%s7] sm:$0x1]
      %v1538 = vld [vmem:[%s8] sm:$0x1]
      %v1539 = vsel %vm450, %v1534, 0.0
      %1540 = vadd.xlane.f32.xlu0 %v1539
      %v1541 = vpop.xlane.xlu0 %1540
      %v1542 = vsel %vm450, %v1535, 0.0
      %1543 = vadd.xlane.f32.xlu0 %v1542
      %v1544 = vpop.xlane.xlu0 %1543
      %v1545 = vsel %vm450, %v1536, 0.0
      %1546 = vadd.xlane.f32.xlu0 %v1545
      %v1547 = vpop.xlane.xlu0 %1546
      %v1548 = vmul.f32 %v1541, %v460
      %v1549 = vmul.f32 %v1544, %v460
      %v1550 = vmul.f32 %v1547, %v460
      %v1551 = vsub.f32 %v1534, %v1548
      %v1552 = vsub.f32 %v1535, %v1549
      %v1553 = vsub.f32 %v1536, %v1550
      %v1554 = vmul.f32 %v1551, %v1551
      %v1555 = vmul.f32 %v1552, %v1552
      %v1556 = vmul.f32 %v1553, %v1553
      %v1557 = vsel %vm450, %v1554, 0.0
      %1558 = vadd.xlane.f32.xlu0 %v1557
      %v1559 = vpop.xlane.xlu0 %1558
      %v1560 = vsel %vm450, %v1555, 0.0
      %1561 = vadd.xlane.f32.xlu0 %v1560
      %v1562 = vpop.xlane.xlu0 %1561
      %v1563 = vsel %vm450, %v1556, 0.0
      %1564 = vadd.xlane.f32.xlu0 %v1563
      %v1565 = vpop.xlane.xlu0 %1564
      %v1566 = vmul.f32 %v1559, %v460
      %v1567 = vmul.f32 %v1562, %v460
      %v1568 = vmul.f32 %v1565, %v460
      %v1569 = vadd.f32 %v1566, 1e-12
      %v1570 = vadd.f32 %v1567, 1e-12
      %v1571 = vadd.f32 %v1568, 1e-12
      %v1572 = vrsqrt.pop %v1569
      %v1573 = vrsqrt.pop %v1570
      %v1574 = vrsqrt.pop %v1571
      %v1575 = vmul.f32 %v1551, %v1572
      %v1576 = vmul.f32 %v1552, %v1573
      %v1577 = vmul.f32 %v1553, %v1574
      %v1579 = vlaneseq
      %v1580 = vshrl.u32 %v1579, 7
      %v1581 = vsub.s32 0, %v1580
      %v1582 = vrot.slane %v1537, %v1581
      %v1584 = vmul.f32 %v1575, %v1582
      %v1585 = vmul.f32 %v1576, %v1582
      %v1586 = vmul.f32 %v1577, %v1582
      %v1588 = vlaneseq
      %v1589 = vshrl.u32 %v1588, 7
      %v1590 = vsub.s32 0, %v1589
      %v1591 = vrot.slane %v1538, %v1590
      %v1593 = vadd.f32 %v1584, %v1591
      %v1594 = vadd.f32 %v1585, %v1591
      %v1595 = vadd.f32 %v1586, %v1591
      %v1596 = vpack.c.bf16 %v1594, %v1593
      %v1597 = vpack.c.bf16 %v1595, %v1595
      %v1598 = vld [vmem:[%s9] sm:$0xf]
      %v1599 = vld [vmem:[%s9 + $0x4] sm:$0xf]
      %v1600 = vld [vmem:[%s9 + $0x8] sm:$0xf]
      %v1601 = vld [vmem:[%s9 + $0xc] sm:$0xf]
      %v1602 = vld [vmem:[%s10] sm:$0x1]
      %v1604 = vlaneseq
      %v1605 = vshrl.u32 %v1604, 7
      %v1606 = vsub.s32 0, %v1605
      %v1607 = vrot.slane %v1602, %v1606
      %v1613 = vunpack.c.l.b16 %v1598
      %v1614 = vunpack.c.l.b16 %v1599
      %v1615 = vunpack.c.l.b16 %v1600
      %v1616 = vunpack.c.l.b16 %v1601
      %v1617 = vpack.c.b16 %v1614, %v1613
      %v1618 = vpack.c.b16 %v1616, %v1615
      %v1622 = vsel %vm450, %v1596, 0
      %v1625 = vsel %vm450, %v1597, 0
      %1627 = vmatprep.subr.bf16.mxu0 0
      %1628 = vmatpush1.bf16.msra.mxu0 %v1617
      %1629 = vmatprep.subr.bf16.mxu0 0
      %1630 = vmatpush1.bf16.msra.mxu0 %v1618
      %1631 = vmatprep.subr.bf16.mxu0 0
      %1632 = vmatpush1.bf16.msra.mxu0 0
      %1633 = vmatprep.subr.bf16.mxu0 0
      %1634 = vmatpush1.bf16.msra.mxu0 0
      %1635 = vmatprep.subr.bf16.mxu0 0
      %1636 = vmatpush1.bf16.msra.mxu0 0
      %1637 = vmatprep.subr.bf16.mxu0 0
      %1638 = vmatpush1.bf16.msra.mxu0 0
      %1639 = vmatprep.subr.bf16.mxu0 0
      %1640 = vmatpush1.bf16.msra.mxu0 0
      %1641 = vmatprep.subr.bf16.mxu0 0
      %1642 = vmatpush1.bf16.msra.mxu0 0
      %1643 = vmatprep.subr.bf16.mxu0 0
      %1644 = vmatpush1.bf16.msra.mxu0 0
      %1645 = vmatprep.subr.bf16.mxu0 0
      %1646 = vmatpush1.bf16.msra.mxu0 0
      %1647 = vmatprep.subr.bf16.mxu0 0
      %1648 = vmatpush1.bf16.msra.mxu0 0
      %1649 = vmatprep.subr.bf16.mxu0 0
      %1650 = vmatpush1.bf16.msra.mxu0 0
      %1651 = vmatprep.subr.bf16.mxu0 0
      %1652 = vmatpush1.bf16.msra.mxu0 0
      %1653 = vmatprep.subr.bf16.mxu0 0
      %1654 = vmatpush1.bf16.msra.mxu0 0
      %1655 = vmatprep.subr.bf16.mxu0 0
      %1656 = vmatpush1.bf16.msra.mxu0 0
      %1657 = vmatprep.subr.bf16.mxu0 0
      %1658 = vmatpush1.bf16.msra.mxu0 0
      %1659 = vmatprep.mubr.bf16.mxu0 0
      %1660 = vmatmul.mubr.bf16.gmra.mrb[0].mxu0 %v1622
      %v1661 = vpop.f32.mrb[0].mxu0
      %v1662 = vadd.f32 %v1607, %v1661
      %v1663 = vpop.f32.mrb[0].mxu0
      %v1664 = vpop.f32.mrb[0].mxu0
      %v1665 = vadd.f32 %v1607, %v1664
      %v1666 = vpop.f32.mrb[0].mxu0
      %1667 = vmatprep.mubr.bf16.mxu0 0
      %1668 = vmatmul.mubr.bf16.gmra.mrb[0].mxu0 %v1625
      %v1669 = vpop.f32.mrb[0].mxu0
      %v1670 = vadd.f32 %v1607, %v1669
      %v1671 = vpop.f32.mrb[0].mxu0
      %v1672 = vpop.f32.mrb[0].mxu0
      %v1673 = vpop.f32.mrb[0].mxu0
      %1674 = vdwg.mxu0
      %v1675 = vmul.f32 %v1662, 0.5
      %v1676 = vmul.f32 %v1665, 0.5
      %v1677 = vmul.f32 %v1670, 0.5
      %v1678 = vmul.f32 %v1662, 0.70710677
      %v1679 = vmul.f32 %v1665, 0.70710677
      %v1680 = vmul.f32 %v1670, 0.70710677
      %v1681 = verf.f32.pop %v1678
      %v1682 = verf.f32.pop %v1679
      %v1683 = verf.f32.pop %v1680
      %v1684 = vadd.f32 %v1681, 1.0
      %v1685 = vadd.f32 %v1682, 1.0
      %v1686 = vadd.f32 %v1683, 1.0
      %v1687 = vmul.f32 %v1675, %v1684
      %v1688 = vmul.f32 %v1676, %v1685
      %v1689 = vmul.f32 %v1677, %v1686
      %v1690 = vpack.c.bf16 %v1688, %v1687
      %v1691 = vpack.c.bf16 %v1689, %v1689
      %v1692 = vld [vmem:[%s11] sm:$0xf]
      %v1693 = vld [vmem:[%s11 + $0x4] sm:$0xf]
      %v1694 = vld [vmem:[%s11 + $0x8] sm:$0xf]
      %v1695 = vld [vmem:[%s11 + $0xc] sm:$0xf]
      %v1696 = vld [vmem:[%s11 + $0x10] sm:$0xf]
      %v1697 = vld [vmem:[%s11 + $0x14] sm:$0xf]
      %v1698 = vld [vmem:[%s11 + $0x18] sm:$0xf]
      %v1699 = vld [vmem:[%s11 + $0x1c] sm:$0xf]
      %v1700 = vld [vmem:[%s11 + $0x20] sm:$0xf]
      %v1701 = vld [vmem:[%s11 + $0x24] sm:$0xf]
      %v1702 = vld [vmem:[%s11 + $0x28] sm:$0xf]
      %v1703 = vld [vmem:[%s11 + $0x2c] sm:$0xf]
      %v1704 = vld [vmem:[%s11 + $0x30] sm:$0xf]
      %v1705 = vld [vmem:[%s11 + $0x34] sm:$0xf]
      %v1706 = vld [vmem:[%s11 + $0x38] sm:$0xf]
      %v1707 = vld [vmem:[%s11 + $0x3c] sm:$0xf]
      %v1708 = vld [vmem:[%s12] sm:$0x1]
      %v1710 = vlaneseq
      %v1711 = vshrl.u32 %v1710, 7
      %v1712 = vsub.s32 0, %v1711
      %v1713 = vrot.slane %v1708, %v1712
      %v1731 = vunpack.c.l.b16 %v1692
      %v1732 = vunpack.c.l.b16 %v1693
      %v1733 = vunpack.c.l.b16 %v1694
      %v1734 = vunpack.c.l.b16 %v1695
      %v1735 = vunpack.c.l.b16 %v1696
      %v1736 = vunpack.c.l.b16 %v1697
      %v1737 = vunpack.c.l.b16 %v1698
      %v1738 = vunpack.c.l.b16 %v1699
      %v1739 = vunpack.c.l.b16 %v1700
      %v1740 = vunpack.c.l.b16 %v1701
      %v1741 = vunpack.c.l.b16 %v1702
      %v1742 = vunpack.c.l.b16 %v1703
      %v1743 = vunpack.c.l.b16 %v1704
      %v1744 = vunpack.c.l.b16 %v1705
      %v1745 = vunpack.c.l.b16 %v1706
      %v1746 = vunpack.c.l.b16 %v1707
      %v1747 = vpack.c.b16 %v1732, %v1731
      %v1748 = vpack.c.b16 %v1734, %v1733
      %v1749 = vpack.c.b16 %v1736, %v1735
      %v1750 = vpack.c.b16 %v1738, %v1737
      %v1751 = vpack.c.b16 %v1740, %v1739
      %v1752 = vpack.c.b16 %v1742, %v1741
      %v1753 = vpack.c.b16 %v1744, %v1743
      %v1754 = vpack.c.b16 %v1746, %v1745
      %1763 = vmatprep.subr.bf16.mxu0 0
      %1764 = vmatpush1.bf16.msra.mxu0 %v1747
      %1765 = vmatprep.subr.bf16.mxu0 0
      %1766 = vmatpush1.bf16.msra.mxu0 %v1748
      %1767 = vmatprep.subr.bf16.mxu0 0
      %1768 = vmatpush1.bf16.msra.mxu0 %v1749
      %1769 = vmatprep.subr.bf16.mxu0 0
      %1770 = vmatpush1.bf16.msra.mxu0 %v1750
      %1771 = vmatprep.subr.bf16.mxu0 0
      %1772 = vmatpush1.bf16.msra.mxu0 %v1751
      %1773 = vmatprep.subr.bf16.mxu0 0
      %1774 = vmatpush1.bf16.msra.mxu0 %v1752
      %1775 = vmatprep.subr.bf16.mxu0 0
      %1776 = vmatpush1.bf16.msra.mxu0 %v1753
      %1777 = vmatprep.subr.bf16.mxu0 0
      %1778 = vmatpush1.bf16.msra.mxu0 %v1754
      %1779 = vmatprep.subr.bf16.mxu0 0
      %1780 = vmatpush1.bf16.msra.mxu0 0
      %1781 = vmatprep.subr.bf16.mxu0 0
      %1782 = vmatpush1.bf16.msra.mxu0 0
      %1783 = vmatprep.subr.bf16.mxu0 0
      %1784 = vmatpush1.bf16.msra.mxu0 0
      %1785 = vmatprep.subr.bf16.mxu0 0
      %1786 = vmatpush1.bf16.msra.mxu0 0
      %1787 = vmatprep.subr.bf16.mxu0 0
      %1788 = vmatpush1.bf16.msra.mxu0 0
      %1789 = vmatprep.subr.bf16.mxu0 0
      %1790 = vmatpush1.bf16.msra.mxu0 0
      %1791 = vmatprep.subr.bf16.mxu0 0
      %1792 = vmatpush1.bf16.msra.mxu0 0
      %1793 = vmatprep.subr.bf16.mxu0 0
      %1794 = vmatpush1.bf16.msra.mxu0 0
      %1795 = vmatprep.mubr.bf16.mxu0 0
      %1796 = vmatmul.mubr.bf16.gmra.mrb[0].mxu0 %v1690
      %v1797 = vpop.f32.mrb[0].mxu0
      %v1798 = vadd.f32 %v1713, %v1797
      %v1799 = vpop.f32.mrb[0].mxu0
      %v1800 = vpop.f32.mrb[0].mxu0
      %v1801 = vadd.f32 %v1713, %v1800
      %v1802 = vpop.f32.mrb[0].mxu0
      %1803 = vmatprep.mubr.bf16.mxu0 0
      %1804 = vmatmul.mubr.bf16.gmra.mrb[0].mxu0 %v1691
      %v1805 = vpop.f32.mrb[0].mxu0
      %v1806 = vadd.f32 %v1713, %v1805
      %v1807 = vpop.f32.mrb[0].mxu0
      %v1808 = vpop.f32.mrb[0].mxu0
      %v1809 = vpop.f32.mrb[0].mxu0
      %1810 = vdwg.mxu0
      %v1811 = vadd.f32 %v1798, %v1534
      %v1812 = vadd.f32 %v1801, %v1535
      %v1813 = vadd.f32 %v1806, %v1536
      %v1814 = vpack.c.bf16 %v1812, %v1811
      %v1815 = vpack.c.bf16 %v1813, %v1813
      %v1818 = vunpack.c.l.b16 %v1814
      %v1819 = vunpack.c.h.b16 %v1814
      %v1820 = vunpack.c.l.b16 %v1815
      %v1821 = vpack.c.b16 %v1818, %v1818
      %v1822 = vpack.c.b16 %v1819, %v1819
      %v1823 = vpack.c.b16 %v1820, %v1820
      %vm1827 = vcmask 257024
      %1828 = vst.msk [vmem:[%s440] sm:$0xf] %vm1827, %v1821
      %1829 = vst.msk [vmem:[%s440 + $0x4] sm:$0xf] %vm1827, %v1822
      %1830 = vst.msk [vmem:[%s440 + $0x8] sm:$0xf] %vm1827, %v1823
      %p1831 = scmp.lt.s32.totalorder %s24, 1
      %s1832 = scalar_select %p1831, %s24, 1
      %s1833 = smul.addr %s1832, 3
      %s1834 = smul.addr %s1833, 4
      %s1835 = scalar_lea.vmem %s13, %s1834
      // Predicated region
      $region73: #{vit_forward.5} parent=71 // pred_check
        %p1836 = pneg %p320
      $region74: #{vit_forward.5} parent=71 // pred_check_branch
        %1838 = sbr.rel (%p1836) target = $region76
      $region75: #{vit_forward.5} parent=71 // pred_region
        _
      $region76: #{vit_forward.5} parent=71 // pred_fallthru
        _
    $region72: #{vit_forward.5} parent=5 // pred_fallthru
      _
    %p1839 = scmp.le.s32.totalorder 2, %s19
    // Predicated region
    $region77: #{vit_forward.5} parent=5 // pred_check
      %p1840 = pneg %p1839
    $region78: #{vit_forward.5} parent=5 // pred_check_branch
      %1842 = sbr.rel (%p1840) target = $region80
    $region79: #{vit_forward.5} parent=5 // pred_region
      %s1843 = ssub.s32 %s19, 2
      // Predicated region
      $region81: #{vit_forward.5} parent=79 // pred_check
        %p1844 = pneg %p326
      $region82: #{vit_forward.5} parent=79 // pred_check_branch
        %1846 = sbr.rel (%p1844) target = $region84
      $region83: #{vit_forward.5} parent=79 // pred_region
        %p1847 = scmp.lt.s32.totalorder %s25, 1
        %s1848 = scalar_select %p1847, %s25, 1
        %s1849 = smul.addr %s1848, 3
        %s1850 = smul.addr %s1849, 4
        %s1851 = scalar_lea.vmem %s13, %s1850
      $region84: #{vit_forward.5} parent=79 // pred_fallthru
        _
    $region80: #{vit_forward.5} parent=5 // pred_fallthru
      _
  $region6: #{vit_forward.5} parent=0 // loop_footer
    %s23 = sadd.s32 1, %s19
  $region7: #{vit_forward.5} parent=0 // loop_footer_branch
    %18 = sbr.rel target = $region3
  $region8: #{vit_forward.5} parent=0 // loop_exit
    _

</llo_original>
